<compile_context>
chip_gen: v6e
topology: v6e:2x2x1
jax: 0.10.0
libtpu: 0.0.40
codegen_flags: <defaults>
</compile_context>

<pallas_src>
import functools

import jax
import jax.numpy as jnp
import numpy as np
from jax import lax
from jax.experimental import pallas as pl
from jax.experimental.pallas import tpu as pltpu


def _edge_passing_kernel(idx_ref, feat_ref, out_ref):
    """Vectorized gather of `tile_e` source rows for the current edge tile.

    idx_ref : VMEM (tile_e, 1) int32  -- source-node index per edge in tile
    feat_ref: VMEM (N, D)             -- full node feature table (resident)
    out_ref : VMEM (tile_e, D)        -- gathered per-edge features
    """
    tile_e = out_ref.shape[0]
    n = feat_ref.shape[0]

    idx = idx_ref[...]                                       # (tile_e, 1)
    iota = lax.broadcasted_iota(jnp.int32, (tile_e, n), 1)   # (tile_e, N)
    onehot = (iota == idx).astype(feat_ref.dtype)            # (tile_e, N)

    # One-hot MXU gather: each output row is exactly one feature row.
    # HIGHEST precision keeps the f32 result bit-exact (bf16x3 splits of the
    # feature recombine exactly when multiplied by 1.0 and summed with zeros).
    gathered = jnp.dot(
        onehot,
        feat_ref[...],
        preferred_element_type=jnp.float32,
        precision=jax.lax.Precision.HIGHEST,
    )
    out_ref[...] = gathered.astype(out_ref.dtype)


def edge_passing(features, src_idx, *, tile_e=512):
    """feature_n[e] = features[src_idx[e]]  (EdgePassing.forward)."""
    N, D = features.shape
    E = src_idx.shape[0]
    dtype = features.dtype

    # Sublane-tiling requirement on the output block, dtype-aware.
    min_sublane = {4: 8, 2: 16, 1: 32}[jnp.dtype(dtype).itemsize]
    assert tile_e % min_sublane == 0, (
        f"tile_e must be a multiple of {min_sublane} for dtype {dtype}")

    num_tiles = (E + tile_e - 1) // tile_e
    e_pad = num_tiles * tile_e

    # Clamp (no runtime OOB check inside the kernel) and pad with zeros
    # (padded rows gather a valid row and are sliced off afterwards).
    idx = jnp.clip(src_idx.astype(jnp.int32), 0, N - 1)
    idx = jnp.pad(idx, (0, e_pad - E))
    idx2d = idx.reshape(e_pad, 1)

    out = pl.pallas_call(
        _edge_passing_kernel,
        out_shape=jax.ShapeDtypeStruct((e_pad, D), dtype),
        grid=(num_tiles,),
        in_specs=[
            # Per-tile edge indices, delivered as a VMEM vector block.
            pl.BlockSpec((tile_e, 1), lambda t: (t, 0)),
            # Full node-feature table; constant block index keeps it
            # VMEM-resident across all grid steps (no re-DMA per tile).
            pl.BlockSpec((N, D), lambda t: (0, 0)),
        ],
        out_specs=pl.BlockSpec((tile_e, D), lambda t: (t, 0)),
        compiler_params=pltpu.CompilerParams(
            dimension_semantics=("parallel",)),
    )(idx2d, features)

    return out[:E]


if __name__ == "__main__":
    # Small, module-consistent shapes: N nodes with D-dim features, E edges.
    N, D = 64, 128          # D = 128 -> lane-dense rows / output slabs
    E = 1000                # deliberately NOT a multiple of the tile size

    key = jax.random.PRNGKey(0)
    k1, k2 = jax.random.split(key)
    features = jax.random.normal(k1, (N, D), dtype=jnp.float32)
    src_idx = jax.random.randint(k2, (E,), 0, N, dtype=jnp.int32)

    feature_n = edge_passing(features, src_idx, tile_e=512)
    jax.block_until_ready(feature_n)

    # Reference: plain numpy gather (EdgePassing returns src features as-is).
    ref = np.asarray(features)[np.asarray(src_idx)]
    np.testing.assert_allclose(np.asarray(feature_n), ref, rtol=1e-6, atol=1e-6)

    print("KERNEL_OK")
</pallas_src>

<mosaic_0001>
module attributes {stable_mosaic.version = 11 : i64} {
  func.func @_edge_passing_kernel(%arg0: i32, %arg1: memref<512x1xi32, #tpu.memory_space<vmem>>, %arg2: memref<64x128xf32, #tpu.memory_space<vmem>>, %arg3: memref<512x128xf32, #tpu.memory_space<vmem>>) attributes {dimension_semantics = [#tpu.dimension_semantics<parallel>], iteration_bounds = array<i64: 2>, scalar_prefetch = 0 : i64, scratch_operands = 0 : i64, tpu.core_type = #tpu.core_type<tc>, window_params = [{transform_indices = @transform_0, window_bounds = array<i64: 512, 1>}, {pipeline_mode = #tpu.pipeline_mode<synchronous>, transform_indices = @transform_1, window_bounds = array<i64: 64, 128>}, {transform_indices = @transform_2, window_bounds = array<i64: 512, 128>}]} {
    %c0 = arith.constant 0 : index
    %c0_0 = arith.constant 0 : index
    %0 = vector.load %arg1[%c0, %c0_0] : memref<512x1xi32, #tpu.memory_space<vmem>>, vector<512x1xi32>
    %1 = tpu.iota {dimensions = array<i32: 1>} : vector<512x64xi32>
    %2 = vector.broadcast %0 : vector<512x1xi32> to vector<512x64xi32>
    %3 = arith.cmpi eq, %1, %2 : vector<512x64xi32>
    %4 = arith.extui %3 : vector<512x64xi1> to vector<512x64xi32>
    %5 = arith.sitofp %4 : vector<512x64xi32> to vector<512x64xf32>
    %c0_1 = arith.constant 0 : index
    %c0_2 = arith.constant 0 : index
    %6 = vector.load %arg2[%c0_1, %c0_2] : memref<64x128xf32, #tpu.memory_space<vmem>>, vector<64x128xf32>
    %cst = arith.constant dense<0.000000e+00> : vector<512x128xf32>
    %7 = tpu.matmul %5, %6, %cst {dimension_numbers = #tpu.dot_dimension_numbers<[1], [0], [0], [1], [0, 0, 1, 1], [], []>, precision = #tpu.contract_precision<fp32>} : vector<512x64xf32>, vector<64x128xf32>, vector<512x128xf32> -> vector<512x128xf32>
    %c0_3 = arith.constant 0 : index
    %c0_4 = arith.constant 0 : index
    %8 = vector.load %arg3[%c0_3, %c0_4] : memref<512x128xf32, #tpu.memory_space<vmem>>, vector<512x128xf32>
    tpu.vector_store %arg3[%c0_3, %c0_4], %7 {strides = array<i32>} : memref<512x128xf32, #tpu.memory_space<vmem>>, vector<512x128xf32>,
    return
  }
  func.func @transform_0(%arg0: i32) -> (i32, i32) {
    %c0_i32 = arith.constant 0 : i32
    %c0_i32_0 = arith.constant 0 : i32
    return %arg0, %c0_i32 : i32, i32
  }
  func.func @transform_1(%arg0: i32) -> (i32, i32) {
    %c0_i32 = arith.constant 0 : i32
    %c0_i32_0 = arith.constant 0 : i32
    %c0_i32_1 = arith.constant 0 : i32
    return %c0_i32, %c0_i32_0 : i32, i32
  }
  func.func @transform_2(%arg0: i32) -> (i32, i32) {
    %c0_i32 = arith.constant 0 : i32
    %c0_i32_0 = arith.constant 0 : i32
    return %arg0, %c0_i32 : i32, i32
  }
}

</mosaic_0001>

<llo_original>
// kernel: tpu_custom_call.1
$region0: #{tpu_custom_call.1}
  #allocation0 [shape = 'u32[]', space=smem, size = 0x4, offset = 0x4, fixed_abs, tag = 'smem constant byte address 0x4 - core index']
  #allocation1 [shape = 'u32[144,128]{1,0:T(1,128)}', space=vmem, size = 0x12000, scoped, tag = 'internal scratch']
  %s0 = inlined_call_operand.vmem [shape: s32[1024,1], index: 0, kind: input, shape index: {}]
  %s1 = inlined_call_operand.vmem [shape: f32[64,128], index: 1, kind: input, shape index: {}]
  %s2 = inlined_call_operand.hbm [shape: f32[1024,128], index: 2, kind: output, shape index: {}]
  %s3 = sld [smem:[#allocation0]]
  $region41: #{tpu_custom_call.1} parent=0
    _
  %s5 = ssub.s32 1, %s3
  %s6 = scalar_select 0, %s5, %s3
  $region1: #{tpu_custom_call.1} parent=0
    #allocation2 [shape = 'u8[524288]{0}', space=vmem, size = 0x80000, scoped, tag = 'output window, operand 0']
    #allocation3 [shape = 's32[2]{0}', space=sflag, size = 0x8, scoped, tag = 'scoped memory for tpu_custom_call.1']
    %7 = vsyncpa [#allocation3], 0
    %s8 = scalar_lea.sflag [#allocation3], 1
    %9 = vsyncpa %s8, 0
    loop: start=0, step=1, limit=4
    $region2: #{tpu_custom_call.1} parent=1 // loop_pre_header
      _
    $region3: #{tpu_custom_call.1} parent=1 // loop_header
      %s11 = sphi 0, %s15
      %p12 = scmp.ge.s32.totalorder %s11, 4
      %s21 = sphi 0, %s23
      %s24 = sphi 0, %s21
      %s25 = sphi 0, %s24
      %s41 = sphi 0, %s25
      %s45 = sphi 0, %s45
      %s47 = sphi 0, %s45
      %s48 = sphi 0, %s47
      %s62 = sphi 0, %s48
      %s68 = sphi 0, %s70
      %s71 = sphi 0, %s68
      %s72 = sphi 0, %s71
      %s88 = sphi 0, %s72
    $region4: #{tpu_custom_call.1} parent=1 // loop_header_branch
      %14 = sbr.rel (%p12) target = $region8
    $region5: #{tpu_custom_call.1} parent=1 // loop_body
      %s16 = ssub.s32 %s11, 1
      %s17 = ssub.s32 %s11, 2
      %s18 = sadd.s32 %s11, 1
      %s19 = ssub.s32 %s11, %s18
      %p20 = scmp.eq.s32.totalorder %s19, 0
      %s22 = sadd.s32 %s21, 1
      %s23 = scalar_select %p20, %s21, %s22
      %p26 = pneg %p20
      %p27 = scmp.eq.s32.totalorder %s11, 1
      %p28 = por %p26, %p27
      %p29 = scmp.ne.s32.totalorder %s21, %s24
      %p30 = scmp.eq.s32.totalorder %s11, 0
      %p31 = por %p29, %p30
      %p32 = scmp.ne.s32.totalorder %s21, %s24
      %p33 = scmp.eq.s32.totalorder %s16, 1
      %p34 = por %p32, %p33
      %p35 = scmp.ne.s32.totalorder %s24, %s25
      %p36 = scmp.eq.s32.totalorder %s16, 0
      %p37 = por %p35, %p36
      %p38 = scmp.ne.s32.totalorder %s24, %s25
      %p39 = scmp.eq.s32.totalorder %s17, 1
      %p40 = por %p38, %p39
      %p42 = scmp.ne.s32.totalorder %s25, %s41
      %p43 = scmp.eq.s32.totalorder %s17, 0
      %p44 = por %p42, %p43
      %s46 = sadd.s32 %s45, 1
      %p49 = scmp.eq.s32.totalorder %s11, 1
      %p50 = scmp.ne.s32.totalorder %s45, %s47
      %p51 = scmp.eq.s32.totalorder %s11, 0
      %p52 = por %p50, %p51
      %p53 = scmp.ne.s32.totalorder %s45, %s47
      %p54 = scmp.eq.s32.totalorder %s16, 1
      %p55 = por %p53, %p54
      %p56 = scmp.ne.s32.totalorder %s47, %s48
      %p57 = scmp.eq.s32.totalorder %s16, 0
      %p58 = por %p56, %p57
      %p59 = scmp.ne.s32.totalorder %s47, %s48
      %p60 = scmp.eq.s32.totalorder %s17, 1
      %p61 = por %p59, %p60
      %p63 = scmp.ne.s32.totalorder %s48, %s62
      %p64 = scmp.eq.s32.totalorder %s17, 0
      %p65 = por %p63, %p64
      %s66 = ssub.s32 %s11, %s18
      %p67 = scmp.eq.s32.totalorder %s66, 0
      %s69 = sadd.s32 %s68, 1
      %s70 = scalar_select %p67, %s68, %s69
      %p73 = pneg %p67
      %p74 = scmp.eq.s32.totalorder %s11, 1
      %p75 = por %p73, %p74
      %p76 = scmp.ne.s32.totalorder %s68, %s71
      %p77 = scmp.eq.s32.totalorder %s11, 0
      %p78 = por %p76, %p77
      %p79 = scmp.ne.s32.totalorder %s68, %s71
      %p80 = scmp.eq.s32.totalorder %s16, 1
      %p81 = por %p79, %p80
      %p82 = scmp.ne.s32.totalorder %s71, %s72
      %p83 = scmp.eq.s32.totalorder %s16, 0
      %p84 = por %p82, %p83
      %p85 = scmp.ne.s32.totalorder %s71, %s72
      %p86 = scmp.eq.s32.totalorder %s17, 1
      %p87 = por %p85, %p86
      %p89 = scmp.ne.s32.totalorder %s72, %s88
      %p90 = scmp.eq.s32.totalorder %s17, 0
      %p91 = por %p89, %p90
      %p92 = scmp.le.s32.totalorder 1, %s11
      %p93 = scmp.lt.s32.totalorder %s11, 3
      %p94 = pnand %p92, %p93
      %p95 = pneg %p94
      // Predicated region
      $region9: #{tpu_custom_call.1} parent=5 // pred_check
        _
      $region10: #{tpu_custom_call.1} parent=5 // pred_check_branch
        %97 = sbr.rel (%p94) target = $region12
      $region11: #{tpu_custom_call.1} parent=5 // pred_region
        %s98 = ssub.s32 %s11, 1
        // Predicated region
        $region13: #{tpu_custom_call.1} parent=11 // pred_check
          %p99 = pneg %p58
        $region14: #{tpu_custom_call.1} parent=11 // pred_check_branch
          %101 = sbr.rel (%p99) target = $region16
        $region15: #{tpu_custom_call.1} parent=11 // pred_region
          _
        $region16: #{tpu_custom_call.1} parent=11 // pred_fallthru
          _
      $region12: #{tpu_custom_call.1} parent=5 // pred_fallthru
        _
      %p102 = scmp.lt.s32.totalorder %s11, 2
      // Predicated region
      $region17: #{tpu_custom_call.1} parent=5 // pred_check
        %p103 = pneg %p102
      $region18: #{tpu_custom_call.1} parent=5 // pred_check_branch
        %105 = sbr.rel (%p103) target = $region20
      $region19: #{tpu_custom_call.1} parent=5 // pred_region
        // Predicated region
        $region21: #{tpu_custom_call.1} parent=19 // pred_check
          %p106 = pneg %p31
        $region22: #{tpu_custom_call.1} parent=19 // pred_check_branch
          %108 = sbr.rel (%p106) target = $region24
        $region23: #{tpu_custom_call.1} parent=19 // pred_region
          %s109 = smul.u32 64, %s11
          %p110 = scmp.lt.s32.totalorder %s109, 127
          %s111 = scalar_select %p110, %s109, 127
          %s112 = smul.addr %s111, 8
          %s113 = scalar_lea.vmem %s0, %s112
          %s114 = smul.u32 64, %s11
        $region24: #{tpu_custom_call.1} parent=19 // pred_fallthru
          _
      $region20: #{tpu_custom_call.1} parent=5 // pred_fallthru
        _
      %p115 = scmp.le.s32.totalorder 1, %s11
      %p116 = scmp.lt.s32.totalorder %s11, 3
      %p117 = pnand %p115, %p116
      %p118 = pneg %p117
      // Predicated region
      $region25: #{tpu_custom_call.1} parent=5 // pred_check
        _
      $region26: #{tpu_custom_call.1} parent=5 // pred_check_branch
        %120 = sbr.rel (%p117) target = $region28
      $region27: #{tpu_custom_call.1} parent=5 // pred_region
        %s121 = ssub.s32 %s11, 1
        %s122 = smul.u32 64, %s16
        %p123 = scmp.lt.s32.totalorder %s122, 127
        %s124 = scalar_select %p123, %s122, 127
        %s125 = smul.addr %s124, 8
        %s126 = scalar_lea.vmem %s0, %s125
        %p127 = pneg %p37
        %p128 = pneg %p34
        %p129 = pneg %p58
        %p130 = pneg %p55
        %p131 = pneg %p84
        %p132 = pneg %p81
        %s133 = sand.u32 %s71, 1
        %s134 = scalar_lea.sflag [#allocation3], %s133
        %s135 = sand.u32 %s71, 1
        %s136 = smul.addr %s135, 512
        %s137 = scalar_lea.vmem [#allocation2], %s136
        %s138 = smul.u32 64, %s16
        %p139 = scmp.lt.s32.totalorder %s138, 127
        %s140 = scalar_select %p139, %s138, 127
        %s141 = smul.addr %s140, 8
        %s142 = scalar_lea.vmem %s0, %s141
        %s143 = smul.u32 64, %s16
        %s144 = smul.u32 64, %s16
        %v145 = vld [vmem:[%s142] sm:$0xff]
        %v146 = vld [vmem:[%s142 + $0x8] sm:$0xff]
        %v147 = vld [vmem:[%s142 + $0x10] sm:$0xff]
        %v148 = vld [vmem:[%s142 + $0x18] sm:$0xff]
        %v149 = vld [vmem:[%s142 + $0x20] sm:$0xff]
        %v150 = vld [vmem:[%s142 + $0x28] sm:$0xff]
        %v151 = vld [vmem:[%s142 + $0x30] sm:$0xff]
        %v152 = vld [vmem:[%s142 + $0x38] sm:$0xff]
        %v153 = vld [vmem:[%s142 + $0x40] sm:$0xff]
        %v154 = vld [vmem:[%s142 + $0x48] sm:$0xff]
        %v155 = vld [vmem:[%s142 + $0x50] sm:$0xff]
        %v156 = vld [vmem:[%s142 + $0x58] sm:$0xff]
        %v157 = vld [vmem:[%s142 + $0x60] sm:$0xff]
        %v158 = vld [vmem:[%s142 + $0x68] sm:$0xff]
        %v159 = vld [vmem:[%s142 + $0x70] sm:$0xff]
        %v160 = vld [vmem:[%s142 + $0x78] sm:$0xff]
        %v161 = vld [vmem:[%s142 + $0x80] sm:$0xff]
        %v162 = vld [vmem:[%s142 + $0x88] sm:$0xff]
        %v163 = vld [vmem:[%s142 + $0x90] sm:$0xff]
        %v164 = vld [vmem:[%s142 + $0x98] sm:$0xff]
        %v165 = vld [vmem:[%s142 + $0xa0] sm:$0xff]
        %v166 = vld [vmem:[%s142 + $0xa8] sm:$0xff]
        %v167 = vld [vmem:[%s142 + $0xb0] sm:$0xff]
        %v168 = vld [vmem:[%s142 + $0xb8] sm:$0xff]
        %v169 = vld [vmem:[%s142 + $0xc0] sm:$0xff]
        %v170 = vld [vmem:[%s142 + $0xc8] sm:$0xff]
        %v171 = vld [vmem:[%s142 + $0xd0] sm:$0xff]
        %v172 = vld [vmem:[%s142 + $0xd8] sm:$0xff]
        %v173 = vld [vmem:[%s142 + $0xe0] sm:$0xff]
        %v174 = vld [vmem:[%s142 + $0xe8] sm:$0xff]
        %v175 = vld [vmem:[%s142 + $0xf0] sm:$0xff]
        %v176 = vld [vmem:[%s142 + $0xf8] sm:$0xff]
        %v177 = vld [vmem:[%s142 + $0x100] sm:$0xff]
        %v178 = vld [vmem:[%s142 + $0x108] sm:$0xff]
        %v179 = vld [vmem:[%s142 + $0x110] sm:$0xff]
        %v180 = vld [vmem:[%s142 + $0x118] sm:$0xff]
        %v181 = vld [vmem:[%s142 + $0x120] sm:$0xff]
        %v182 = vld [vmem:[%s142 + $0x128] sm:$0xff]
        %v183 = vld [vmem:[%s142 + $0x130] sm:$0xff]
        %v184 = vld [vmem:[%s142 + $0x138] sm:$0xff]
        %v185 = vld [vmem:[%s142 + $0x140] sm:$0xff]
        %v186 = vld [vmem:[%s142 + $0x148] sm:$0xff]
        %v187 = vld [vmem:[%s142 + $0x150] sm:$0xff]
        %v188 = vld [vmem:[%s142 + $0x158] sm:$0xff]
        %v189 = vld [vmem:[%s142 + $0x160] sm:$0xff]
        %v190 = vld [vmem:[%s142 + $0x168] sm:$0xff]
        %v191 = vld [vmem:[%s142 + $0x170] sm:$0xff]
        %v192 = vld [vmem:[%s142 + $0x178] sm:$0xff]
        %v193 = vld [vmem:[%s142 + $0x180] sm:$0xff]
        %v194 = vld [vmem:[%s142 + $0x188] sm:$0xff]
        %v195 = vld [vmem:[%s142 + $0x190] sm:$0xff]
        %v196 = vld [vmem:[%s142 + $0x198] sm:$0xff]
        %v197 = vld [vmem:[%s142 + $0x1a0] sm:$0xff]
        %v198 = vld [vmem:[%s142 + $0x1a8] sm:$0xff]
        %v199 = vld [vmem:[%s142 + $0x1b0] sm:$0xff]
        %v200 = vld [vmem:[%s142 + $0x1b8] sm:$0xff]
        %v201 = vld [vmem:[%s142 + $0x1c0] sm:$0xff]
        %v202 = vld [vmem:[%s142 + $0x1c8] sm:$0xff]
        %v203 = vld [vmem:[%s142 + $0x1d0] sm:$0xff]
        %v204 = vld [vmem:[%s142 + $0x1d8] sm:$0xff]
        %v205 = vld [vmem:[%s142 + $0x1e0] sm:$0xff]
        %v206 = vld [vmem:[%s142 + $0x1e8] sm:$0xff]
        %v207 = vld [vmem:[%s142 + $0x1f0] sm:$0xff]
        %v208 = vld [vmem:[%s142 + $0x1f8] sm:$0xff]
        %v209 = vlaneseq
        %v210 = vand.u32 %v209, 127
        %211 = vset.pattern.permute.xlu0 0
        %212 = vperm.xlu0 %211, %v145
        %v213 = vpop.permute.xlu0 %212
        %214 = vset.pattern.permute.xlu0 0
        %215 = vperm.xlu0 %214, %v146
        %v216 = vpop.permute.xlu0 %215
        %217 = vset.pattern.permute.xlu0 0
        %218 = vperm.xlu0 %217, %v147
        %v219 = vpop.permute.xlu0 %218
        %220 = vset.pattern.permute.xlu0 0
        %221 = vperm.xlu0 %220, %v148
        %v222 = vpop.permute.xlu0 %221
        %223 = vset.pattern.permute.xlu0 0
        %224 = vperm.xlu0 %223, %v149
        %v225 = vpop.permute.xlu0 %224
        %226 = vset.pattern.permute.xlu0 0
        %227 = vperm.xlu0 %226, %v150
        %v228 = vpop.permute.xlu0 %227
        %229 = vset.pattern.permute.xlu0 0
        %230 = vperm.xlu0 %229, %v151
        %v231 = vpop.permute.xlu0 %230
        %232 = vset.pattern.permute.xlu0 0
        %233 = vperm.xlu0 %232, %v152
        %v234 = vpop.permute.xlu0 %233
        %235 = vset.pattern.permute.xlu0 0
        %236 = vperm.xlu0 %235, %v153
        %v237 = vpop.permute.xlu0 %236
        %238 = vset.pattern.permute.xlu0 0
        %239 = vperm.xlu0 %238, %v154
        %v240 = vpop.permute.xlu0 %239
        %241 = vset.pattern.permute.xlu0 0
        %242 = vperm.xlu0 %241, %v155
        %v243 = vpop.permute.xlu0 %242
        %244 = vset.pattern.permute.xlu0 0
        %245 = vperm.xlu0 %244, %v156
        %v246 = vpop.permute.xlu0 %245
        %247 = vset.pattern.permute.xlu0 0
        %248 = vperm.xlu0 %247, %v157
        %v249 = vpop.permute.xlu0 %248
        %250 = vset.pattern.permute.xlu0 0
        %251 = vperm.xlu0 %250, %v158
        %v252 = vpop.permute.xlu0 %251
        %253 = vset.pattern.permute.xlu0 0
        %254 = vperm.xlu0 %253, %v159
        %v255 = vpop.permute.xlu0 %254
        %256 = vset.pattern.permute.xlu0 0
        %257 = vperm.xlu0 %256, %v160
        %v258 = vpop.permute.xlu0 %257
        %259 = vset.pattern.permute.xlu0 0
        %260 = vperm.xlu0 %259, %v161
        %v261 = vpop.permute.xlu0 %260
        %262 = vset.pattern.permute.xlu0 0
        %263 = vperm.xlu0 %262, %v162
        %v264 = vpop.permute.xlu0 %263
        %265 = vset.pattern.permute.xlu0 0
        %266 = vperm.xlu0 %265, %v163
        %v267 = vpop.permute.xlu0 %266
        %268 = vset.pattern.permute.xlu0 0
        %269 = vperm.xlu0 %268, %v164
        %v270 = vpop.permute.xlu0 %269
        %271 = vset.pattern.permute.xlu0 0
        %272 = vperm.xlu0 %271, %v165
        %v273 = vpop.permute.xlu0 %272
        %274 = vset.pattern.permute.xlu0 0
        %275 = vperm.xlu0 %274, %v166
        %v276 = vpop.permute.xlu0 %275
        %277 = vset.pattern.permute.xlu0 0
        %278 = vperm.xlu0 %277, %v167
        %v279 = vpop.permute.xlu0 %278
        %280 = vset.pattern.permute.xlu0 0
        %281 = vperm.xlu0 %280, %v168
        %v282 = vpop.permute.xlu0 %281
        %283 = vset.pattern.permute.xlu0 0
        %284 = vperm.xlu0 %283, %v169
        %v285 = vpop.permute.xlu0 %284
        %286 = vset.pattern.permute.xlu0 0
        %287 = vperm.xlu0 %286, %v170
        %v288 = vpop.permute.xlu0 %287
        %289 = vset.pattern.permute.xlu0 0
        %290 = vperm.xlu0 %289, %v171
        %v291 = vpop.permute.xlu0 %290
        %292 = vset.pattern.permute.xlu0 0
        %293 = vperm.xlu0 %292, %v172
        %v294 = vpop.permute.xlu0 %293
        %295 = vset.pattern.permute.xlu0 0
        %296 = vperm.xlu0 %295, %v173
        %v297 = vpop.permute.xlu0 %296
        %298 = vset.pattern.permute.xlu0 0
        %299 = vperm.xlu0 %298, %v174
        %v300 = vpop.permute.xlu0 %299
        %301 = vset.pattern.permute.xlu0 0
        %302 = vperm.xlu0 %301, %v175
        %v303 = vpop.permute.xlu0 %302
        %304 = vset.pattern.permute.xlu0 0
        %305 = vperm.xlu0 %304, %v176
        %v306 = vpop.permute.xlu0 %305
        %307 = vset.pattern.permute.xlu0 0
        %308 = vperm.xlu0 %307, %v177
        %v309 = vpop.permute.xlu0 %308
        %310 = vset.pattern.permute.xlu0 0
        %311 = vperm.xlu0 %310, %v178
        %v312 = vpop.permute.xlu0 %311
        %313 = vset.pattern.permute.xlu0 0
        %314 = vperm.xlu0 %313, %v179
        %v315 = vpop.permute.xlu0 %314
        %316 = vset.pattern.permute.xlu0 0
        %317 = vperm.xlu0 %316, %v180
        %v318 = vpop.permute.xlu0 %317
        %319 = vset.pattern.permute.xlu0 0
        %320 = vperm.xlu0 %319, %v181
        %v321 = vpop.permute.xlu0 %320
        %322 = vset.pattern.permute.xlu0 0
        %323 = vperm.xlu0 %322, %v182
        %v324 = vpop.permute.xlu0 %323
        %325 = vset.pattern.permute.xlu0 0
        %326 = vperm.xlu0 %325, %v183
        %v327 = vpop.permute.xlu0 %326
        %328 = vset.pattern.permute.xlu0 0
        %329 = vperm.xlu0 %328, %v184
        %v330 = vpop.permute.xlu0 %329
        %331 = vset.pattern.permute.xlu0 0
        %332 = vperm.xlu0 %331, %v185
        %v333 = vpop.permute.xlu0 %332
        %334 = vset.pattern.permute.xlu0 0
        %335 = vperm.xlu0 %334, %v186
        %v336 = vpop.permute.xlu0 %335
        %337 = vset.pattern.permute.xlu0 0
        %338 = vperm.xlu0 %337, %v187
        %v339 = vpop.permute.xlu0 %338
        %340 = vset.pattern.permute.xlu0 0
        %341 = vperm.xlu0 %340, %v188
        %v342 = vpop.permute.xlu0 %341
        %343 = vset.pattern.permute.xlu0 0
        %344 = vperm.xlu0 %343, %v189
        %v345 = vpop.permute.xlu0 %344
        %346 = vset.pattern.permute.xlu0 0
        %347 = vperm.xlu0 %346, %v190
        %v348 = vpop.permute.xlu0 %347
        %349 = vset.pattern.permute.xlu0 0
        %350 = vperm.xlu0 %349, %v191
        %v351 = vpop.permute.xlu0 %350
        %352 = vset.pattern.permute.xlu0 0
        %353 = vperm.xlu0 %352, %v192
        %v354 = vpop.permute.xlu0 %353
        %355 = vset.pattern.permute.xlu0 0
        %356 = vperm.xlu0 %355, %v193
        %v357 = vpop.permute.xlu0 %356
        %358 = vset.pattern.permute.xlu0 0
        %359 = vperm.xlu0 %358, %v194
        %v360 = vpop.permute.xlu0 %359
        %361 = vset.pattern.permute.xlu0 0
        %362 = vperm.xlu0 %361, %v195
        %v363 = vpop.permute.xlu0 %362
        %364 = vset.pattern.permute.xlu0 0
        %365 = vperm.xlu0 %364, %v196
        %v366 = vpop.permute.xlu0 %365
        %367 = vset.pattern.permute.xlu0 0
        %368 = vperm.xlu0 %367, %v197
        %v369 = vpop.permute.xlu0 %368
        %370 = vset.pattern.permute.xlu0 0
        %371 = vperm.xlu0 %370, %v198
        %v372 = vpop.permute.xlu0 %371
        %373 = vset.pattern.permute.xlu0 0
        %374 = vperm.xlu0 %373, %v199
        %v375 = vpop.permute.xlu0 %374
        %376 = vset.pattern.permute.xlu0 0
        %377 = vperm.xlu0 %376, %v200
        %v378 = vpop.permute.xlu0 %377
        %379 = vset.pattern.permute.xlu0 0
        %380 = vperm.xlu0 %379, %v201
        %v381 = vpop.permute.xlu0 %380
        %382 = vset.pattern.permute.xlu0 0
        %383 = vperm.xlu0 %382, %v202
        %v384 = vpop.permute.xlu0 %383
        %385 = vset.pattern.permute.xlu0 0
        %386 = vperm.xlu0 %385, %v203
        %v387 = vpop.permute.xlu0 %386
        %388 = vset.pattern.permute.xlu0 0
        %389 = vperm.xlu0 %388, %v204
        %v390 = vpop.permute.xlu0 %389
        %391 = vset.pattern.permute.xlu0 0
        %392 = vperm.xlu0 %391, %v205
        %v393 = vpop.permute.xlu0 %392
        %394 = vset.pattern.permute.xlu0 0
        %395 = vperm.xlu0 %394, %v206
        %v396 = vpop.permute.xlu0 %395
        %397 = vset.pattern.permute.xlu0 0
        %398 = vperm.xlu0 %397, %v207
        %v399 = vpop.permute.xlu0 %398
        %400 = vset.pattern.permute.xlu0 0
        %401 = vperm.xlu0 %400, %v208
        %v402 = vpop.permute.xlu0 %401
        %vm403 = vcmp.eq.s32.totalorder %v210, %v213
        %vm404 = vcmp.eq.s32.totalorder %v210, %v216
        %vm405 = vcmp.eq.s32.totalorder %v210, %v219
        %vm406 = vcmp.eq.s32.totalorder %v210, %v222
        %vm407 = vcmp.eq.s32.totalorder %v210, %v225
        %vm408 = vcmp.eq.s32.totalorder %v210, %v228
        %vm409 = vcmp.eq.s32.totalorder %v210, %v231
        %vm410 = vcmp.eq.s32.totalorder %v210, %v234
        %vm411 = vcmp.eq.s32.totalorder %v210, %v237
        %vm412 = vcmp.eq.s32.totalorder %v210, %v240
        %vm413 = vcmp.eq.s32.totalorder %v210, %v243
        %vm414 = vcmp.eq.s32.totalorder %v210, %v246
        %vm415 = vcmp.eq.s32.totalorder %v210, %v249
        %vm416 = vcmp.eq.s32.totalorder %v210, %v252
        %vm417 = vcmp.eq.s32.totalorder %v210, %v255
        %vm418 = vcmp.eq.s32.totalorder %v210, %v258
        %vm419 = vcmp.eq.s32.totalorder %v210, %v261
        %vm420 = vcmp.eq.s32.totalorder %v210, %v264
        %vm421 = vcmp.eq.s32.totalorder %v210, %v267
        %vm422 = vcmp.eq.s32.totalorder %v210, %v270
        %vm423 = vcmp.eq.s32.totalorder %v210, %v273
        %vm424 = vcmp.eq.s32.totalorder %v210, %v276
        %vm425 = vcmp.eq.s32.totalorder %v210, %v279
        %vm426 = vcmp.eq.s32.totalorder %v210, %v282
        %vm427 = vcmp.eq.s32.totalorder %v210, %v285
        %vm428 = vcmp.eq.s32.totalorder %v210, %v288
        %vm429 = vcmp.eq.s32.totalorder %v210, %v291
        %vm430 = vcmp.eq.s32.totalorder %v210, %v294
        %vm431 = vcmp.eq.s32.totalorder %v210, %v297
        %vm432 = vcmp.eq.s32.totalorder %v210, %v300
        %vm433 = vcmp.eq.s32.totalorder %v210, %v303
        %vm434 = vcmp.eq.s32.totalorder %v210, %v306
        %vm435 = vcmp.eq.s32.totalorder %v210, %v309
        %vm436 = vcmp.eq.s32.totalorder %v210, %v312
        %vm437 = vcmp.eq.s32.totalorder %v210, %v315
        %vm438 = vcmp.eq.s32.totalorder %v210, %v318
        %vm439 = vcmp.eq.s32.totalorder %v210, %v321
        %vm440 = vcmp.eq.s32.totalorder %v210, %v324
        %vm441 = vcmp.eq.s32.totalorder %v210, %v327
        %vm442 = vcmp.eq.s32.totalorder %v210, %v330
        %vm443 = vcmp.eq.s32.totalorder %v210, %v333
        %vm444 = vcmp.eq.s32.totalorder %v210, %v336
        %vm445 = vcmp.eq.s32.totalorder %v210, %v339
        %vm446 = vcmp.eq.s32.totalorder %v210, %v342
        %vm447 = vcmp.eq.s32.totalorder %v210, %v345
        %vm448 = vcmp.eq.s32.totalorder %v210, %v348
        %vm449 = vcmp.eq.s32.totalorder %v210, %v351
        %vm450 = vcmp.eq.s32.totalorder %v210, %v354
        %vm451 = vcmp.eq.s32.totalorder %v210, %v357
        %vm452 = vcmp.eq.s32.totalorder %v210, %v360
        %vm453 = vcmp.eq.s32.totalorder %v210, %v363
        %vm454 = vcmp.eq.s32.totalorder %v210, %v366
        %vm455 = vcmp.eq.s32.totalorder %v210, %v369
        %vm456 = vcmp.eq.s32.totalorder %v210, %v372
        %vm457 = vcmp.eq.s32.totalorder %v210, %v375
        %vm458 = vcmp.eq.s32.totalorder %v210, %v378
        %vm459 = vcmp.eq.s32.totalorder %v210, %v381
        %vm460 = vcmp.eq.s32.totalorder %v210, %v384
        %vm461 = vcmp.eq.s32.totalorder %v210, %v387
        %vm462 = vcmp.eq.s32.totalorder %v210, %v390
        %vm463 = vcmp.eq.s32.totalorder %v210, %v393
        %vm464 = vcmp.eq.s32.totalorder %v210, %v396
        %vm465 = vcmp.eq.s32.totalorder %v210, %v399
        %vm466 = vcmp.eq.s32.totalorder %v210, %v402
        %v467 = vsel %vm403, 1, 0
        %v468 = vsel %vm404, 1, 0
        %v469 = vsel %vm405, 1, 0
        %v470 = vsel %vm406, 1, 0
        %v471 = vsel %vm407, 1, 0
        %v472 = vsel %vm408, 1, 0
        %v473 = vsel %vm409, 1, 0
        %v474 = vsel %vm410, 1, 0
        %v475 = vsel %vm411, 1, 0
        %v476 = vsel %vm412, 1, 0
        %v477 = vsel %vm413, 1, 0
        %v478 = vsel %vm414, 1, 0
        %v479 = vsel %vm415, 1, 0
        %v480 = vsel %vm416, 1, 0
        %v481 = vsel %vm417, 1, 0
        %v482 = vsel %vm418, 1, 0
        %v483 = vsel %vm419, 1, 0
        %v484 = vsel %vm420, 1, 0
        %v485 = vsel %vm421, 1, 0
        %v486 = vsel %vm422, 1, 0
        %v487 = vsel %vm423, 1, 0
        %v488 = vsel %vm424, 1, 0
        %v489 = vsel %vm425, 1, 0
        %v490 = vsel %vm426, 1, 0
        %v491 = vsel %vm427, 1, 0
        %v492 = vsel %vm428, 1, 0
        %v493 = vsel %vm429, 1, 0
        %v494 = vsel %vm430, 1, 0
        %v495 = vsel %vm431, 1, 0
        %v496 = vsel %vm432, 1, 0
        %v497 = vsel %vm433, 1, 0
        %v498 = vsel %vm434, 1, 0
        %v499 = vsel %vm435, 1, 0
        %v500 = vsel %vm436, 1, 0
        %v501 = vsel %vm437, 1, 0
        %v502 = vsel %vm438, 1, 0
        %v503 = vsel %vm439, 1, 0
        %v504 = vsel %vm440, 1, 0
        %v505 = vsel %vm441, 1, 0
        %v506 = vsel %vm442, 1, 0
        %v507 = vsel %vm443, 1, 0
        %v508 = vsel %vm444, 1, 0
        %v509 = vsel %vm445, 1, 0
        %v510 = vsel %vm446, 1, 0
        %v511 = vsel %vm447, 1, 0
        %v512 = vsel %vm448, 1, 0
        %v513 = vsel %vm449, 1, 0
        %v514 = vsel %vm450, 1, 0
        %v515 = vsel %vm451, 1, 0
        %v516 = vsel %vm452, 1, 0
        %v517 = vsel %vm453, 1, 0
        %v518 = vsel %vm454, 1, 0
        %v519 = vsel %vm455, 1, 0
        %v520 = vsel %vm456, 1, 0
        %v521 = vsel %vm457, 1, 0
        %v522 = vsel %vm458, 1, 0
        %v523 = vsel %vm459, 1, 0
        %v524 = vsel %vm460, 1, 0
        %v525 = vsel %vm461, 1, 0
        %v526 = vsel %vm462, 1, 0
        %v527 = vsel %vm463, 1, 0
        %v528 = vsel %vm464, 1, 0
        %v529 = vsel %vm465, 1, 0
        %v530 = vsel %vm466, 1, 0
        %v531 = vcvt.s32.f32 %v467
        %v532 = vcvt.s32.f32 %v468
        %v533 = vcvt.s32.f32 %v469
        %v534 = vcvt.s32.f32 %v470
        %v535 = vcvt.s32.f32 %v471
        %v536 = vcvt.s32.f32 %v472
        %v537 = vcvt.s32.f32 %v473
        %v538 = vcvt.s32.f32 %v474
        %v539 = vcvt.s32.f32 %v475
        %v540 = vcvt.s32.f32 %v476
        %v541 = vcvt.s32.f32 %v477
        %v542 = vcvt.s32.f32 %v478
        %v543 = vcvt.s32.f32 %v479
        %v544 = vcvt.s32.f32 %v480
        %v545 = vcvt.s32.f32 %v481
        %v546 = vcvt.s32.f32 %v482
        %v547 = vcvt.s32.f32 %v483
        %v548 = vcvt.s32.f32 %v484
        %v549 = vcvt.s32.f32 %v485
        %v550 = vcvt.s32.f32 %v486
        %v551 = vcvt.s32.f32 %v487
        %v552 = vcvt.s32.f32 %v488
        %v553 = vcvt.s32.f32 %v489
        %v554 = vcvt.s32.f32 %v490
        %v555 = vcvt.s32.f32 %v491
        %v556 = vcvt.s32.f32 %v492
        %v557 = vcvt.s32.f32 %v493
        %v558 = vcvt.s32.f32 %v494
        %v559 = vcvt.s32.f32 %v495
        %v560 = vcvt.s32.f32 %v496
        %v561 = vcvt.s32.f32 %v497
        %v562 = vcvt.s32.f32 %v498
        %v563 = vcvt.s32.f32 %v499
        %v564 = vcvt.s32.f32 %v500
        %v565 = vcvt.s32.f32 %v501
        %v566 = vcvt.s32.f32 %v502
        %v567 = vcvt.s32.f32 %v503
        %v568 = vcvt.s32.f32 %v504
        %v569 = vcvt.s32.f32 %v505
        %v570 = vcvt.s32.f32 %v506
        %v571 = vcvt.s32.f32 %v507
        %v572 = vcvt.s32.f32 %v508
        %v573 = vcvt.s32.f32 %v509
        %v574 = vcvt.s32.f32 %v510
        %v575 = vcvt.s32.f32 %v511
        %v576 = vcvt.s32.f32 %v512
        %v577 = vcvt.s32.f32 %v513
        %v578 = vcvt.s32.f32 %v514
        %v579 = vcvt.s32.f32 %v515
        %v580 = vcvt.s32.f32 %v516
        %v581 = vcvt.s32.f32 %v517
        %v582 = vcvt.s32.f32 %v518
        %v583 = vcvt.s32.f32 %v519
        %v584 = vcvt.s32.f32 %v520
        %v585 = vcvt.s32.f32 %v521
        %v586 = vcvt.s32.f32 %v522
        %v587 = vcvt.s32.f32 %v523
        %v588 = vcvt.s32.f32 %v524
        %v589 = vcvt.s32.f32 %v525
        %v590 = vcvt.s32.f32 %v526
        %v591 = vcvt.s32.f32 %v527
        %v592 = vcvt.s32.f32 %v528
        %v593 = vcvt.s32.f32 %v529
        %v594 = vcvt.s32.f32 %v530
        %v595 = vld [vmem:[%s1] sm:$0xff]
        %v596 = vld [vmem:[%s1 + $0x8] sm:$0xff]
        %v597 = vld [vmem:[%s1 + $0x10] sm:$0xff]
        %v598 = vld [vmem:[%s1 + $0x18] sm:$0xff]
        %v599 = vld [vmem:[%s1 + $0x20] sm:$0xff]
        %v600 = vld [vmem:[%s1 + $0x28] sm:$0xff]
        %v601 = vld [vmem:[%s1 + $0x30] sm:$0xff]
        %v602 = vld [vmem:[%s1 + $0x38] sm:$0xff]
        %vm603 = vcmask 523264
        %v605 = vsel %vm603, %v531, 0
        %v608 = vsel %vm603, %v532, 0
        %v611 = vsel %vm603, %v533, 0
        %v614 = vsel %vm603, %v534, 0
        %v617 = vsel %vm603, %v535, 0
        %v620 = vsel %vm603, %v536, 0
        %v623 = vsel %vm603, %v537, 0
        %v626 = vsel %vm603, %v538, 0
        %v629 = vsel %vm603, %v539, 0
        %v632 = vsel %vm603, %v540, 0
        %v635 = vsel %vm603, %v541, 0
        %v638 = vsel %vm603, %v542, 0
        %v641 = vsel %vm603, %v543, 0
        %v644 = vsel %vm603, %v544, 0
        %v647 = vsel %vm603, %v545, 0
        %v650 = vsel %vm603, %v546, 0
        %v653 = vsel %vm603, %v547, 0
        %v656 = vsel %vm603, %v548, 0
        %v659 = vsel %vm603, %v549, 0
        %v662 = vsel %vm603, %v550, 0
        %v665 = vsel %vm603, %v551, 0
        %v668 = vsel %vm603, %v552, 0
        %v671 = vsel %vm603, %v553, 0
        %v674 = vsel %vm603, %v554, 0
        %v677 = vsel %vm603, %v555, 0
        %v680 = vsel %vm603, %v556, 0
        %v683 = vsel %vm603, %v557, 0
        %v686 = vsel %vm603, %v558, 0
        %v689 = vsel %vm603, %v559, 0
        %v692 = vsel %vm603, %v560, 0
        %v695 = vsel %vm603, %v561, 0
        %v698 = vsel %vm603, %v562, 0
        %v701 = vsel %vm603, %v563, 0
        %v704 = vsel %vm603, %v564, 0
        %v707 = vsel %vm603, %v565, 0
        %v710 = vsel %vm603, %v566, 0
        %v713 = vsel %vm603, %v567, 0
        %v716 = vsel %vm603, %v568, 0
        %v719 = vsel %vm603, %v569, 0
        %v722 = vsel %vm603, %v570, 0
        %v725 = vsel %vm603, %v571, 0
        %v728 = vsel %vm603, %v572, 0
        %v731 = vsel %vm603, %v573, 0
        %v734 = vsel %vm603, %v574, 0
        %v737 = vsel %vm603, %v575, 0
        %v740 = vsel %vm603, %v576, 0
        %v743 = vsel %vm603, %v577, 0
        %v746 = vsel %vm603, %v578, 0
        %v749 = vsel %vm603, %v579, 0
        %v752 = vsel %vm603, %v580, 0
        %v755 = vsel %vm603, %v581, 0
        %v758 = vsel %vm603, %v582, 0
        %v761 = vsel %vm603, %v583, 0
        %v764 = vsel %vm603, %v584, 0
        %v767 = vsel %vm603, %v585, 0
        %v770 = vsel %vm603, %v586, 0
        %v773 = vsel %vm603, %v587, 0
        %v776 = vsel %vm603, %v588, 0
        %v779 = vsel %vm603, %v589, 0
        %v782 = vsel %vm603, %v590, 0
        %v785 = vsel %vm603, %v591, 0
        %v788 = vsel %vm603, %v592, 0
        %v791 = vsel %vm603, %v593, 0
        %v794 = vsel %vm603, %v594, 0
        %796 = vmatprep.subr.mxu0 0.0
        %797 = vmatpush1.msra.mxu0 0.0
        %798 = vmatprep.subr.mxu0 0.0
        %799 = vmatpush1.msra.mxu0 0.0
        %800 = vmatprep.subr.mxu0 0.0
        %801 = vmatpush1.msra.mxu0 0.0
        %802 = vmatprep.subr.mxu0 0.0
        %803 = vmatpush1.msra.mxu0 0.0
        %804 = vmatprep.subr.mxu0 0.0
        %805 = vmatpush1.msra.mxu0 0.0
        %806 = vmatprep.subr.mxu0 0.0
        %807 = vmatpush1.msra.mxu0 0.0
        %808 = vmatprep.subr.mxu0 0.0
        %809 = vmatpush1.msra.mxu0 0.0
        %810 = vmatprep.subr.mxu0 0.0
        %811 = vmatpush1.msra.mxu0 0.0
        %812 = vmatprep.subr.mxu0 0.0
        %v813 = vand.u32 %v602, 4294901760
        %814 = vmatpush1.msra.mxu0 %v813
        %815 = vmatprep.subr.mxu0 0.0
        %v816 = vand.u32 %v601, 4294901760
        %817 = vmatpush1.msra.mxu0 %v816
        %818 = vmatprep.subr.mxu0 0.0
        %v819 = vand.u32 %v600, 4294901760
        %820 = vmatpush1.msra.mxu0 %v819
        %821 = vmatprep.subr.mxu0 0.0
        %v822 = vand.u32 %v599, 4294901760
        %823 = vmatpush1.msra.mxu0 %v822
        %824 = vmatprep.subr.mxu0 0.0
        %v825 = vand.u32 %v598, 4294901760
        %826 = vmatpush1.msra.mxu0 %v825
        %827 = vmatprep.subr.mxu0 0.0
        %v828 = vand.u32 %v597, 4294901760
        %829 = vmatpush1.msra.mxu0 %v828
        %830 = vmatprep.subr.mxu0 0.0
        %v831 = vand.u32 %v596, 4294901760
        %832 = vmatpush1.msra.mxu0 %v831
        %833 = vmatprep.subr.mxu0 0.0
        %v834 = vand.u32 %v595, 4294901760
        %835 = vmatpush1.msra.mxu0 %v834
        %836 = vmatprep.subr.mxu0 0.0
        %837 = vmatpush2.msra.mxu0 0.0
        %838 = vmatprep.subr.mxu0 0.0
        %839 = vmatpush2.msra.mxu0 0.0
        %840 = vmatprep.subr.mxu0 0.0
        %841 = vmatpush2.msra.mxu0 0.0
        %842 = vmatprep.subr.mxu0 0.0
        %843 = vmatpush2.msra.mxu0 0.0
        %844 = vmatprep.subr.mxu0 0.0
        %845 = vmatpush2.msra.mxu0 0.0
        %846 = vmatprep.subr.mxu0 0.0
        %847 = vmatpush2.msra.mxu0 0.0
        %848 = vmatprep.subr.mxu0 0.0
        %849 = vmatpush2.msra.mxu0 0.0
        %850 = vmatprep.subr.mxu0 0.0
        %851 = vmatpush2.msra.mxu0 0.0
        %852 = vmatprep.subr.mxu0 0.0
        %853 = vmatpush2.msra.mxu0 0.0
        %854 = vmatprep.subr.mxu0 0.0
        %855 = vmatpush2.msra.mxu0 0.0
        %856 = vmatprep.subr.mxu0 0.0
        %857 = vmatpush2.msra.mxu0 0.0
        %858 = vmatprep.subr.mxu0 0.0
        %859 = vmatpush2.msra.mxu0 0.0
        %860 = vmatprep.subr.mxu0 0.0
        %861 = vmatpush2.msra.mxu0 0.0
        %862 = vmatprep.subr.mxu0 0.0
        %863 = vmatpush2.msra.mxu0 0.0
        %864 = vmatprep.subr.mxu0 0.0
        %865 = vmatpush2.msra.mxu0 0.0
        %866 = vmatprep.subr.mxu0 0.0
        %867 = vmatpush2.msra.mxu0 0.0
        %868 = vmatprep.mubr.f32.mxu0 0.0
        %v869 = vand.u32 %v605, 4294901760
        %v870 = vsub.f32 %v605, %v869
        %v871 = vand.u32 %v870, 4294901760
        %v872 = vsub.f32 %v870, %v871
        %v873 = vand.u32 %v872, 4294901760
        %874 = vmatmul.mubr.f32.gmra.mxu0 %v873
        %v875 = vpop.f32.mrf.mxu0
        %v876 = vadd.f32 0.0, %v875
        %v877 = vpop.f32.mrf.mxu0
        %878 = vmatprep.mubr.f32.mxu0 0.0
        %v879 = vand.u32 %v608, 4294901760
        %v880 = vsub.f32 %v608, %v879
        %v881 = vand.u32 %v880, 4294901760
        %v882 = vsub.f32 %v880, %v881
        %v883 = vand.u32 %v882, 4294901760
        %884 = vmatmul.mubr.f32.gmra.mxu0 %v883
        %v885 = vpop.f32.mrf.mxu0
        %v886 = vadd.f32 0.0, %v885
        %v887 = vpop.f32.mrf.mxu0
        %888 = vmatprep.mubr.f32.mxu0 0.0
        %v889 = vand.u32 %v611, 4294901760
        %v890 = vsub.f32 %v611, %v889
        %v891 = vand.u32 %v890, 4294901760
        %v892 = vsub.f32 %v890, %v891
        %v893 = vand.u32 %v892, 4294901760
        %894 = vmatmul.mubr.f32.gmra.mxu0 %v893
        %v895 = vpop.f32.mrf.mxu0
        %v896 = vadd.f32 0.0, %v895
        %v897 = vpop.f32.mrf.mxu0
        %898 = vmatprep.mubr.f32.mxu0 0.0
        %v899 = vand.u32 %v614, 4294901760
        %v900 = vsub.f32 %v614, %v899
        %v901 = vand.u32 %v900, 4294901760
        %v902 = vsub.f32 %v900, %v901
        %v903 = vand.u32 %v902, 4294901760
        %904 = vmatmul.mubr.f32.gmra.mxu0 %v903
        %v905 = vpop.f32.mrf.mxu0
        %v906 = vadd.f32 0.0, %v905
        %v907 = vpop.f32.mrf.mxu0
        %908 = vmatprep.mubr.f32.mxu0 0.0
        %v909 = vand.u32 %v617, 4294901760
        %v910 = vsub.f32 %v617, %v909
        %v911 = vand.u32 %v910, 4294901760
        %v912 = vsub.f32 %v910, %v911
        %v913 = vand.u32 %v912, 4294901760
        %914 = vmatmul.mubr.f32.gmra.mxu0 %v913
        %v915 = vpop.f32.mrf.mxu0
        %v916 = vadd.f32 0.0, %v915
        %v917 = vpop.f32.mrf.mxu0
        %918 = vmatprep.mubr.f32.mxu0 0.0
        %v919 = vand.u32 %v620, 4294901760
        %v920 = vsub.f32 %v620, %v919
        %v921 = vand.u32 %v920, 4294901760
        %v922 = vsub.f32 %v920, %v921
        %v923 = vand.u32 %v922, 4294901760
        %924 = vmatmul.mubr.f32.gmra.mxu0 %v923
        %v925 = vpop.f32.mrf.mxu0
        %v926 = vadd.f32 0.0, %v925
        %v927 = vpop.f32.mrf.mxu0
        %928 = vmatprep.mubr.f32.mxu0 0.0
        %v929 = vand.u32 %v623, 4294901760
        %v930 = vsub.f32 %v623, %v929
        %v931 = vand.u32 %v930, 4294901760
        %v932 = vsub.f32 %v930, %v931
        %v933 = vand.u32 %v932, 4294901760
        %934 = vmatmul.mubr.f32.gmra.mxu0 %v933
        %v935 = vpop.f32.mrf.mxu0
        %v936 = vadd.f32 0.0, %v935
        %v937 = vpop.f32.mrf.mxu0
        %938 = vmatprep.mubr.f32.mxu0 0.0
        %v939 = vand.u32 %v626, 4294901760
        %v940 = vsub.f32 %v626, %v939
        %v941 = vand.u32 %v940, 4294901760
        %v942 = vsub.f32 %v940, %v941
        %v943 = vand.u32 %v942, 4294901760
        %944 = vmatmul.mubr.f32.gmra.mxu0 %v943
        %v945 = vpop.f32.mrf.mxu0
        %v946 = vadd.f32 0.0, %v945
        %v947 = vpop.f32.mrf.mxu0
        %948 = vmatprep.mubr.f32.mxu0 0.0
        %v949 = vand.u32 %v629, 4294901760
        %v950 = vsub.f32 %v629, %v949
        %v951 = vand.u32 %v950, 4294901760
        %v952 = vsub.f32 %v950, %v951
        %v953 = vand.u32 %v952, 4294901760
        %954 = vmatmul.mubr.f32.gmra.mxu0 %v953
        %v955 = vpop.f32.mrf.mxu0
        %v956 = vadd.f32 0.0, %v955
        %v957 = vpop.f32.mrf.mxu0
        %958 = vmatprep.mubr.f32.mxu0 0.0
        %v959 = vand.u32 %v632, 4294901760
        %v960 = vsub.f32 %v632, %v959
        %v961 = vand.u32 %v960, 4294901760
        %v962 = vsub.f32 %v960, %v961
        %v963 = vand.u32 %v962, 4294901760
        %964 = vmatmul.mubr.f32.gmra.mxu0 %v963
        %v965 = vpop.f32.mrf.mxu0
        %v966 = vadd.f32 0.0, %v965
        %v967 = vpop.f32.mrf.mxu0
        %968 = vmatprep.mubr.f32.mxu0 0.0
        %v969 = vand.u32 %v635, 4294901760
        %v970 = vsub.f32 %v635, %v969
        %v971 = vand.u32 %v970, 4294901760
        %v972 = vsub.f32 %v970, %v971
        %v973 = vand.u32 %v972, 4294901760
        %974 = vmatmul.mubr.f32.gmra.mxu0 %v973
        %v975 = vpop.f32.mrf.mxu0
        %v976 = vadd.f32 0.0, %v975
        %v977 = vpop.f32.mrf.mxu0
        %978 = vmatprep.mubr.f32.mxu0 0.0
        %v979 = vand.u32 %v638, 4294901760
        %v980 = vsub.f32 %v638, %v979
        %v981 = vand.u32 %v980, 4294901760
        %v982 = vsub.f32 %v980, %v981
        %v983 = vand.u32 %v982, 4294901760
        %984 = vmatmul.mubr.f32.gmra.mxu0 %v983
        %v985 = vpop.f32.mrf.mxu0
        %v986 = vadd.f32 0.0, %v985
        %v987 = vpop.f32.mrf.mxu0
        %988 = vmatprep.mubr.f32.mxu0 0.0
        %v989 = vand.u32 %v641, 4294901760
        %v990 = vsub.f32 %v641, %v989
        %v991 = vand.u32 %v990, 4294901760
        %v992 = vsub.f32 %v990, %v991
        %v993 = vand.u32 %v992, 4294901760
        %994 = vmatmul.mubr.f32.gmra.mxu0 %v993
        %v995 = vpop.f32.mrf.mxu0
        %v996 = vadd.f32 0.0, %v995
        %v997 = vpop.f32.mrf.mxu0
        %998 = vmatprep.mubr.f32.mxu0 0.0
        %v999 = vand.u32 %v644, 4294901760
        %v1000 = vsub.f32 %v644, %v999
        %v1001 = vand.u32 %v1000, 4294901760
        %v1002 = vsub.f32 %v1000, %v1001
        %v1003 = vand.u32 %v1002, 4294901760
        %1004 = vmatmul.mubr.f32.gmra.mxu0 %v1003
        %v1005 = vpop.f32.mrf.mxu0
        %v1006 = vadd.f32 0.0, %v1005
        %v1007 = vpop.f32.mrf.mxu0
        %1008 = vmatprep.mubr.f32.mxu0 0.0
        %v1009 = vand.u32 %v647, 4294901760
        %v1010 = vsub.f32 %v647, %v1009
        %v1011 = vand.u32 %v1010, 4294901760
        %v1012 = vsub.f32 %v1010, %v1011
        %v1013 = vand.u32 %v1012, 4294901760
        %1014 = vmatmul.mubr.f32.gmra.mxu0 %v1013
        %v1015 = vpop.f32.mrf.mxu0
        %v1016 = vadd.f32 0.0, %v1015
        %v1017 = vpop.f32.mrf.mxu0
        %1018 = vmatprep.mubr.f32.mxu0 0.0
        %v1019 = vand.u32 %v650, 4294901760
        %v1020 = vsub.f32 %v650, %v1019
        %v1021 = vand.u32 %v1020, 4294901760
        %v1022 = vsub.f32 %v1020, %v1021
        %v1023 = vand.u32 %v1022, 4294901760
        %1024 = vmatmul.mubr.f32.gmra.mxu0 %v1023
        %v1025 = vpop.f32.mrf.mxu0
        %v1026 = vadd.f32 0.0, %v1025
        %v1027 = vpop.f32.mrf.mxu0
        %1028 = vmatprep.mubr.f32.mxu0 0.0
        %v1029 = vand.u32 %v653, 4294901760
        %v1030 = vsub.f32 %v653, %v1029
        %v1031 = vand.u32 %v1030, 4294901760
        %v1032 = vsub.f32 %v1030, %v1031
        %v1033 = vand.u32 %v1032, 4294901760
        %1034 = vmatmul.mubr.f32.gmra.mxu0 %v1033
        %v1035 = vpop.f32.mrf.mxu0
        %v1036 = vadd.f32 0.0, %v1035
        %v1037 = vpop.f32.mrf.mxu0
        %1038 = vmatprep.mubr.f32.mxu0 0.0
        %v1039 = vand.u32 %v656, 4294901760
        %v1040 = vsub.f32 %v656, %v1039
        %v1041 = vand.u32 %v1040, 4294901760
        %v1042 = vsub.f32 %v1040, %v1041
        %v1043 = vand.u32 %v1042, 4294901760
        %1044 = vmatmul.mubr.f32.gmra.mxu0 %v1043
        %v1045 = vpop.f32.mrf.mxu0
        %v1046 = vadd.f32 0.0, %v1045
        %v1047 = vpop.f32.mrf.mxu0
        %1048 = vmatprep.mubr.f32.mxu0 0.0
        %v1049 = vand.u32 %v659, 4294901760
        %v1050 = vsub.f32 %v659, %v1049
        %v1051 = vand.u32 %v1050, 4294901760
        %v1052 = vsub.f32 %v1050, %v1051
        %v1053 = vand.u32 %v1052, 4294901760
        %1054 = vmatmul.mubr.f32.gmra.mxu0 %v1053
        %v1055 = vpop.f32.mrf.mxu0
        %v1056 = vadd.f32 0.0, %v1055
        %v1057 = vpop.f32.mrf.mxu0
        %1058 = vmatprep.mubr.f32.mxu0 0.0
        %v1059 = vand.u32 %v662, 4294901760
        %v1060 = vsub.f32 %v662, %v1059
        %v1061 = vand.u32 %v1060, 4294901760
        %v1062 = vsub.f32 %v1060, %v1061
        %v1063 = vand.u32 %v1062, 4294901760
        %1064 = vmatmul.mubr.f32.gmra.mxu0 %v1063
        %v1065 = vpop.f32.mrf.mxu0
        %v1066 = vadd.f32 0.0, %v1065
        %v1067 = vpop.f32.mrf.mxu0
        %1068 = vmatprep.mubr.f32.mxu0 0.0
        %v1069 = vand.u32 %v665, 4294901760
        %v1070 = vsub.f32 %v665, %v1069
        %v1071 = vand.u32 %v1070, 4294901760
        %v1072 = vsub.f32 %v1070, %v1071
        %v1073 = vand.u32 %v1072, 4294901760
        %1074 = vmatmul.mubr.f32.gmra.mxu0 %v1073
        %v1075 = vpop.f32.mrf.mxu0
        %v1076 = vadd.f32 0.0, %v1075
        %v1077 = vpop.f32.mrf.mxu0
        %1078 = vmatprep.mubr.f32.mxu0 0.0
        %v1079 = vand.u32 %v668, 4294901760
        %v1080 = vsub.f32 %v668, %v1079
        %v1081 = vand.u32 %v1080, 4294901760
        %v1082 = vsub.f32 %v1080, %v1081
        %v1083 = vand.u32 %v1082, 4294901760
        %1084 = vmatmul.mubr.f32.gmra.mxu0 %v1083
        %v1085 = vpop.f32.mrf.mxu0
        %v1086 = vadd.f32 0.0, %v1085
        %v1087 = vpop.f32.mrf.mxu0
        %1088 = vmatprep.mubr.f32.mxu0 0.0
        %v1089 = vand.u32 %v671, 4294901760
        %v1090 = vsub.f32 %v671, %v1089
        %v1091 = vand.u32 %v1090, 4294901760
        %v1092 = vsub.f32 %v1090, %v1091
        %v1093 = vand.u32 %v1092, 4294901760
        %1094 = vmatmul.mubr.f32.gmra.mxu0 %v1093
        %v1095 = vpop.f32.mrf.mxu0
        %v1096 = vadd.f32 0.0, %v1095
        %v1097 = vpop.f32.mrf.mxu0
        %1098 = vmatprep.mubr.f32.mxu0 0.0
        %v1099 = vand.u32 %v674, 4294901760
        %v1100 = vsub.f32 %v674, %v1099
        %v1101 = vand.u32 %v1100, 4294901760
        %v1102 = vsub.f32 %v1100, %v1101
        %v1103 = vand.u32 %v1102, 4294901760
        %1104 = vmatmul.mubr.f32.gmra.mxu0 %v1103
        %v1105 = vpop.f32.mrf.mxu0
        %v1106 = vadd.f32 0.0, %v1105
        %v1107 = vpop.f32.mrf.mxu0
        %1108 = vmatprep.mubr.f32.mxu0 0.0
        %v1109 = vand.u32 %v677, 4294901760
        %v1110 = vsub.f32 %v677, %v1109
        %v1111 = vand.u32 %v1110, 4294901760
        %v1112 = vsub.f32 %v1110, %v1111
        %v1113 = vand.u32 %v1112, 4294901760
        %1114 = vmatmul.mubr.f32.gmra.mxu0 %v1113
        %v1115 = vpop.f32.mrf.mxu0
        %v1116 = vadd.f32 0.0, %v1115
        %v1117 = vpop.f32.mrf.mxu0
        %1118 = vmatprep.mubr.f32.mxu0 0.0
        %v1119 = vand.u32 %v680, 4294901760
        %v1120 = vsub.f32 %v680, %v1119
        %v1121 = vand.u32 %v1120, 4294901760
        %v1122 = vsub.f32 %v1120, %v1121
        %v1123 = vand.u32 %v1122, 4294901760
        %1124 = vmatmul.mubr.f32.gmra.mxu0 %v1123
        %v1125 = vpop.f32.mrf.mxu0
        %v1126 = vadd.f32 0.0, %v1125
        %v1127 = vpop.f32.mrf.mxu0
        %1128 = vmatprep.mubr.f32.mxu0 0.0
        %v1129 = vand.u32 %v683, 4294901760
        %v1130 = vsub.f32 %v683, %v1129
        %v1131 = vand.u32 %v1130, 4294901760
        %v1132 = vsub.f32 %v1130, %v1131
        %v1133 = vand.u32 %v1132, 4294901760
        %1134 = vmatmul.mubr.f32.gmra.mxu0 %v1133
        %v1135 = vpop.f32.mrf.mxu0
        %v1136 = vadd.f32 0.0, %v1135
        %v1137 = vpop.f32.mrf.mxu0
        %1138 = vmatprep.mubr.f32.mxu0 0.0
        %v1139 = vand.u32 %v686, 4294901760
        %v1140 = vsub.f32 %v686, %v1139
        %v1141 = vand.u32 %v1140, 4294901760
        %v1142 = vsub.f32 %v1140, %v1141
        %v1143 = vand.u32 %v1142, 4294901760
        %1144 = vmatmul.mubr.f32.gmra.mxu0 %v1143
        %v1145 = vpop.f32.mrf.mxu0
        %v1146 = vadd.f32 0.0, %v1145
        %v1147 = vpop.f32.mrf.mxu0
        %1148 = vmatprep.mubr.f32.mxu0 0.0
        %v1149 = vand.u32 %v689, 4294901760
        %v1150 = vsub.f32 %v689, %v1149
        %v1151 = vand.u32 %v1150, 4294901760
        %v1152 = vsub.f32 %v1150, %v1151
        %v1153 = vand.u32 %v1152, 4294901760
        %1154 = vmatmul.mubr.f32.gmra.mxu0 %v1153
        %v1155 = vpop.f32.mrf.mxu0
        %v1156 = vadd.f32 0.0, %v1155
        %v1157 = vpop.f32.mrf.mxu0
        %1158 = vmatprep.mubr.f32.mxu0 0.0
        %v1159 = vand.u32 %v692, 4294901760
        %v1160 = vsub.f32 %v692, %v1159
        %v1161 = vand.u32 %v1160, 4294901760
        %v1162 = vsub.f32 %v1160, %v1161
        %v1163 = vand.u32 %v1162, 4294901760
        %1164 = vmatmul.mubr.f32.gmra.mxu0 %v1163
        %v1165 = vpop.f32.mrf.mxu0
        %v1166 = vadd.f32 0.0, %v1165
        %v1167 = vpop.f32.mrf.mxu0
        %1168 = vmatprep.mubr.f32.mxu0 0.0
        %v1169 = vand.u32 %v695, 4294901760
        %v1170 = vsub.f32 %v695, %v1169
        %v1171 = vand.u32 %v1170, 4294901760
        %v1172 = vsub.f32 %v1170, %v1171
        %v1173 = vand.u32 %v1172, 4294901760
        %1174 = vmatmul.mubr.f32.gmra.mxu0 %v1173
        %v1175 = vpop.f32.mrf.mxu0
        %v1176 = vadd.f32 0.0, %v1175
        %v1177 = vpop.f32.mrf.mxu0
        %1178 = vmatprep.mubr.f32.mxu0 0.0
        %v1179 = vand.u32 %v698, 4294901760
        %v1180 = vsub.f32 %v698, %v1179
        %v1181 = vand.u32 %v1180, 4294901760
        %v1182 = vsub.f32 %v1180, %v1181
        %v1183 = vand.u32 %v1182, 4294901760
        %1184 = vmatmul.mubr.f32.gmra.mxu0 %v1183
        %v1185 = vpop.f32.mrf.mxu0
        %v1186 = vadd.f32 0.0, %v1185
        %v1187 = vpop.f32.mrf.mxu0
        %1188 = vmatprep.mubr.f32.mxu0 0.0
        %v1189 = vand.u32 %v701, 4294901760
        %v1190 = vsub.f32 %v701, %v1189
        %v1191 = vand.u32 %v1190, 4294901760
        %v1192 = vsub.f32 %v1190, %v1191
        %v1193 = vand.u32 %v1192, 4294901760
        %1194 = vmatmul.mubr.f32.gmra.mxu0 %v1193
        %v1195 = vpop.f32.mrf.mxu0
        %v1196 = vadd.f32 0.0, %v1195
        %v1197 = vpop.f32.mrf.mxu0
        %1198 = vmatprep.mubr.f32.mxu0 0.0
        %v1199 = vand.u32 %v704, 4294901760
        %v1200 = vsub.f32 %v704, %v1199
        %v1201 = vand.u32 %v1200, 4294901760
        %v1202 = vsub.f32 %v1200, %v1201
        %v1203 = vand.u32 %v1202, 4294901760
        %1204 = vmatmul.mubr.f32.gmra.mxu0 %v1203
        %v1205 = vpop.f32.mrf.mxu0
        %v1206 = vadd.f32 0.0, %v1205
        %v1207 = vpop.f32.mrf.mxu0
        %1208 = vmatprep.mubr.f32.mxu0 0.0
        %v1209 = vand.u32 %v707, 4294901760
        %v1210 = vsub.f32 %v707, %v1209
        %v1211 = vand.u32 %v1210, 4294901760
        %v1212 = vsub.f32 %v1210, %v1211
        %v1213 = vand.u32 %v1212, 4294901760
        %1214 = vmatmul.mubr.f32.gmra.mxu0 %v1213
        %v1215 = vpop.f32.mrf.mxu0
        %v1216 = vadd.f32 0.0, %v1215
        %v1217 = vpop.f32.mrf.mxu0
        %1218 = vmatprep.mubr.f32.mxu0 0.0
        %v1219 = vand.u32 %v710, 4294901760
        %v1220 = vsub.f32 %v710, %v1219
        %v1221 = vand.u32 %v1220, 4294901760
        %v1222 = vsub.f32 %v1220, %v1221
        %v1223 = vand.u32 %v1222, 4294901760
        %1224 = vmatmul.mubr.f32.gmra.mxu0 %v1223
        %v1225 = vpop.f32.mrf.mxu0
        %v1226 = vadd.f32 0.0, %v1225
        %v1227 = vpop.f32.mrf.mxu0
        %1228 = vmatprep.mubr.f32.mxu0 0.0
        %v1229 = vand.u32 %v713, 4294901760
        %v1230 = vsub.f32 %v713, %v1229
        %v1231 = vand.u32 %v1230, 4294901760
        %v1232 = vsub.f32 %v1230, %v1231
        %v1233 = vand.u32 %v1232, 4294901760
        %1234 = vmatmul.mubr.f32.gmra.mxu0 %v1233
        %v1235 = vpop.f32.mrf.mxu0
        %v1236 = vadd.f32 0.0, %v1235
        %v1237 = vpop.f32.mrf.mxu0
        %1238 = vmatprep.mubr.f32.mxu0 0.0
        %v1239 = vand.u32 %v716, 4294901760
        %v1240 = vsub.f32 %v716, %v1239
        %v1241 = vand.u32 %v1240, 4294901760
        %v1242 = vsub.f32 %v1240, %v1241
        %v1243 = vand.u32 %v1242, 4294901760
        %1244 = vmatmul.mubr.f32.gmra.mxu0 %v1243
        %v1245 = vpop.f32.mrf.mxu0
        %v1246 = vadd.f32 0.0, %v1245
        %v1247 = vpop.f32.mrf.mxu0
        %1248 = vmatprep.mubr.f32.mxu0 0.0
        %v1249 = vand.u32 %v719, 4294901760
        %v1250 = vsub.f32 %v719, %v1249
        %v1251 = vand.u32 %v1250, 4294901760
        %v1252 = vsub.f32 %v1250, %v1251
        %v1253 = vand.u32 %v1252, 4294901760
        %1254 = vmatmul.mubr.f32.gmra.mxu0 %v1253
        %v1255 = vpop.f32.mrf.mxu0
        %v1256 = vadd.f32 0.0, %v1255
        %v1257 = vpop.f32.mrf.mxu0
        %1258 = vmatprep.mubr.f32.mxu0 0.0
        %v1259 = vand.u32 %v722, 4294901760
        %v1260 = vsub.f32 %v722, %v1259
        %v1261 = vand.u32 %v1260, 4294901760
        %v1262 = vsub.f32 %v1260, %v1261
        %v1263 = vand.u32 %v1262, 4294901760
        %1264 = vmatmul.mubr.f32.gmra.mxu0 %v1263
        %v1265 = vpop.f32.mrf.mxu0
        %v1266 = vadd.f32 0.0, %v1265
        %v1267 = vpop.f32.mrf.mxu0
        %1268 = vmatprep.mubr.f32.mxu0 0.0
        %v1269 = vand.u32 %v725, 4294901760
        %v1270 = vsub.f32 %v725, %v1269
        %v1271 = vand.u32 %v1270, 4294901760
        %v1272 = vsub.f32 %v1270, %v1271
        %v1273 = vand.u32 %v1272, 4294901760
        %1274 = vmatmul.mubr.f32.gmra.mxu0 %v1273
        %v1275 = vpop.f32.mrf.mxu0
        %v1276 = vadd.f32 0.0, %v1275
        %v1277 = vpop.f32.mrf.mxu0
        %1278 = vmatprep.mubr.f32.mxu0 0.0
        %v1279 = vand.u32 %v728, 4294901760
        %v1280 = vsub.f32 %v728, %v1279
        %v1281 = vand.u32 %v1280, 4294901760
        %v1282 = vsub.f32 %v1280, %v1281
        %v1283 = vand.u32 %v1282, 4294901760
        %1284 = vmatmul.mubr.f32.gmra.mxu0 %v1283
        %v1285 = vpop.f32.mrf.mxu0
        %v1286 = vadd.f32 0.0, %v1285
        %v1287 = vpop.f32.mrf.mxu0
        %1288 = vmatprep.mubr.f32.mxu0 0.0
        %v1289 = vand.u32 %v731, 4294901760
        %v1290 = vsub.f32 %v731, %v1289
        %v1291 = vand.u32 %v1290, 4294901760
        %v1292 = vsub.f32 %v1290, %v1291
        %v1293 = vand.u32 %v1292, 4294901760
        %1294 = vmatmul.mubr.f32.gmra.mxu0 %v1293
        %v1295 = vpop.f32.mrf.mxu0
        %v1296 = vadd.f32 0.0, %v1295
        %v1297 = vpop.f32.mrf.mxu0
        %1298 = vmatprep.mubr.f32.mxu0 0.0
        %v1299 = vand.u32 %v734, 4294901760
        %v1300 = vsub.f32 %v734, %v1299
        %v1301 = vand.u32 %v1300, 4294901760
        %v1302 = vsub.f32 %v1300, %v1301
        %v1303 = vand.u32 %v1302, 4294901760
        %1304 = vmatmul.mubr.f32.gmra.mxu0 %v1303
        %v1305 = vpop.f32.mrf.mxu0
        %v1306 = vadd.f32 0.0, %v1305
        %v1307 = vpop.f32.mrf.mxu0
        %1308 = vmatprep.mubr.f32.mxu0 0.0
        %v1309 = vand.u32 %v737, 4294901760
        %v1310 = vsub.f32 %v737, %v1309
        %v1311 = vand.u32 %v1310, 4294901760
        %v1312 = vsub.f32 %v1310, %v1311
        %v1313 = vand.u32 %v1312, 4294901760
        %1314 = vmatmul.mubr.f32.gmra.mxu0 %v1313
        %v1315 = vpop.f32.mrf.mxu0
        %v1316 = vadd.f32 0.0, %v1315
        %v1317 = vpop.f32.mrf.mxu0
        %1318 = vmatprep.mubr.f32.mxu0 0.0
        %v1319 = vand.u32 %v740, 4294901760
        %v1320 = vsub.f32 %v740, %v1319
        %v1321 = vand.u32 %v1320, 4294901760
        %v1322 = vsub.f32 %v1320, %v1321
        %v1323 = vand.u32 %v1322, 4294901760
        %1324 = vmatmul.mubr.f32.gmra.mxu0 %v1323
        %v1325 = vpop.f32.mrf.mxu0
        %v1326 = vadd.f32 0.0, %v1325
        %v1327 = vpop.f32.mrf.mxu0
        %1328 = vmatprep.mubr.f32.mxu0 0.0
        %v1329 = vand.u32 %v743, 4294901760
        %v1330 = vsub.f32 %v743, %v1329
        %v1331 = vand.u32 %v1330, 4294901760
        %v1332 = vsub.f32 %v1330, %v1331
        %v1333 = vand.u32 %v1332, 4294901760
        %1334 = vmatmul.mubr.f32.gmra.mxu0 %v1333
        %v1335 = vpop.f32.mrf.mxu0
        %v1336 = vadd.f32 0.0, %v1335
        %v1337 = vpop.f32.mrf.mxu0
        %1338 = vmatprep.mubr.f32.mxu0 0.0
        %v1339 = vand.u32 %v746, 4294901760
        %v1340 = vsub.f32 %v746, %v1339
        %v1341 = vand.u32 %v1340, 4294901760
        %v1342 = vsub.f32 %v1340, %v1341
        %v1343 = vand.u32 %v1342, 4294901760
        %1344 = vmatmul.mubr.f32.gmra.mxu0 %v1343
        %v1345 = vpop.f32.mrf.mxu0
        %v1346 = vadd.f32 0.0, %v1345
        %v1347 = vpop.f32.mrf.mxu0
        %1348 = vmatprep.mubr.f32.mxu0 0.0
        %v1349 = vand.u32 %v749, 4294901760
        %v1350 = vsub.f32 %v749, %v1349
        %v1351 = vand.u32 %v1350, 4294901760
        %v1352 = vsub.f32 %v1350, %v1351
        %v1353 = vand.u32 %v1352, 4294901760
        %1354 = vmatmul.mubr.f32.gmra.mxu0 %v1353
        %v1355 = vpop.f32.mrf.mxu0
        %v1356 = vadd.f32 0.0, %v1355
        %v1357 = vpop.f32.mrf.mxu0
        %1358 = vmatprep.mubr.f32.mxu0 0.0
        %v1359 = vand.u32 %v752, 4294901760
        %v1360 = vsub.f32 %v752, %v1359
        %v1361 = vand.u32 %v1360, 4294901760
        %v1362 = vsub.f32 %v1360, %v1361
        %v1363 = vand.u32 %v1362, 4294901760
        %1364 = vmatmul.mubr.f32.gmra.mxu0 %v1363
        %v1365 = vpop.f32.mrf.mxu0
        %v1366 = vadd.f32 0.0, %v1365
        %v1367 = vpop.f32.mrf.mxu0
        %1368 = vmatprep.mubr.f32.mxu0 0.0
        %v1369 = vand.u32 %v755, 4294901760
        %v1370 = vsub.f32 %v755, %v1369
        %v1371 = vand.u32 %v1370, 4294901760
        %v1372 = vsub.f32 %v1370, %v1371
        %v1373 = vand.u32 %v1372, 4294901760
        %1374 = vmatmul.mubr.f32.gmra.mxu0 %v1373
        %v1375 = vpop.f32.mrf.mxu0
        %v1376 = vadd.f32 0.0, %v1375
        %v1377 = vpop.f32.mrf.mxu0
        %1378 = vmatprep.mubr.f32.mxu0 0.0
        %v1379 = vand.u32 %v758, 4294901760
        %v1380 = vsub.f32 %v758, %v1379
        %v1381 = vand.u32 %v1380, 4294901760
        %v1382 = vsub.f32 %v1380, %v1381
        %v1383 = vand.u32 %v1382, 4294901760
        %1384 = vmatmul.mubr.f32.gmra.mxu0 %v1383
        %v1385 = vpop.f32.mrf.mxu0
        %v1386 = vadd.f32 0.0, %v1385
        %v1387 = vpop.f32.mrf.mxu0
        %1388 = vmatprep.mubr.f32.mxu0 0.0
        %v1389 = vand.u32 %v761, 4294901760
        %v1390 = vsub.f32 %v761, %v1389
        %v1391 = vand.u32 %v1390, 4294901760
        %v1392 = vsub.f32 %v1390, %v1391
        %v1393 = vand.u32 %v1392, 4294901760
        %1394 = vmatmul.mubr.f32.gmra.mxu0 %v1393
        %v1395 = vpop.f32.mrf.mxu0
        %v1396 = vadd.f32 0.0, %v1395
        %v1397 = vpop.f32.mrf.mxu0
        %1398 = vmatprep.mubr.f32.mxu0 0.0
        %v1399 = vand.u32 %v764, 4294901760
        %v1400 = vsub.f32 %v764, %v1399
        %v1401 = vand.u32 %v1400, 4294901760
        %v1402 = vsub.f32 %v1400, %v1401
        %v1403 = vand.u32 %v1402, 4294901760
        %1404 = vmatmul.mubr.f32.gmra.mxu0 %v1403
        %v1405 = vpop.f32.mrf.mxu0
        %v1406 = vadd.f32 0.0, %v1405
        %v1407 = vpop.f32.mrf.mxu0
        %1408 = vmatprep.mubr.f32.mxu0 0.0
        %v1409 = vand.u32 %v767, 4294901760
        %v1410 = vsub.f32 %v767, %v1409
        %v1411 = vand.u32 %v1410, 4294901760
        %v1412 = vsub.f32 %v1410, %v1411
        %v1413 = vand.u32 %v1412, 4294901760
        %1414 = vmatmul.mubr.f32.gmra.mxu0 %v1413
        %v1415 = vpop.f32.mrf.mxu0
        %v1416 = vadd.f32 0.0, %v1415
        %v1417 = vpop.f32.mrf.mxu0
        %1418 = vmatprep.mubr.f32.mxu0 0.0
        %v1419 = vand.u32 %v770, 4294901760
        %v1420 = vsub.f32 %v770, %v1419
        %v1421 = vand.u32 %v1420, 4294901760
        %v1422 = vsub.f32 %v1420, %v1421
        %v1423 = vand.u32 %v1422, 4294901760
        %1424 = vmatmul.mubr.f32.gmra.mxu0 %v1423
        %v1425 = vpop.f32.mrf.mxu0
        %v1426 = vadd.f32 0.0, %v1425
        %v1427 = vpop.f32.mrf.mxu0
        %1428 = vmatprep.mubr.f32.mxu0 0.0
        %v1429 = vand.u32 %v773, 4294901760
        %v1430 = vsub.f32 %v773, %v1429
        %v1431 = vand.u32 %v1430, 4294901760
        %v1432 = vsub.f32 %v1430, %v1431
        %v1433 = vand.u32 %v1432, 4294901760
        %1434 = vmatmul.mubr.f32.gmra.mxu0 %v1433
        %v1435 = vpop.f32.mrf.mxu0
        %v1436 = vadd.f32 0.0, %v1435
        %v1437 = vpop.f32.mrf.mxu0
        %1438 = vmatprep.mubr.f32.mxu0 0.0
        %v1439 = vand.u32 %v776, 4294901760
        %v1440 = vsub.f32 %v776, %v1439
        %v1441 = vand.u32 %v1440, 4294901760
        %v1442 = vsub.f32 %v1440, %v1441
        %v1443 = vand.u32 %v1442, 4294901760
        %1444 = vmatmul.mubr.f32.gmra.mxu0 %v1443
        %v1445 = vpop.f32.mrf.mxu0
        %v1446 = vadd.f32 0.0, %v1445
        %v1447 = vpop.f32.mrf.mxu0
        %1448 = vmatprep.mubr.f32.mxu0 0.0
        %v1449 = vand.u32 %v779, 4294901760
        %v1450 = vsub.f32 %v779, %v1449
        %v1451 = vand.u32 %v1450, 4294901760
        %v1452 = vsub.f32 %v1450, %v1451
        %v1453 = vand.u32 %v1452, 4294901760
        %1454 = vmatmul.mubr.f32.gmra.mxu0 %v1453
        %v1455 = vpop.f32.mrf.mxu0
        %v1456 = vadd.f32 0.0, %v1455
        %v1457 = vpop.f32.mrf.mxu0
        %1458 = vmatprep.mubr.f32.mxu0 0.0
        %v1459 = vand.u32 %v782, 4294901760
        %v1460 = vsub.f32 %v782, %v1459
        %v1461 = vand.u32 %v1460, 4294901760
        %v1462 = vsub.f32 %v1460, %v1461
        %v1463 = vand.u32 %v1462, 4294901760
        %1464 = vmatmul.mubr.f32.gmra.mxu0 %v1463
        %v1465 = vpop.f32.mrf.mxu0
        %v1466 = vadd.f32 0.0, %v1465
        %v1467 = vpop.f32.mrf.mxu0
        %1468 = vmatprep.mubr.f32.mxu0 0.0
        %v1469 = vand.u32 %v785, 4294901760
        %v1470 = vsub.f32 %v785, %v1469
        %v1471 = vand.u32 %v1470, 4294901760
        %v1472 = vsub.f32 %v1470, %v1471
        %v1473 = vand.u32 %v1472, 4294901760
        %1474 = vmatmul.mubr.f32.gmra.mxu0 %v1473
        %v1475 = vpop.f32.mrf.mxu0
        %v1476 = vadd.f32 0.0, %v1475
        %v1477 = vpop.f32.mrf.mxu0
        %1478 = vmatprep.mubr.f32.mxu0 0.0
        %v1479 = vand.u32 %v788, 4294901760
        %v1480 = vsub.f32 %v788, %v1479
        %v1481 = vand.u32 %v1480, 4294901760
        %v1482 = vsub.f32 %v1480, %v1481
        %v1483 = vand.u32 %v1482, 4294901760
        %1484 = vmatmul.mubr.f32.gmra.mxu0 %v1483
        %v1485 = vpop.f32.mrf.mxu0
        %v1486 = vadd.f32 0.0, %v1485
        %v1487 = vpop.f32.mrf.mxu0
        %1488 = vmatprep.mubr.f32.mxu0 0.0
        %v1489 = vand.u32 %v791, 4294901760
        %v1490 = vsub.f32 %v791, %v1489
        %v1491 = vand.u32 %v1490, 4294901760
        %v1492 = vsub.f32 %v1490, %v1491
        %v1493 = vand.u32 %v1492, 4294901760
        %1494 = vmatmul.mubr.f32.gmra.mxu0 %v1493
        %v1495 = vpop.f32.mrf.mxu0
        %v1496 = vadd.f32 0.0, %v1495
        %v1497 = vpop.f32.mrf.mxu0
        %1498 = vmatprep.mubr.f32.mxu0 0.0
        %v1499 = vand.u32 %v794, 4294901760
        %v1500 = vsub.f32 %v794, %v1499
        %v1501 = vand.u32 %v1500, 4294901760
        %v1502 = vsub.f32 %v1500, %v1501
        %v1503 = vand.u32 %v1502, 4294901760
        %1504 = vmatmul.mubr.f32.gmra.mxu0 %v1503
        %v1505 = vpop.f32.mrf.mxu0
        %v1506 = vadd.f32 0.0, %v1505
        %v1507 = vpop.f32.mrf.mxu0
        %1508 = vdwg.mxu0
        %1509 = vmatprep.subr.mxu0 0.0
        %1510 = vmatpush1.msra.mxu0 0.0
        %1511 = vmatprep.subr.mxu0 0.0
        %1512 = vmatpush1.msra.mxu0 0.0
        %1513 = vmatprep.subr.mxu0 0.0
        %1514 = vmatpush1.msra.mxu0 0.0
        %1515 = vmatprep.subr.mxu0 0.0
        %1516 = vmatpush1.msra.mxu0 0.0
        %1517 = vmatprep.subr.mxu0 0.0
        %1518 = vmatpush1.msra.mxu0 0.0
        %1519 = vmatprep.subr.mxu0 0.0
        %1520 = vmatpush1.msra.mxu0 0.0
        %1521 = vmatprep.subr.mxu0 0.0
        %1522 = vmatpush1.msra.mxu0 0.0
        %1523 = vmatprep.subr.mxu0 0.0
        %1524 = vmatpush1.msra.mxu0 0.0
        %1525 = vmatprep.subr.mxu0 0.0
        %v1526 = vand.u32 %v602, 4294901760
        %v1527 = vsub.f32 %v602, %v1526
        %v1528 = vand.u32 %v1527, 4294901760
        %v1529 = vsub.f32 %v1527, %v1528
        %v1530 = vand.u32 %v1529, 4294901760
        %1531 = vmatpush1.msra.mxu0 %v1530
        %1532 = vmatprep.subr.mxu0 0.0
        %v1533 = vand.u32 %v601, 4294901760
        %v1534 = vsub.f32 %v601, %v1533
        %v1535 = vand.u32 %v1534, 4294901760
        %v1536 = vsub.f32 %v1534, %v1535
        %v1537 = vand.u32 %v1536, 4294901760
        %1538 = vmatpush1.msra.mxu0 %v1537
        %1539 = vmatprep.subr.mxu0 0.0
        %v1540 = vand.u32 %v600, 4294901760
        %v1541 = vsub.f32 %v600, %v1540
        %v1542 = vand.u32 %v1541, 4294901760
        %v1543 = vsub.f32 %v1541, %v1542
        %v1544 = vand.u32 %v1543, 4294901760
        %1545 = vmatpush1.msra.mxu0 %v1544
        %1546 = vmatprep.subr.mxu0 0.0
        %v1547 = vand.u32 %v599, 4294901760
        %v1548 = vsub.f32 %v599, %v1547
        %v1549 = vand.u32 %v1548, 4294901760
        %v1550 = vsub.f32 %v1548, %v1549
        %v1551 = vand.u32 %v1550, 4294901760
        %1552 = vmatpush1.msra.mxu0 %v1551
        %1553 = vmatprep.subr.mxu0 0.0
        %v1554 = vand.u32 %v598, 4294901760
        %v1555 = vsub.f32 %v598, %v1554
        %v1556 = vand.u32 %v1555, 4294901760
        %v1557 = vsub.f32 %v1555, %v1556
        %v1558 = vand.u32 %v1557, 4294901760
        %1559 = vmatpush1.msra.mxu0 %v1558
        %1560 = vmatprep.subr.mxu0 0.0
        %v1561 = vand.u32 %v597, 4294901760
        %v1562 = vsub.f32 %v597, %v1561
        %v1563 = vand.u32 %v1562, 4294901760
        %v1564 = vsub.f32 %v1562, %v1563
        %v1565 = vand.u32 %v1564, 4294901760
        %1566 = vmatpush1.msra.mxu0 %v1565
        %1567 = vmatprep.subr.mxu0 0.0
        %v1568 = vand.u32 %v596, 4294901760
        %v1569 = vsub.f32 %v596, %v1568
        %v1570 = vand.u32 %v1569, 4294901760
        %v1571 = vsub.f32 %v1569, %v1570
        %v1572 = vand.u32 %v1571, 4294901760
        %1573 = vmatpush1.msra.mxu0 %v1572
        %1574 = vmatprep.subr.mxu0 0.0
        %v1575 = vand.u32 %v595, 4294901760
        %v1576 = vsub.f32 %v595, %v1575
        %v1577 = vand.u32 %v1576, 4294901760
        %v1578 = vsub.f32 %v1576, %v1577
        %v1579 = vand.u32 %v1578, 4294901760
        %1580 = vmatpush1.msra.mxu0 %v1579
        %1581 = vmatprep.subr.mxu0 0.0
        %1582 = vmatpush2.msra.mxu0 0.0
        %1583 = vmatprep.subr.mxu0 0.0
        %1584 = vmatpush2.msra.mxu0 0.0
        %1585 = vmatprep.subr.mxu0 0.0
        %1586 = vmatpush2.msra.mxu0 0.0
        %1587 = vmatprep.subr.mxu0 0.0
        %1588 = vmatpush2.msra.mxu0 0.0
        %1589 = vmatprep.subr.mxu0 0.0
        %1590 = vmatpush2.msra.mxu0 0.0
        %1591 = vmatprep.subr.mxu0 0.0
        %1592 = vmatpush2.msra.mxu0 0.0
        %1593 = vmatprep.subr.mxu0 0.0
        %1594 = vmatpush2.msra.mxu0 0.0
        %1595 = vmatprep.subr.mxu0 0.0
        %1596 = vmatpush2.msra.mxu0 0.0
        %1597 = vmatprep.subr.mxu0 0.0
        %1598 = vmatpush2.msra.mxu0 0.0
        %1599 = vmatprep.subr.mxu0 0.0
        %1600 = vmatpush2.msra.mxu0 0.0
        %1601 = vmatprep.subr.mxu0 0.0
        %1602 = vmatpush2.msra.mxu0 0.0
        %1603 = vmatprep.subr.mxu0 0.0
        %1604 = vmatpush2.msra.mxu0 0.0
        %1605 = vmatprep.subr.mxu0 0.0
        %1606 = vmatpush2.msra.mxu0 0.0
        %1607 = vmatprep.subr.mxu0 0.0
        %1608 = vmatpush2.msra.mxu0 0.0
        %1609 = vmatprep.subr.mxu0 0.0
        %1610 = vmatpush2.msra.mxu0 0.0
        %1611 = vmatprep.subr.mxu0 0.0
        %1612 = vmatpush2.msra.mxu0 0.0
        %1613 = vmatprep.mubr.f32.mxu0 0.0
        %v1614 = vand.u32 %v605, 4294901760
        %1615 = vmatmul.mubr.f32.gmra.mxu0 %v1614
        %v1616 = vpop.f32.mrf.mxu0
        %v1617 = vadd.f32 %v876, %v1616
        %v1618 = vpop.f32.mrf.mxu0
        %1619 = vmatprep.mubr.f32.mxu0 0.0
        %v1620 = vand.u32 %v608, 4294901760
        %1621 = vmatmul.mubr.f32.gmra.mxu0 %v1620
        %v1622 = vpop.f32.mrf.mxu0
        %v1623 = vadd.f32 %v886, %v1622
        %v1624 = vpop.f32.mrf.mxu0
        %1625 = vmatprep.mubr.f32.mxu0 0.0
        %v1626 = vand.u32 %v611, 4294901760
        %1627 = vmatmul.mubr.f32.gmra.mxu0 %v1626
        %v1628 = vpop.f32.mrf.mxu0
        %v1629 = vadd.f32 %v896, %v1628
        %v1630 = vpop.f32.mrf.mxu0
        %1631 = vmatprep.mubr.f32.mxu0 0.0
        %v1632 = vand.u32 %v614, 4294901760
        %1633 = vmatmul.mubr.f32.gmra.mxu0 %v1632
        %v1634 = vpop.f32.mrf.mxu0
        %v1635 = vadd.f32 %v906, %v1634
        %v1636 = vpop.f32.mrf.mxu0
        %1637 = vmatprep.mubr.f32.mxu0 0.0
        %v1638 = vand.u32 %v617, 4294901760
        %1639 = vmatmul.mubr.f32.gmra.mxu0 %v1638
        %v1640 = vpop.f32.mrf.mxu0
        %v1641 = vadd.f32 %v916, %v1640
        %v1642 = vpop.f32.mrf.mxu0
        %1643 = vmatprep.mubr.f32.mxu0 0.0
        %v1644 = vand.u32 %v620, 4294901760
        %1645 = vmatmul.mubr.f32.gmra.mxu0 %v1644
        %v1646 = vpop.f32.mrf.mxu0
        %v1647 = vadd.f32 %v926, %v1646
        %v1648 = vpop.f32.mrf.mxu0
        %1649 = vmatprep.mubr.f32.mxu0 0.0
        %v1650 = vand.u32 %v623, 4294901760
        %1651 = vmatmul.mubr.f32.gmra.mxu0 %v1650
        %v1652 = vpop.f32.mrf.mxu0
        %v1653 = vadd.f32 %v936, %v1652
        %v1654 = vpop.f32.mrf.mxu0
        %1655 = vmatprep.mubr.f32.mxu0 0.0
        %v1656 = vand.u32 %v626, 4294901760
        %1657 = vmatmul.mubr.f32.gmra.mxu0 %v1656
        %v1658 = vpop.f32.mrf.mxu0
        %v1659 = vadd.f32 %v946, %v1658
        %v1660 = vpop.f32.mrf.mxu0
        %1661 = vmatprep.mubr.f32.mxu0 0.0
        %v1662 = vand.u32 %v629, 4294901760
        %1663 = vmatmul.mubr.f32.gmra.mxu0 %v1662
        %v1664 = vpop.f32.mrf.mxu0
        %v1665 = vadd.f32 %v956, %v1664
        %v1666 = vpop.f32.mrf.mxu0
        %1667 = vmatprep.mubr.f32.mxu0 0.0
        %v1668 = vand.u32 %v632, 4294901760
        %1669 = vmatmul.mubr.f32.gmra.mxu0 %v1668
        %v1670 = vpop.f32.mrf.mxu0
        %v1671 = vadd.f32 %v966, %v1670
        %v1672 = vpop.f32.mrf.mxu0
        %1673 = vmatprep.mubr.f32.mxu0 0.0
        %v1674 = vand.u32 %v635, 4294901760
        %1675 = vmatmul.mubr.f32.gmra.mxu0 %v1674
        %v1676 = vpop.f32.mrf.mxu0
        %v1677 = vadd.f32 %v976, %v1676
        %v1678 = vpop.f32.mrf.mxu0
        %1679 = vmatprep.mubr.f32.mxu0 0.0
        %v1680 = vand.u32 %v638, 4294901760
        %1681 = vmatmul.mubr.f32.gmra.mxu0 %v1680
        %v1682 = vpop.f32.mrf.mxu0
        %v1683 = vadd.f32 %v986, %v1682
        %v1684 = vpop.f32.mrf.mxu0
        %1685 = vmatprep.mubr.f32.mxu0 0.0
        %v1686 = vand.u32 %v641, 4294901760
        %1687 = vmatmul.mubr.f32.gmra.mxu0 %v1686
        %v1688 = vpop.f32.mrf.mxu0
        %v1689 = vadd.f32 %v996, %v1688
        %v1690 = vpop.f32.mrf.mxu0
        %1691 = vmatprep.mubr.f32.mxu0 0.0
        %v1692 = vand.u32 %v644, 4294901760
        %1693 = vmatmul.mubr.f32.gmra.mxu0 %v1692
        %v1694 = vpop.f32.mrf.mxu0
        %v1695 = vadd.f32 %v1006, %v1694
        %v1696 = vpop.f32.mrf.mxu0
        %1697 = vmatprep.mubr.f32.mxu0 0.0
        %v1698 = vand.u32 %v647, 4294901760
        %1699 = vmatmul.mubr.f32.gmra.mxu0 %v1698
        %v1700 = vpop.f32.mrf.mxu0
        %v1701 = vadd.f32 %v1016, %v1700
        %v1702 = vpop.f32.mrf.mxu0
        %1703 = vmatprep.mubr.f32.mxu0 0.0
        %v1704 = vand.u32 %v650, 4294901760
        %1705 = vmatmul.mubr.f32.gmra.mxu0 %v1704
        %v1706 = vpop.f32.mrf.mxu0
        %v1707 = vadd.f32 %v1026, %v1706
        %v1708 = vpop.f32.mrf.mxu0
        %1709 = vmatprep.mubr.f32.mxu0 0.0
        %v1710 = vand.u32 %v653, 4294901760
        %1711 = vmatmul.mubr.f32.gmra.mxu0 %v1710
        %v1712 = vpop.f32.mrf.mxu0
        %v1713 = vadd.f32 %v1036, %v1712
        %v1714 = vpop.f32.mrf.mxu0
        %1715 = vmatprep.mubr.f32.mxu0 0.0
        %v1716 = vand.u32 %v656, 4294901760
        %1717 = vmatmul.mubr.f32.gmra.mxu0 %v1716
        %v1718 = vpop.f32.mrf.mxu0
        %v1719 = vadd.f32 %v1046, %v1718
        %v1720 = vpop.f32.mrf.mxu0
        %1721 = vmatprep.mubr.f32.mxu0 0.0
        %v1722 = vand.u32 %v659, 4294901760
        %1723 = vmatmul.mubr.f32.gmra.mxu0 %v1722
        %v1724 = vpop.f32.mrf.mxu0
        %v1725 = vadd.f32 %v1056, %v1724
        %v1726 = vpop.f32.mrf.mxu0
        %1727 = vmatprep.mubr.f32.mxu0 0.0
        %v1728 = vand.u32 %v662, 4294901760
        %1729 = vmatmul.mubr.f32.gmra.mxu0 %v1728
        %v1730 = vpop.f32.mrf.mxu0
        %v1731 = vadd.f32 %v1066, %v1730
        %v1732 = vpop.f32.mrf.mxu0
        %1733 = vmatprep.mubr.f32.mxu0 0.0
        %v1734 = vand.u32 %v665, 4294901760
        %1735 = vmatmul.mubr.f32.gmra.mxu0 %v1734
        %v1736 = vpop.f32.mrf.mxu0
        %v1737 = vadd.f32 %v1076, %v1736
        %v1738 = vpop.f32.mrf.mxu0
        %1739 = vmatprep.mubr.f32.mxu0 0.0
        %v1740 = vand.u32 %v668, 4294901760
        %1741 = vmatmul.mubr.f32.gmra.mxu0 %v1740
        %v1742 = vpop.f32.mrf.mxu0
        %v1743 = vadd.f32 %v1086, %v1742
        %v1744 = vpop.f32.mrf.mxu0
        %1745 = vmatprep.mubr.f32.mxu0 0.0
        %v1746 = vand.u32 %v671, 4294901760
        %1747 = vmatmul.mubr.f32.gmra.mxu0 %v1746
        %v1748 = vpop.f32.mrf.mxu0
        %v1749 = vadd.f32 %v1096, %v1748
        %v1750 = vpop.f32.mrf.mxu0
        %1751 = vmatprep.mubr.f32.mxu0 0.0
        %v1752 = vand.u32 %v674, 4294901760
        %1753 = vmatmul.mubr.f32.gmra.mxu0 %v1752
        %v1754 = vpop.f32.mrf.mxu0
        %v1755 = vadd.f32 %v1106, %v1754
        %v1756 = vpop.f32.mrf.mxu0
        %1757 = vmatprep.mubr.f32.mxu0 0.0
        %v1758 = vand.u32 %v677, 4294901760
        %1759 = vmatmul.mubr.f32.gmra.mxu0 %v1758
        %v1760 = vpop.f32.mrf.mxu0
        %v1761 = vadd.f32 %v1116, %v1760
        %v1762 = vpop.f32.mrf.mxu0
        %1763 = vmatprep.mubr.f32.mxu0 0.0
        %v1764 = vand.u32 %v680, 4294901760
        %1765 = vmatmul.mubr.f32.gmra.mxu0 %v1764
        %v1766 = vpop.f32.mrf.mxu0
        %v1767 = vadd.f32 %v1126, %v1766
        %v1768 = vpop.f32.mrf.mxu0
        %1769 = vmatprep.mubr.f32.mxu0 0.0
        %v1770 = vand.u32 %v683, 4294901760
        %1771 = vmatmul.mubr.f32.gmra.mxu0 %v1770
        %v1772 = vpop.f32.mrf.mxu0
        %v1773 = vadd.f32 %v1136, %v1772
        %v1774 = vpop.f32.mrf.mxu0
        %1775 = vmatprep.mubr.f32.mxu0 0.0
        %v1776 = vand.u32 %v686, 4294901760
        %1777 = vmatmul.mubr.f32.gmra.mxu0 %v1776
        %v1778 = vpop.f32.mrf.mxu0
        %v1779 = vadd.f32 %v1146, %v1778
        %v1780 = vpop.f32.mrf.mxu0
        %1781 = vmatprep.mubr.f32.mxu0 0.0
        %v1782 = vand.u32 %v689, 4294901760
        %1783 = vmatmul.mubr.f32.gmra.mxu0 %v1782
        %v1784 = vpop.f32.mrf.mxu0
        %v1785 = vadd.f32 %v1156, %v1784
        %v1786 = vpop.f32.mrf.mxu0
        %1787 = vmatprep.mubr.f32.mxu0 0.0
        %v1788 = vand.u32 %v692, 4294901760
        %1789 = vmatmul.mubr.f32.gmra.mxu0 %v1788
        %v1790 = vpop.f32.mrf.mxu0
        %v1791 = vadd.f32 %v1166, %v1790
        %v1792 = vpop.f32.mrf.mxu0
        %1793 = vmatprep.mubr.f32.mxu0 0.0
        %v1794 = vand.u32 %v695, 4294901760
        %1795 = vmatmul.mubr.f32.gmra.mxu0 %v1794
        %v1796 = vpop.f32.mrf.mxu0
        %v1797 = vadd.f32 %v1176, %v1796
        %v1798 = vpop.f32.mrf.mxu0
        %1799 = vmatprep.mubr.f32.mxu0 0.0
        %v1800 = vand.u32 %v698, 4294901760
        %1801 = vmatmul.mubr.f32.gmra.mxu0 %v1800
        %v1802 = vpop.f32.mrf.mxu0
        %v1803 = vadd.f32 %v1186, %v1802
        %v1804 = vpop.f32.mrf.mxu0
        %1805 = vmatprep.mubr.f32.mxu0 0.0
        %v1806 = vand.u32 %v701, 4294901760
        %1807 = vmatmul.mubr.f32.gmra.mxu0 %v1806
        %v1808 = vpop.f32.mrf.mxu0
        %v1809 = vadd.f32 %v1196, %v1808
        %v1810 = vpop.f32.mrf.mxu0
        %1811 = vmatprep.mubr.f32.mxu0 0.0
        %v1812 = vand.u32 %v704, 4294901760
        %1813 = vmatmul.mubr.f32.gmra.mxu0 %v1812
        %v1814 = vpop.f32.mrf.mxu0
        %v1815 = vadd.f32 %v1206, %v1814
        %v1816 = vpop.f32.mrf.mxu0
        %1817 = vmatprep.mubr.f32.mxu0 0.0
        %v1818 = vand.u32 %v707, 4294901760
        %1819 = vmatmul.mubr.f32.gmra.mxu0 %v1818
        %v1820 = vpop.f32.mrf.mxu0
        %v1821 = vadd.f32 %v1216, %v1820
        %v1822 = vpop.f32.mrf.mxu0
        %1823 = vmatprep.mubr.f32.mxu0 0.0
        %v1824 = vand.u32 %v710, 4294901760
        %1825 = vmatmul.mubr.f32.gmra.mxu0 %v1824
        %v1826 = vpop.f32.mrf.mxu0
        %v1827 = vadd.f32 %v1226, %v1826
        %v1828 = vpop.f32.mrf.mxu0
        %1829 = vmatprep.mubr.f32.mxu0 0.0
        %v1830 = vand.u32 %v713, 4294901760
        %1831 = vmatmul.mubr.f32.gmra.mxu0 %v1830
        %v1832 = vpop.f32.mrf.mxu0
        %v1833 = vadd.f32 %v1236, %v1832
        %v1834 = vpop.f32.mrf.mxu0
        %1835 = vmatprep.mubr.f32.mxu0 0.0
        %v1836 = vand.u32 %v716, 4294901760
        %1837 = vmatmul.mubr.f32.gmra.mxu0 %v1836
        %v1838 = vpop.f32.mrf.mxu0
        %v1839 = vadd.f32 %v1246, %v1838
        %v1840 = vpop.f32.mrf.mxu0
        %1841 = vmatprep.mubr.f32.mxu0 0.0
        %v1842 = vand.u32 %v719, 4294901760
        %1843 = vmatmul.mubr.f32.gmra.mxu0 %v1842
        %v1844 = vpop.f32.mrf.mxu0
        %v1845 = vadd.f32 %v1256, %v1844
        %v1846 = vpop.f32.mrf.mxu0
        %1847 = vmatprep.mubr.f32.mxu0 0.0
        %v1848 = vand.u32 %v722, 4294901760
        %1849 = vmatmul.mubr.f32.gmra.mxu0 %v1848
        %v1850 = vpop.f32.mrf.mxu0
        %v1851 = vadd.f32 %v1266, %v1850
        %v1852 = vpop.f32.mrf.mxu0
        %1853 = vmatprep.mubr.f32.mxu0 0.0
        %v1854 = vand.u32 %v725, 4294901760
        %1855 = vmatmul.mubr.f32.gmra.mxu0 %v1854
        %v1856 = vpop.f32.mrf.mxu0
        %v1857 = vadd.f32 %v1276, %v1856
        %v1858 = vpop.f32.mrf.mxu0
        %1859 = vmatprep.mubr.f32.mxu0 0.0
        %v1860 = vand.u32 %v728, 4294901760
        %1861 = vmatmul.mubr.f32.gmra.mxu0 %v1860
        %v1862 = vpop.f32.mrf.mxu0
        %v1863 = vadd.f32 %v1286, %v1862
        %v1864 = vpop.f32.mrf.mxu0
        %1865 = vmatprep.mubr.f32.mxu0 0.0
        %v1866 = vand.u32 %v731, 4294901760
        %1867 = vmatmul.mubr.f32.gmra.mxu0 %v1866
        %v1868 = vpop.f32.mrf.mxu0
        %v1869 = vadd.f32 %v1296, %v1868
        %v1870 = vpop.f32.mrf.mxu0
        %1871 = vmatprep.mubr.f32.mxu0 0.0
        %v1872 = vand.u32 %v734, 4294901760
        %1873 = vmatmul.mubr.f32.gmra.mxu0 %v1872
        %v1874 = vpop.f32.mrf.mxu0
        %v1875 = vadd.f32 %v1306, %v1874
        %v1876 = vpop.f32.mrf.mxu0
        %1877 = vmatprep.mubr.f32.mxu0 0.0
        %v1878 = vand.u32 %v737, 4294901760
        %1879 = vmatmul.mubr.f32.gmra.mxu0 %v1878
        %v1880 = vpop.f32.mrf.mxu0
        %v1881 = vadd.f32 %v1316, %v1880
        %v1882 = vpop.f32.mrf.mxu0
        %1883 = vmatprep.mubr.f32.mxu0 0.0
        %v1884 = vand.u32 %v740, 4294901760
        %1885 = vmatmul.mubr.f32.gmra.mxu0 %v1884
        %v1886 = vpop.f32.mrf.mxu0
        %v1887 = vadd.f32 %v1326, %v1886
        %v1888 = vpop.f32.mrf.mxu0
        %1889 = vmatprep.mubr.f32.mxu0 0.0
        %v1890 = vand.u32 %v743, 4294901760
        %1891 = vmatmul.mubr.f32.gmra.mxu0 %v1890
        %v1892 = vpop.f32.mrf.mxu0
        %v1893 = vadd.f32 %v1336, %v1892
        %v1894 = vpop.f32.mrf.mxu0
        %1895 = vmatprep.mubr.f32.mxu0 0.0
        %v1896 = vand.u32 %v746, 4294901760
        %1897 = vmatmul.mubr.f32.gmra.mxu0 %v1896
        %v1898 = vpop.f32.mrf.mxu0
        %v1899 = vadd.f32 %v1346, %v1898
        %v1900 = vpop.f32.mrf.mxu0
        %1901 = vmatprep.mubr.f32.mxu0 0.0
        %v1902 = vand.u32 %v749, 4294901760
        %1903 = vmatmul.mubr.f32.gmra.mxu0 %v1902
        %v1904 = vpop.f32.mrf.mxu0
        %v1905 = vadd.f32 %v1356, %v1904
        %v1906 = vpop.f32.mrf.mxu0
        %1907 = vmatprep.mubr.f32.mxu0 0.0
        %v1908 = vand.u32 %v752, 4294901760
        %1909 = vmatmul.mubr.f32.gmra.mxu0 %v1908
        %v1910 = vpop.f32.mrf.mxu0
        %v1911 = vadd.f32 %v1366, %v1910
        %v1912 = vpop.f32.mrf.mxu0
        %1913 = vmatprep.mubr.f32.mxu0 0.0
        %v1914 = vand.u32 %v755, 4294901760
        %1915 = vmatmul.mubr.f32.gmra.mxu0 %v1914
        %v1916 = vpop.f32.mrf.mxu0
        %v1917 = vadd.f32 %v1376, %v1916
        %v1918 = vpop.f32.mrf.mxu0
        %1919 = vmatprep.mubr.f32.mxu0 0.0
        %v1920 = vand.u32 %v758, 4294901760
        %1921 = vmatmul.mubr.f32.gmra.mxu0 %v1920
        %v1922 = vpop.f32.mrf.mxu0
        %v1923 = vadd.f32 %v1386, %v1922
        %v1924 = vpop.f32.mrf.mxu0
        %1925 = vmatprep.mubr.f32.mxu0 0.0
        %v1926 = vand.u32 %v761, 4294901760
        %1927 = vmatmul.mubr.f32.gmra.mxu0 %v1926
        %v1928 = vpop.f32.mrf.mxu0
        %v1929 = vadd.f32 %v1396, %v1928
        %v1930 = vpop.f32.mrf.mxu0
        %1931 = vmatprep.mubr.f32.mxu0 0.0
        %v1932 = vand.u32 %v764, 4294901760
        %1933 = vmatmul.mubr.f32.gmra.mxu0 %v1932
        %v1934 = vpop.f32.mrf.mxu0
        %v1935 = vadd.f32 %v1406, %v1934
        %v1936 = vpop.f32.mrf.mxu0
        %1937 = vmatprep.mubr.f32.mxu0 0.0
        %v1938 = vand.u32 %v767, 4294901760
        %1939 = vmatmul.mubr.f32.gmra.mxu0 %v1938
        %v1940 = vpop.f32.mrf.mxu0
        %v1941 = vadd.f32 %v1416, %v1940
        %v1942 = vpop.f32.mrf.mxu0
        %1943 = vmatprep.mubr.f32.mxu0 0.0
        %v1944 = vand.u32 %v770, 4294901760
        %1945 = vmatmul.mubr.f32.gmra.mxu0 %v1944
        %v1946 = vpop.f32.mrf.mxu0
        %v1947 = vadd.f32 %v1426, %v1946
        %v1948 = vpop.f32.mrf.mxu0
        %1949 = vmatprep.mubr.f32.mxu0 0.0
        %v1950 = vand.u32 %v773, 4294901760
        %1951 = vmatmul.mubr.f32.gmra.mxu0 %v1950
        %v1952 = vpop.f32.mrf.mxu0
        %v1953 = vadd.f32 %v1436, %v1952
        %v1954 = vpop.f32.mrf.mxu0
        %1955 = vmatprep.mubr.f32.mxu0 0.0
        %v1956 = vand.u32 %v776, 4294901760
        %1957 = vmatmul.mubr.f32.gmra.mxu0 %v1956
        %v1958 = vpop.f32.mrf.mxu0
        %v1959 = vadd.f32 %v1446, %v1958
        %v1960 = vpop.f32.mrf.mxu0
        %1961 = vmatprep.mubr.f32.mxu0 0.0
        %v1962 = vand.u32 %v779, 4294901760
        %1963 = vmatmul.mubr.f32.gmra.mxu0 %v1962
        %v1964 = vpop.f32.mrf.mxu0
        %v1965 = vadd.f32 %v1456, %v1964
        %v1966 = vpop.f32.mrf.mxu0
        %1967 = vmatprep.mubr.f32.mxu0 0.0
        %v1968 = vand.u32 %v782, 4294901760
        %1969 = vmatmul.mubr.f32.gmra.mxu0 %v1968
        %v1970 = vpop.f32.mrf.mxu0
        %v1971 = vadd.f32 %v1466, %v1970
        %v1972 = vpop.f32.mrf.mxu0
        %1973 = vmatprep.mubr.f32.mxu0 0.0
        %v1974 = vand.u32 %v785, 4294901760
        %1975 = vmatmul.mubr.f32.gmra.mxu0 %v1974
        %v1976 = vpop.f32.mrf.mxu0
        %v1977 = vadd.f32 %v1476, %v1976
        %v1978 = vpop.f32.mrf.mxu0
        %1979 = vmatprep.mubr.f32.mxu0 0.0
        %v1980 = vand.u32 %v788, 4294901760
        %1981 = vmatmul.mubr.f32.gmra.mxu0 %v1980
        %v1982 = vpop.f32.mrf.mxu0
        %v1983 = vadd.f32 %v1486, %v1982
        %v1984 = vpop.f32.mrf.mxu0
        %1985 = vmatprep.mubr.f32.mxu0 0.0
        %v1986 = vand.u32 %v791, 4294901760
        %1987 = vmatmul.mubr.f32.gmra.mxu0 %v1986
        %v1988 = vpop.f32.mrf.mxu0
        %v1989 = vadd.f32 %v1496, %v1988
        %v1990 = vpop.f32.mrf.mxu0
        %1991 = vmatprep.mubr.f32.mxu0 0.0
        %v1992 = vand.u32 %v794, 4294901760
        %1993 = vmatmul.mubr.f32.gmra.mxu0 %v1992
        %v1994 = vpop.f32.mrf.mxu0
        %v1995 = vadd.f32 %v1506, %v1994
        %v1996 = vpop.f32.mrf.mxu0
        %1997 = vdwg.mxu0
        %1998 = vmatprep.subr.mxu0 0.0
        %1999 = vmatpush1.msra.mxu0 0.0
        %2000 = vmatprep.subr.mxu0 0.0
        %2001 = vmatpush1.msra.mxu0 0.0
        %2002 = vmatprep.subr.mxu0 0.0
        %2003 = vmatpush1.msra.mxu0 0.0
        %2004 = vmatprep.subr.mxu0 0.0
        %2005 = vmatpush1.msra.mxu0 0.0
        %2006 = vmatprep.subr.mxu0 0.0
        %2007 = vmatpush1.msra.mxu0 0.0
        %2008 = vmatprep.subr.mxu0 0.0
        %2009 = vmatpush1.msra.mxu0 0.0
        %2010 = vmatprep.subr.mxu0 0.0
        %2011 = vmatpush1.msra.mxu0 0.0
        %2012 = vmatprep.subr.mxu0 0.0
        %2013 = vmatpush1.msra.mxu0 0.0
        %2014 = vmatprep.subr.mxu0 0.0
        %v2015 = vand.u32 %v602, 4294901760
        %v2016 = vsub.f32 %v602, %v2015
        %2017 = vmatpush1.msra.mxu0 %v2016
        %2018 = vmatprep.subr.mxu0 0.0
        %v2019 = vand.u32 %v601, 4294901760
        %v2020 = vsub.f32 %v601, %v2019
        %2021 = vmatpush1.msra.mxu0 %v2020
        %2022 = vmatprep.subr.mxu0 0.0
        %v2023 = vand.u32 %v600, 4294901760
        %v2024 = vsub.f32 %v600, %v2023
        %2025 = vmatpush1.msra.mxu0 %v2024
        %2026 = vmatprep.subr.mxu0 0.0
        %v2027 = vand.u32 %v599, 4294901760
        %v2028 = vsub.f32 %v599, %v2027
        %2029 = vmatpush1.msra.mxu0 %v2028
        %2030 = vmatprep.subr.mxu0 0.0
        %v2031 = vand.u32 %v598, 4294901760
        %v2032 = vsub.f32 %v598, %v2031
        %2033 = vmatpush1.msra.mxu0 %v2032
        %2034 = vmatprep.subr.mxu0 0.0
        %v2035 = vand.u32 %v597, 4294901760
        %v2036 = vsub.f32 %v597, %v2035
        %2037 = vmatpush1.msra.mxu0 %v2036
        %2038 = vmatprep.subr.mxu0 0.0
        %v2039 = vand.u32 %v596, 4294901760
        %v2040 = vsub.f32 %v596, %v2039
        %2041 = vmatpush1.msra.mxu0 %v2040
        %2042 = vmatprep.subr.mxu0 0.0
        %v2043 = vand.u32 %v595, 4294901760
        %v2044 = vsub.f32 %v595, %v2043
        %2045 = vmatpush1.msra.mxu0 %v2044
        %2046 = vmatprep.subr.mxu0 0.0
        %2047 = vmatpush2.msra.mxu0 0.0
        %2048 = vmatprep.subr.mxu0 0.0
        %2049 = vmatpush2.msra.mxu0 0.0
        %2050 = vmatprep.subr.mxu0 0.0
        %2051 = vmatpush2.msra.mxu0 0.0
        %2052 = vmatprep.subr.mxu0 0.0
        %2053 = vmatpush2.msra.mxu0 0.0
        %2054 = vmatprep.subr.mxu0 0.0
        %2055 = vmatpush2.msra.mxu0 0.0
        %2056 = vmatprep.subr.mxu0 0.0
        %2057 = vmatpush2.msra.mxu0 0.0
        %2058 = vmatprep.subr.mxu0 0.0
        %2059 = vmatpush2.msra.mxu0 0.0
        %2060 = vmatprep.subr.mxu0 0.0
        %2061 = vmatpush2.msra.mxu0 0.0
        %2062 = vmatprep.subr.mxu0 0.0
        %2063 = vmatpush2.msra.mxu0 0.0
        %2064 = vmatprep.subr.mxu0 0.0
        %2065 = vmatpush2.msra.mxu0 0.0
        %2066 = vmatprep.subr.mxu0 0.0
        %2067 = vmatpush2.msra.mxu0 0.0
        %2068 = vmatprep.subr.mxu0 0.0
        %2069 = vmatpush2.msra.mxu0 0.0
        %2070 = vmatprep.subr.mxu0 0.0
        %2071 = vmatpush2.msra.mxu0 0.0
        %2072 = vmatprep.subr.mxu0 0.0
        %2073 = vmatpush2.msra.mxu0 0.0
        %2074 = vmatprep.subr.mxu0 0.0
        %2075 = vmatpush2.msra.mxu0 0.0
        %2076 = vmatprep.subr.mxu0 0.0
        %2077 = vmatpush2.msra.mxu0 0.0
        %2078 = vmatprep.mubr.f32.mxu0 0.0
        %v2079 = vand.u32 %v605, 4294901760
        %v2080 = vsub.f32 %v605, %v2079
        %2081 = vmatmul.mubr.f32.gmra.mxu0 %v2080
        %v2082 = vpop.f32.mrf.mxu0
        %v2083 = vadd.f32 %v1617, %v2082
        %v2084 = vpop.f32.mrf.mxu0
        %2085 = vmatprep.mubr.f32.mxu0 0.0
        %v2086 = vand.u32 %v608, 4294901760
        %v2087 = vsub.f32 %v608, %v2086
        %2088 = vmatmul.mubr.f32.gmra.mxu0 %v2087
        %v2089 = vpop.f32.mrf.mxu0
        %v2090 = vadd.f32 %v1623, %v2089
        %v2091 = vpop.f32.mrf.mxu0
        %2092 = vmatprep.mubr.f32.mxu0 0.0
        %v2093 = vand.u32 %v611, 4294901760
        %v2094 = vsub.f32 %v611, %v2093
        %2095 = vmatmul.mubr.f32.gmra.mxu0 %v2094
        %v2096 = vpop.f32.mrf.mxu0
        %v2097 = vadd.f32 %v1629, %v2096
        %v2098 = vpop.f32.mrf.mxu0
        %2099 = vmatprep.mubr.f32.mxu0 0.0
        %v2100 = vand.u32 %v614, 4294901760
        %v2101 = vsub.f32 %v614, %v2100
        %2102 = vmatmul.mubr.f32.gmra.mxu0 %v2101
        %v2103 = vpop.f32.mrf.mxu0
        %v2104 = vadd.f32 %v1635, %v2103
        %v2105 = vpop.f32.mrf.mxu0
        %2106 = vmatprep.mubr.f32.mxu0 0.0
        %v2107 = vand.u32 %v617, 4294901760
        %v2108 = vsub.f32 %v617, %v2107
        %2109 = vmatmul.mubr.f32.gmra.mxu0 %v2108
        %v2110 = vpop.f32.mrf.mxu0
        %v2111 = vadd.f32 %v1641, %v2110
        %v2112 = vpop.f32.mrf.mxu0
        %2113 = vmatprep.mubr.f32.mxu0 0.0
        %v2114 = vand.u32 %v620, 4294901760
        %v2115 = vsub.f32 %v620, %v2114
        %2116 = vmatmul.mubr.f32.gmra.mxu0 %v2115
        %v2117 = vpop.f32.mrf.mxu0
        %v2118 = vadd.f32 %v1647, %v2117
        %v2119 = vpop.f32.mrf.mxu0
        %2120 = vmatprep.mubr.f32.mxu0 0.0
        %v2121 = vand.u32 %v623, 4294901760
        %v2122 = vsub.f32 %v623, %v2121
        %2123 = vmatmul.mubr.f32.gmra.mxu0 %v2122
        %v2124 = vpop.f32.mrf.mxu0
        %v2125 = vadd.f32 %v1653, %v2124
        %v2126 = vpop.f32.mrf.mxu0
        %2127 = vmatprep.mubr.f32.mxu0 0.0
        %v2128 = vand.u32 %v626, 4294901760
        %v2129 = vsub.f32 %v626, %v2128
        %2130 = vmatmul.mubr.f32.gmra.mxu0 %v2129
        %v2131 = vpop.f32.mrf.mxu0
        %v2132 = vadd.f32 %v1659, %v2131
        %v2133 = vpop.f32.mrf.mxu0
        %2134 = vmatprep.mubr.f32.mxu0 0.0
        %v2135 = vand.u32 %v629, 4294901760
        %v2136 = vsub.f32 %v629, %v2135
        %2137 = vmatmul.mubr.f32.gmra.mxu0 %v2136
        %v2138 = vpop.f32.mrf.mxu0
        %v2139 = vadd.f32 %v1665, %v2138
        %v2140 = vpop.f32.mrf.mxu0
        %2141 = vmatprep.mubr.f32.mxu0 0.0
        %v2142 = vand.u32 %v632, 4294901760
        %v2143 = vsub.f32 %v632, %v2142
        %2144 = vmatmul.mubr.f32.gmra.mxu0 %v2143
        %v2145 = vpop.f32.mrf.mxu0
        %v2146 = vadd.f32 %v1671, %v2145
        %v2147 = vpop.f32.mrf.mxu0
        %2148 = vmatprep.mubr.f32.mxu0 0.0
        %v2149 = vand.u32 %v635, 4294901760
        %v2150 = vsub.f32 %v635, %v2149
        %2151 = vmatmul.mubr.f32.gmra.mxu0 %v2150
        %v2152 = vpop.f32.mrf.mxu0
        %v2153 = vadd.f32 %v1677, %v2152
        %v2154 = vpop.f32.mrf.mxu0
        %2155 = vmatprep.mubr.f32.mxu0 0.0
        %v2156 = vand.u32 %v638, 4294901760
        %v2157 = vsub.f32 %v638, %v2156
        %2158 = vmatmul.mubr.f32.gmra.mxu0 %v2157
        %v2159 = vpop.f32.mrf.mxu0
        %v2160 = vadd.f32 %v1683, %v2159
        %v2161 = vpop.f32.mrf.mxu0
        %2162 = vmatprep.mubr.f32.mxu0 0.0
        %v2163 = vand.u32 %v641, 4294901760
        %v2164 = vsub.f32 %v641, %v2163
        %2165 = vmatmul.mubr.f32.gmra.mxu0 %v2164
        %v2166 = vpop.f32.mrf.mxu0
        %v2167 = vadd.f32 %v1689, %v2166
        %v2168 = vpop.f32.mrf.mxu0
        %2169 = vmatprep.mubr.f32.mxu0 0.0
        %v2170 = vand.u32 %v644, 4294901760
        %v2171 = vsub.f32 %v644, %v2170
        %2172 = vmatmul.mubr.f32.gmra.mxu0 %v2171
        %v2173 = vpop.f32.mrf.mxu0
        %v2174 = vadd.f32 %v1695, %v2173
        %v2175 = vpop.f32.mrf.mxu0
        %2176 = vmatprep.mubr.f32.mxu0 0.0
        %v2177 = vand.u32 %v647, 4294901760
        %v2178 = vsub.f32 %v647, %v2177
        %2179 = vmatmul.mubr.f32.gmra.mxu0 %v2178
        %v2180 = vpop.f32.mrf.mxu0
        %v2181 = vadd.f32 %v1701, %v2180
        %v2182 = vpop.f32.mrf.mxu0
        %2183 = vmatprep.mubr.f32.mxu0 0.0
        %v2184 = vand.u32 %v650, 4294901760
        %v2185 = vsub.f32 %v650, %v2184
        %2186 = vmatmul.mubr.f32.gmra.mxu0 %v2185
        %v2187 = vpop.f32.mrf.mxu0
        %v2188 = vadd.f32 %v1707, %v2187
        %v2189 = vpop.f32.mrf.mxu0
        %2190 = vmatprep.mubr.f32.mxu0 0.0
        %v2191 = vand.u32 %v653, 4294901760
        %v2192 = vsub.f32 %v653, %v2191
        %2193 = vmatmul.mubr.f32.gmra.mxu0 %v2192
        %v2194 = vpop.f32.mrf.mxu0
        %v2195 = vadd.f32 %v1713, %v2194
        %v2196 = vpop.f32.mrf.mxu0
        %2197 = vmatprep.mubr.f32.mxu0 0.0
        %v2198 = vand.u32 %v656, 4294901760
        %v2199 = vsub.f32 %v656, %v2198
        %2200 = vmatmul.mubr.f32.gmra.mxu0 %v2199
        %v2201 = vpop.f32.mrf.mxu0
        %v2202 = vadd.f32 %v1719, %v2201
        %v2203 = vpop.f32.mrf.mxu0
        %2204 = vmatprep.mubr.f32.mxu0 0.0
        %v2205 = vand.u32 %v659, 4294901760
        %v2206 = vsub.f32 %v659, %v2205
        %2207 = vmatmul.mubr.f32.gmra.mxu0 %v2206
        %v2208 = vpop.f32.mrf.mxu0
        %v2209 = vadd.f32 %v1725, %v2208
        %v2210 = vpop.f32.mrf.mxu0
        %2211 = vmatprep.mubr.f32.mxu0 0.0
        %v2212 = vand.u32 %v662, 4294901760
        %v2213 = vsub.f32 %v662, %v2212
        %2214 = vmatmul.mubr.f32.gmra.mxu0 %v2213
        %v2215 = vpop.f32.mrf.mxu0
        %v2216 = vadd.f32 %v1731, %v2215
        %v2217 = vpop.f32.mrf.mxu0
        %2218 = vmatprep.mubr.f32.mxu0 0.0
        %v2219 = vand.u32 %v665, 4294901760
        %v2220 = vsub.f32 %v665, %v2219
        %2221 = vmatmul.mubr.f32.gmra.mxu0 %v2220
        %v2222 = vpop.f32.mrf.mxu0
        %v2223 = vadd.f32 %v1737, %v2222
        %v2224 = vpop.f32.mrf.mxu0
        %2225 = vmatprep.mubr.f32.mxu0 0.0
        %v2226 = vand.u32 %v668, 4294901760
        %v2227 = vsub.f32 %v668, %v2226
        %2228 = vmatmul.mubr.f32.gmra.mxu0 %v2227
        %v2229 = vpop.f32.mrf.mxu0
        %v2230 = vadd.f32 %v1743, %v2229
        %v2231 = vpop.f32.mrf.mxu0
        %2232 = vmatprep.mubr.f32.mxu0 0.0
        %v2233 = vand.u32 %v671, 4294901760
        %v2234 = vsub.f32 %v671, %v2233
        %2235 = vmatmul.mubr.f32.gmra.mxu0 %v2234
        %v2236 = vpop.f32.mrf.mxu0
        %v2237 = vadd.f32 %v1749, %v2236
        %v2238 = vpop.f32.mrf.mxu0
        %2239 = vmatprep.mubr.f32.mxu0 0.0
        %v2240 = vand.u32 %v674, 4294901760
        %v2241 = vsub.f32 %v674, %v2240
        %2242 = vmatmul.mubr.f32.gmra.mxu0 %v2241
        %v2243 = vpop.f32.mrf.mxu0
        %v2244 = vadd.f32 %v1755, %v2243
        %v2245 = vpop.f32.mrf.mxu0
        %2246 = vmatprep.mubr.f32.mxu0 0.0
        %v2247 = vand.u32 %v677, 4294901760
        %v2248 = vsub.f32 %v677, %v2247
        %2249 = vmatmul.mubr.f32.gmra.mxu0 %v2248
        %v2250 = vpop.f32.mrf.mxu0
        %v2251 = vadd.f32 %v1761, %v2250
        %v2252 = vpop.f32.mrf.mxu0
        %2253 = vmatprep.mubr.f32.mxu0 0.0
        %v2254 = vand.u32 %v680, 4294901760
        %v2255 = vsub.f32 %v680, %v2254
        %2256 = vmatmul.mubr.f32.gmra.mxu0 %v2255
        %v2257 = vpop.f32.mrf.mxu0
        %v2258 = vadd.f32 %v1767, %v2257
        %v2259 = vpop.f32.mrf.mxu0
        %2260 = vmatprep.mubr.f32.mxu0 0.0
        %v2261 = vand.u32 %v683, 4294901760
        %v2262 = vsub.f32 %v683, %v2261
        %2263 = vmatmul.mubr.f32.gmra.mxu0 %v2262
        %v2264 = vpop.f32.mrf.mxu0
        %v2265 = vadd.f32 %v1773, %v2264
        %v2266 = vpop.f32.mrf.mxu0
        %2267 = vmatprep.mubr.f32.mxu0 0.0
        %v2268 = vand.u32 %v686, 4294901760
        %v2269 = vsub.f32 %v686, %v2268
        %2270 = vmatmul.mubr.f32.gmra.mxu0 %v2269
        %v2271 = vpop.f32.mrf.mxu0
        %v2272 = vadd.f32 %v1779, %v2271
        %v2273 = vpop.f32.mrf.mxu0
        %2274 = vmatprep.mubr.f32.mxu0 0.0
        %v2275 = vand.u32 %v689, 4294901760
        %v2276 = vsub.f32 %v689, %v2275
        %2277 = vmatmul.mubr.f32.gmra.mxu0 %v2276
        %v2278 = vpop.f32.mrf.mxu0
        %v2279 = vadd.f32 %v1785, %v2278
        %v2280 = vpop.f32.mrf.mxu0
        %2281 = vmatprep.mubr.f32.mxu0 0.0
        %v2282 = vand.u32 %v692, 4294901760
        %v2283 = vsub.f32 %v692, %v2282
        %2284 = vmatmul.mubr.f32.gmra.mxu0 %v2283
        %v2285 = vpop.f32.mrf.mxu0
        %v2286 = vadd.f32 %v1791, %v2285
        %v2287 = vpop.f32.mrf.mxu0
        %2288 = vmatprep.mubr.f32.mxu0 0.0
        %v2289 = vand.u32 %v695, 4294901760
        %v2290 = vsub.f32 %v695, %v2289
        %2291 = vmatmul.mubr.f32.gmra.mxu0 %v2290
        %v2292 = vpop.f32.mrf.mxu0
        %v2293 = vadd.f32 %v1797, %v2292
        %v2294 = vpop.f32.mrf.mxu0
        %2295 = vmatprep.mubr.f32.mxu0 0.0
        %v2296 = vand.u32 %v698, 4294901760
        %v2297 = vsub.f32 %v698, %v2296
        %2298 = vmatmul.mubr.f32.gmra.mxu0 %v2297
        %v2299 = vpop.f32.mrf.mxu0
        %v2300 = vadd.f32 %v1803, %v2299
        %v2301 = vpop.f32.mrf.mxu0
        %2302 = vmatprep.mubr.f32.mxu0 0.0
        %v2303 = vand.u32 %v701, 4294901760
        %v2304 = vsub.f32 %v701, %v2303
        %2305 = vmatmul.mubr.f32.gmra.mxu0 %v2304
        %v2306 = vpop.f32.mrf.mxu0
        %v2307 = vadd.f32 %v1809, %v2306
        %v2308 = vpop.f32.mrf.mxu0
        %2309 = vmatprep.mubr.f32.mxu0 0.0
        %v2310 = vand.u32 %v704, 4294901760
        %v2311 = vsub.f32 %v704, %v2310
        %2312 = vmatmul.mubr.f32.gmra.mxu0 %v2311
        %v2313 = vpop.f32.mrf.mxu0
        %v2314 = vadd.f32 %v1815, %v2313
        %v2315 = vpop.f32.mrf.mxu0
        %2316 = vmatprep.mubr.f32.mxu0 0.0
        %v2317 = vand.u32 %v707, 4294901760
        %v2318 = vsub.f32 %v707, %v2317
        %2319 = vmatmul.mubr.f32.gmra.mxu0 %v2318
        %v2320 = vpop.f32.mrf.mxu0
        %v2321 = vadd.f32 %v1821, %v2320
        %v2322 = vpop.f32.mrf.mxu0
        %2323 = vmatprep.mubr.f32.mxu0 0.0
        %v2324 = vand.u32 %v710, 4294901760
        %v2325 = vsub.f32 %v710, %v2324
        %2326 = vmatmul.mubr.f32.gmra.mxu0 %v2325
        %v2327 = vpop.f32.mrf.mxu0
        %v2328 = vadd.f32 %v1827, %v2327
        %v2329 = vpop.f32.mrf.mxu0
        %2330 = vmatprep.mubr.f32.mxu0 0.0
        %v2331 = vand.u32 %v713, 4294901760
        %v2332 = vsub.f32 %v713, %v2331
        %2333 = vmatmul.mubr.f32.gmra.mxu0 %v2332
        %v2334 = vpop.f32.mrf.mxu0
        %v2335 = vadd.f32 %v1833, %v2334
        %v2336 = vpop.f32.mrf.mxu0
        %2337 = vmatprep.mubr.f32.mxu0 0.0
        %v2338 = vand.u32 %v716, 4294901760
        %v2339 = vsub.f32 %v716, %v2338
        %2340 = vmatmul.mubr.f32.gmra.mxu0 %v2339
        %v2341 = vpop.f32.mrf.mxu0
        %v2342 = vadd.f32 %v1839, %v2341
        %v2343 = vpop.f32.mrf.mxu0
        %2344 = vmatprep.mubr.f32.mxu0 0.0
        %v2345 = vand.u32 %v719, 4294901760
        %v2346 = vsub.f32 %v719, %v2345
        %2347 = vmatmul.mubr.f32.gmra.mxu0 %v2346
        %v2348 = vpop.f32.mrf.mxu0
        %v2349 = vadd.f32 %v1845, %v2348
        %v2350 = vpop.f32.mrf.mxu0
        %2351 = vmatprep.mubr.f32.mxu0 0.0
        %v2352 = vand.u32 %v722, 4294901760
        %v2353 = vsub.f32 %v722, %v2352
        %2354 = vmatmul.mubr.f32.gmra.mxu0 %v2353
        %v2355 = vpop.f32.mrf.mxu0
        %v2356 = vadd.f32 %v1851, %v2355
        %v2357 = vpop.f32.mrf.mxu0
        %2358 = vmatprep.mubr.f32.mxu0 0.0
        %v2359 = vand.u32 %v725, 4294901760
        %v2360 = vsub.f32 %v725, %v2359
        %2361 = vmatmul.mubr.f32.gmra.mxu0 %v2360
        %v2362 = vpop.f32.mrf.mxu0
        %v2363 = vadd.f32 %v1857, %v2362
        %v2364 = vpop.f32.mrf.mxu0
        %2365 = vmatprep.mubr.f32.mxu0 0.0
        %v2366 = vand.u32 %v728, 4294901760
        %v2367 = vsub.f32 %v728, %v2366
        %2368 = vmatmul.mubr.f32.gmra.mxu0 %v2367
        %v2369 = vpop.f32.mrf.mxu0
        %v2370 = vadd.f32 %v1863, %v2369
        %v2371 = vpop.f32.mrf.mxu0
        %2372 = vmatprep.mubr.f32.mxu0 0.0
        %v2373 = vand.u32 %v731, 4294901760
        %v2374 = vsub.f32 %v731, %v2373
        %2375 = vmatmul.mubr.f32.gmra.mxu0 %v2374
        %v2376 = vpop.f32.mrf.mxu0
        %v2377 = vadd.f32 %v1869, %v2376
        %v2378 = vpop.f32.mrf.mxu0
        %2379 = vmatprep.mubr.f32.mxu0 0.0
        %v2380 = vand.u32 %v734, 4294901760
        %v2381 = vsub.f32 %v734, %v2380
        %2382 = vmatmul.mubr.f32.gmra.mxu0 %v2381
        %v2383 = vpop.f32.mrf.mxu0
        %v2384 = vadd.f32 %v1875, %v2383
        %v2385 = vpop.f32.mrf.mxu0
        %2386 = vmatprep.mubr.f32.mxu0 0.0
        %v2387 = vand.u32 %v737, 4294901760
        %v2388 = vsub.f32 %v737, %v2387
        %2389 = vmatmul.mubr.f32.gmra.mxu0 %v2388
        %v2390 = vpop.f32.mrf.mxu0
        %v2391 = vadd.f32 %v1881, %v2390
        %v2392 = vpop.f32.mrf.mxu0
        %2393 = vmatprep.mubr.f32.mxu0 0.0
        %v2394 = vand.u32 %v740, 4294901760
        %v2395 = vsub.f32 %v740, %v2394
        %2396 = vmatmul.mubr.f32.gmra.mxu0 %v2395
        %v2397 = vpop.f32.mrf.mxu0
        %v2398 = vadd.f32 %v1887, %v2397
        %v2399 = vpop.f32.mrf.mxu0
        %2400 = vmatprep.mubr.f32.mxu0 0.0
        %v2401 = vand.u32 %v743, 4294901760
        %v2402 = vsub.f32 %v743, %v2401
        %2403 = vmatmul.mubr.f32.gmra.mxu0 %v2402
        %v2404 = vpop.f32.mrf.mxu0
        %v2405 = vadd.f32 %v1893, %v2404
        %v2406 = vpop.f32.mrf.mxu0
        %2407 = vmatprep.mubr.f32.mxu0 0.0
        %v2408 = vand.u32 %v746, 4294901760
        %v2409 = vsub.f32 %v746, %v2408
        %2410 = vmatmul.mubr.f32.gmra.mxu0 %v2409
        %v2411 = vpop.f32.mrf.mxu0
        %v2412 = vadd.f32 %v1899, %v2411
        %v2413 = vpop.f32.mrf.mxu0
        %2414 = vmatprep.mubr.f32.mxu0 0.0
        %v2415 = vand.u32 %v749, 4294901760
        %v2416 = vsub.f32 %v749, %v2415
        %2417 = vmatmul.mubr.f32.gmra.mxu0 %v2416
        %v2418 = vpop.f32.mrf.mxu0
        %v2419 = vadd.f32 %v1905, %v2418
        %v2420 = vpop.f32.mrf.mxu0
        %2421 = vmatprep.mubr.f32.mxu0 0.0
        %v2422 = vand.u32 %v752, 4294901760
        %v2423 = vsub.f32 %v752, %v2422
        %2424 = vmatmul.mubr.f32.gmra.mxu0 %v2423
        %v2425 = vpop.f32.mrf.mxu0
        %v2426 = vadd.f32 %v1911, %v2425
        %v2427 = vpop.f32.mrf.mxu0
        %2428 = vmatprep.mubr.f32.mxu0 0.0
        %v2429 = vand.u32 %v755, 4294901760
        %v2430 = vsub.f32 %v755, %v2429
        %2431 = vmatmul.mubr.f32.gmra.mxu0 %v2430
        %v2432 = vpop.f32.mrf.mxu0
        %v2433 = vadd.f32 %v1917, %v2432
        %v2434 = vpop.f32.mrf.mxu0
        %2435 = vmatprep.mubr.f32.mxu0 0.0
        %v2436 = vand.u32 %v758, 4294901760
        %v2437 = vsub.f32 %v758, %v2436
        %2438 = vmatmul.mubr.f32.gmra.mxu0 %v2437
        %v2439 = vpop.f32.mrf.mxu0
        %v2440 = vadd.f32 %v1923, %v2439
        %v2441 = vpop.f32.mrf.mxu0
        %2442 = vmatprep.mubr.f32.mxu0 0.0
        %v2443 = vand.u32 %v761, 4294901760
        %v2444 = vsub.f32 %v761, %v2443
        %2445 = vmatmul.mubr.f32.gmra.mxu0 %v2444
        %v2446 = vpop.f32.mrf.mxu0
        %v2447 = vadd.f32 %v1929, %v2446
        %v2448 = vpop.f32.mrf.mxu0
        %2449 = vmatprep.mubr.f32.mxu0 0.0
        %v2450 = vand.u32 %v764, 4294901760
        %v2451 = vsub.f32 %v764, %v2450
        %2452 = vmatmul.mubr.f32.gmra.mxu0 %v2451
        %v2453 = vpop.f32.mrf.mxu0
        %v2454 = vadd.f32 %v1935, %v2453
        %v2455 = vpop.f32.mrf.mxu0
        %2456 = vmatprep.mubr.f32.mxu0 0.0
        %v2457 = vand.u32 %v767, 4294901760
        %v2458 = vsub.f32 %v767, %v2457
        %2459 = vmatmul.mubr.f32.gmra.mxu0 %v2458
        %v2460 = vpop.f32.mrf.mxu0
        %v2461 = vadd.f32 %v1941, %v2460
        %v2462 = vpop.f32.mrf.mxu0
        %2463 = vmatprep.mubr.f32.mxu0 0.0
        %v2464 = vand.u32 %v770, 4294901760
        %v2465 = vsub.f32 %v770, %v2464
        %2466 = vmatmul.mubr.f32.gmra.mxu0 %v2465
        %v2467 = vpop.f32.mrf.mxu0
        %v2468 = vadd.f32 %v1947, %v2467
        %v2469 = vpop.f32.mrf.mxu0
        %2470 = vmatprep.mubr.f32.mxu0 0.0
        %v2471 = vand.u32 %v773, 4294901760
        %v2472 = vsub.f32 %v773, %v2471
        %2473 = vmatmul.mubr.f32.gmra.mxu0 %v2472
        %v2474 = vpop.f32.mrf.mxu0
        %v2475 = vadd.f32 %v1953, %v2474
        %v2476 = vpop.f32.mrf.mxu0
        %2477 = vmatprep.mubr.f32.mxu0 0.0
        %v2478 = vand.u32 %v776, 4294901760
        %v2479 = vsub.f32 %v776, %v2478
        %2480 = vmatmul.mubr.f32.gmra.mxu0 %v2479
        %v2481 = vpop.f32.mrf.mxu0
        %v2482 = vadd.f32 %v1959, %v2481
        %v2483 = vpop.f32.mrf.mxu0
        %2484 = vmatprep.mubr.f32.mxu0 0.0
        %v2485 = vand.u32 %v779, 4294901760
        %v2486 = vsub.f32 %v779, %v2485
        %2487 = vmatmul.mubr.f32.gmra.mxu0 %v2486
        %v2488 = vpop.f32.mrf.mxu0
        %v2489 = vadd.f32 %v1965, %v2488
        %v2490 = vpop.f32.mrf.mxu0
        %2491 = vmatprep.mubr.f32.mxu0 0.0
        %v2492 = vand.u32 %v782, 4294901760
        %v2493 = vsub.f32 %v782, %v2492
        %2494 = vmatmul.mubr.f32.gmra.mxu0 %v2493
        %v2495 = vpop.f32.mrf.mxu0
        %v2496 = vadd.f32 %v1971, %v2495
        %v2497 = vpop.f32.mrf.mxu0
        %2498 = vmatprep.mubr.f32.mxu0 0.0
        %v2499 = vand.u32 %v785, 4294901760
        %v2500 = vsub.f32 %v785, %v2499
        %2501 = vmatmul.mubr.f32.gmra.mxu0 %v2500
        %v2502 = vpop.f32.mrf.mxu0
        %v2503 = vadd.f32 %v1977, %v2502
        %v2504 = vpop.f32.mrf.mxu0
        %2505 = vmatprep.mubr.f32.mxu0 0.0
        %v2506 = vand.u32 %v788, 4294901760
        %v2507 = vsub.f32 %v788, %v2506
        %2508 = vmatmul.mubr.f32.gmra.mxu0 %v2507
        %v2509 = vpop.f32.mrf.mxu0
        %v2510 = vadd.f32 %v1983, %v2509
        %v2511 = vpop.f32.mrf.mxu0
        %2512 = vmatprep.mubr.f32.mxu0 0.0
        %v2513 = vand.u32 %v791, 4294901760
        %v2514 = vsub.f32 %v791, %v2513
        %2515 = vmatmul.mubr.f32.gmra.mxu0 %v2514
        %v2516 = vpop.f32.mrf.mxu0
        %v2517 = vadd.f32 %v1989, %v2516
        %v2518 = vpop.f32.mrf.mxu0
        %2519 = vmatprep.mubr.f32.mxu0 0.0
        %v2520 = vand.u32 %v794, 4294901760
        %v2521 = vsub.f32 %v794, %v2520
        %2522 = vmatmul.mubr.f32.gmra.mxu0 %v2521
        %v2523 = vpop.f32.mrf.mxu0
        %v2524 = vadd.f32 %v1995, %v2523
        %v2525 = vpop.f32.mrf.mxu0
        %2526 = vdwg.mxu0
        %2527 = vmatprep.subr.mxu0 0.0
        %2528 = vmatpush1.msra.mxu0 0.0
        %2529 = vmatprep.subr.mxu0 0.0
        %2530 = vmatpush1.msra.mxu0 0.0
        %2531 = vmatprep.subr.mxu0 0.0
        %2532 = vmatpush1.msra.mxu0 0.0
        %2533 = vmatprep.subr.mxu0 0.0
        %2534 = vmatpush1.msra.mxu0 0.0
        %2535 = vmatprep.subr.mxu0 0.0
        %2536 = vmatpush1.msra.mxu0 0.0
        %2537 = vmatprep.subr.mxu0 0.0
        %2538 = vmatpush1.msra.mxu0 0.0
        %2539 = vmatprep.subr.mxu0 0.0
        %2540 = vmatpush1.msra.mxu0 0.0
        %2541 = vmatprep.subr.mxu0 0.0
        %2542 = vmatpush1.msra.mxu0 0.0
        %2543 = vmatprep.subr.mxu0 0.0
        %v2544 = vand.u32 %v602, 4294901760
        %2545 = vmatpush1.msra.mxu0 %v2544
        %2546 = vmatprep.subr.mxu0 0.0
        %v2547 = vand.u32 %v601, 4294901760
        %2548 = vmatpush1.msra.mxu0 %v2547
        %2549 = vmatprep.subr.mxu0 0.0
        %v2550 = vand.u32 %v600, 4294901760
        %2551 = vmatpush1.msra.mxu0 %v2550
        %2552 = vmatprep.subr.mxu0 0.0
        %v2553 = vand.u32 %v599, 4294901760
        %2554 = vmatpush1.msra.mxu0 %v2553
        %2555 = vmatprep.subr.mxu0 0.0
        %v2556 = vand.u32 %v598, 4294901760
        %2557 = vmatpush1.msra.mxu0 %v2556
        %2558 = vmatprep.subr.mxu0 0.0
        %v2559 = vand.u32 %v597, 4294901760
        %2560 = vmatpush1.msra.mxu0 %v2559
        %2561 = vmatprep.subr.mxu0 0.0
        %v2562 = vand.u32 %v596, 4294901760
        %2563 = vmatpush1.msra.mxu0 %v2562
        %2564 = vmatprep.subr.mxu0 0.0
        %v2565 = vand.u32 %v595, 4294901760
        %2566 = vmatpush1.msra.mxu0 %v2565
        %2567 = vmatprep.subr.mxu0 0.0
        %2568 = vmatpush2.msra.mxu0 0.0
        %2569 = vmatprep.subr.mxu0 0.0
        %2570 = vmatpush2.msra.mxu0 0.0
        %2571 = vmatprep.subr.mxu0 0.0
        %2572 = vmatpush2.msra.mxu0 0.0
        %2573 = vmatprep.subr.mxu0 0.0
        %2574 = vmatpush2.msra.mxu0 0.0
        %2575 = vmatprep.subr.mxu0 0.0
        %2576 = vmatpush2.msra.mxu0 0.0
        %2577 = vmatprep.subr.mxu0 0.0
        %2578 = vmatpush2.msra.mxu0 0.0
        %2579 = vmatprep.subr.mxu0 0.0
        %2580 = vmatpush2.msra.mxu0 0.0
        %2581 = vmatprep.subr.mxu0 0.0
        %2582 = vmatpush2.msra.mxu0 0.0
        %2583 = vmatprep.subr.mxu0 0.0
        %2584 = vmatpush2.msra.mxu0 0.0
        %2585 = vmatprep.subr.mxu0 0.0
        %2586 = vmatpush2.msra.mxu0 0.0
        %2587 = vmatprep.subr.mxu0 0.0
        %2588 = vmatpush2.msra.mxu0 0.0
        %2589 = vmatprep.subr.mxu0 0.0
        %2590 = vmatpush2.msra.mxu0 0.0
        %2591 = vmatprep.subr.mxu0 0.0
        %2592 = vmatpush2.msra.mxu0 0.0
        %2593 = vmatprep.subr.mxu0 0.0
        %2594 = vmatpush2.msra.mxu0 0.0
        %2595 = vmatprep.subr.mxu0 0.0
        %2596 = vmatpush2.msra.mxu0 0.0
        %2597 = vmatprep.subr.mxu0 0.0
        %2598 = vmatpush2.msra.mxu0 0.0
        %2599 = vmatprep.mubr.f32.mxu0 0.0
        %v2600 = vand.u32 %v605, 4294901760
        %v2601 = vsub.f32 %v605, %v2600
        %v2602 = vand.u32 %v2601, 4294901760
        %2603 = vmatmul.mubr.f32.gmra.mxu0 %v2602
        %v2604 = vpop.f32.mrf.mxu0
        %v2605 = vadd.f32 %v2083, %v2604
        %v2606 = vpop.f32.mrf.mxu0
        %2607 = vmatprep.mubr.f32.mxu0 0.0
        %v2608 = vand.u32 %v608, 4294901760
        %v2609 = vsub.f32 %v608, %v2608
        %v2610 = vand.u32 %v2609, 4294901760
        %2611 = vmatmul.mubr.f32.gmra.mxu0 %v2610
        %v2612 = vpop.f32.mrf.mxu0
        %v2613 = vadd.f32 %v2090, %v2612
        %v2614 = vpop.f32.mrf.mxu0
        %2615 = vmatprep.mubr.f32.mxu0 0.0
        %v2616 = vand.u32 %v611, 4294901760
        %v2617 = vsub.f32 %v611, %v2616
        %v2618 = vand.u32 %v2617, 4294901760
        %2619 = vmatmul.mubr.f32.gmra.mxu0 %v2618
        %v2620 = vpop.f32.mrf.mxu0
        %v2621 = vadd.f32 %v2097, %v2620
        %v2622 = vpop.f32.mrf.mxu0
        %2623 = vmatprep.mubr.f32.mxu0 0.0
        %v2624 = vand.u32 %v614, 4294901760
        %v2625 = vsub.f32 %v614, %v2624
        %v2626 = vand.u32 %v2625, 4294901760
        %2627 = vmatmul.mubr.f32.gmra.mxu0 %v2626
        %v2628 = vpop.f32.mrf.mxu0
        %v2629 = vadd.f32 %v2104, %v2628
        %v2630 = vpop.f32.mrf.mxu0
        %2631 = vmatprep.mubr.f32.mxu0 0.0
        %v2632 = vand.u32 %v617, 4294901760
        %v2633 = vsub.f32 %v617, %v2632
        %v2634 = vand.u32 %v2633, 4294901760
        %2635 = vmatmul.mubr.f32.gmra.mxu0 %v2634
        %v2636 = vpop.f32.mrf.mxu0
        %v2637 = vadd.f32 %v2111, %v2636
        %v2638 = vpop.f32.mrf.mxu0
        %2639 = vmatprep.mubr.f32.mxu0 0.0
        %v2640 = vand.u32 %v620, 4294901760
        %v2641 = vsub.f32 %v620, %v2640
        %v2642 = vand.u32 %v2641, 4294901760
        %2643 = vmatmul.mubr.f32.gmra.mxu0 %v2642
        %v2644 = vpop.f32.mrf.mxu0
        %v2645 = vadd.f32 %v2118, %v2644
        %v2646 = vpop.f32.mrf.mxu0
        %2647 = vmatprep.mubr.f32.mxu0 0.0
        %v2648 = vand.u32 %v623, 4294901760
        %v2649 = vsub.f32 %v623, %v2648
        %v2650 = vand.u32 %v2649, 4294901760
        %2651 = vmatmul.mubr.f32.gmra.mxu0 %v2650
        %v2652 = vpop.f32.mrf.mxu0
        %v2653 = vadd.f32 %v2125, %v2652
        %v2654 = vpop.f32.mrf.mxu0
        %2655 = vmatprep.mubr.f32.mxu0 0.0
        %v2656 = vand.u32 %v626, 4294901760
        %v2657 = vsub.f32 %v626, %v2656
        %v2658 = vand.u32 %v2657, 4294901760
        %2659 = vmatmul.mubr.f32.gmra.mxu0 %v2658
        %v2660 = vpop.f32.mrf.mxu0
        %v2661 = vadd.f32 %v2132, %v2660
        %v2662 = vpop.f32.mrf.mxu0
        %2663 = vmatprep.mubr.f32.mxu0 0.0
        %v2664 = vand.u32 %v629, 4294901760
        %v2665 = vsub.f32 %v629, %v2664
        %v2666 = vand.u32 %v2665, 4294901760
        %2667 = vmatmul.mubr.f32.gmra.mxu0 %v2666
        %v2668 = vpop.f32.mrf.mxu0
        %v2669 = vadd.f32 %v2139, %v2668
        %v2670 = vpop.f32.mrf.mxu0
        %2671 = vmatprep.mubr.f32.mxu0 0.0
        %v2672 = vand.u32 %v632, 4294901760
        %v2673 = vsub.f32 %v632, %v2672
        %v2674 = vand.u32 %v2673, 4294901760
        %2675 = vmatmul.mubr.f32.gmra.mxu0 %v2674
        %v2676 = vpop.f32.mrf.mxu0
        %v2677 = vadd.f32 %v2146, %v2676
        %v2678 = vpop.f32.mrf.mxu0
        %2679 = vmatprep.mubr.f32.mxu0 0.0
        %v2680 = vand.u32 %v635, 4294901760
        %v2681 = vsub.f32 %v635, %v2680
        %v2682 = vand.u32 %v2681, 4294901760
        %2683 = vmatmul.mubr.f32.gmra.mxu0 %v2682
        %v2684 = vpop.f32.mrf.mxu0
        %v2685 = vadd.f32 %v2153, %v2684
        %v2686 = vpop.f32.mrf.mxu0
        %2687 = vmatprep.mubr.f32.mxu0 0.0
        %v2688 = vand.u32 %v638, 4294901760
        %v2689 = vsub.f32 %v638, %v2688
        %v2690 = vand.u32 %v2689, 4294901760
        %2691 = vmatmul.mubr.f32.gmra.mxu0 %v2690
        %v2692 = vpop.f32.mrf.mxu0
        %v2693 = vadd.f32 %v2160, %v2692
        %v2694 = vpop.f32.mrf.mxu0
        %2695 = vmatprep.mubr.f32.mxu0 0.0
        %v2696 = vand.u32 %v641, 4294901760
        %v2697 = vsub.f32 %v641, %v2696
        %v2698 = vand.u32 %v2697, 4294901760
        %2699 = vmatmul.mubr.f32.gmra.mxu0 %v2698
        %v2700 = vpop.f32.mrf.mxu0
        %v2701 = vadd.f32 %v2167, %v2700
        %v2702 = vpop.f32.mrf.mxu0
        %2703 = vmatprep.mubr.f32.mxu0 0.0
        %v2704 = vand.u32 %v644, 4294901760
        %v2705 = vsub.f32 %v644, %v2704
        %v2706 = vand.u32 %v2705, 4294901760
        %2707 = vmatmul.mubr.f32.gmra.mxu0 %v2706
        %v2708 = vpop.f32.mrf.mxu0
        %v2709 = vadd.f32 %v2174, %v2708
        %v2710 = vpop.f32.mrf.mxu0
        %2711 = vmatprep.mubr.f32.mxu0 0.0
        %v2712 = vand.u32 %v647, 4294901760
        %v2713 = vsub.f32 %v647, %v2712
        %v2714 = vand.u32 %v2713, 4294901760
        %2715 = vmatmul.mubr.f32.gmra.mxu0 %v2714
        %v2716 = vpop.f32.mrf.mxu0
        %v2717 = vadd.f32 %v2181, %v2716
        %v2718 = vpop.f32.mrf.mxu0
        %2719 = vmatprep.mubr.f32.mxu0 0.0
        %v2720 = vand.u32 %v650, 4294901760
        %v2721 = vsub.f32 %v650, %v2720
        %v2722 = vand.u32 %v2721, 4294901760
        %2723 = vmatmul.mubr.f32.gmra.mxu0 %v2722
        %v2724 = vpop.f32.mrf.mxu0
        %v2725 = vadd.f32 %v2188, %v2724
        %v2726 = vpop.f32.mrf.mxu0
        %2727 = vmatprep.mubr.f32.mxu0 0.0
        %v2728 = vand.u32 %v653, 4294901760
        %v2729 = vsub.f32 %v653, %v2728
        %v2730 = vand.u32 %v2729, 4294901760
        %2731 = vmatmul.mubr.f32.gmra.mxu0 %v2730
        %v2732 = vpop.f32.mrf.mxu0
        %v2733 = vadd.f32 %v2195, %v2732
        %v2734 = vpop.f32.mrf.mxu0
        %2735 = vmatprep.mubr.f32.mxu0 0.0
        %v2736 = vand.u32 %v656, 4294901760
        %v2737 = vsub.f32 %v656, %v2736
        %v2738 = vand.u32 %v2737, 4294901760
        %2739 = vmatmul.mubr.f32.gmra.mxu0 %v2738
        %v2740 = vpop.f32.mrf.mxu0
        %v2741 = vadd.f32 %v2202, %v2740
        %v2742 = vpop.f32.mrf.mxu0
        %2743 = vmatprep.mubr.f32.mxu0 0.0
        %v2744 = vand.u32 %v659, 4294901760
        %v2745 = vsub.f32 %v659, %v2744
        %v2746 = vand.u32 %v2745, 4294901760
        %2747 = vmatmul.mubr.f32.gmra.mxu0 %v2746
        %v2748 = vpop.f32.mrf.mxu0
        %v2749 = vadd.f32 %v2209, %v2748
        %v2750 = vpop.f32.mrf.mxu0
        %2751 = vmatprep.mubr.f32.mxu0 0.0
        %v2752 = vand.u32 %v662, 4294901760
        %v2753 = vsub.f32 %v662, %v2752
        %v2754 = vand.u32 %v2753, 4294901760
        %2755 = vmatmul.mubr.f32.gmra.mxu0 %v2754
        %v2756 = vpop.f32.mrf.mxu0
        %v2757 = vadd.f32 %v2216, %v2756
        %v2758 = vpop.f32.mrf.mxu0
        %2759 = vmatprep.mubr.f32.mxu0 0.0
        %v2760 = vand.u32 %v665, 4294901760
        %v2761 = vsub.f32 %v665, %v2760
        %v2762 = vand.u32 %v2761, 4294901760
        %2763 = vmatmul.mubr.f32.gmra.mxu0 %v2762
        %v2764 = vpop.f32.mrf.mxu0
        %v2765 = vadd.f32 %v2223, %v2764
        %v2766 = vpop.f32.mrf.mxu0
        %2767 = vmatprep.mubr.f32.mxu0 0.0
        %v2768 = vand.u32 %v668, 4294901760
        %v2769 = vsub.f32 %v668, %v2768
        %v2770 = vand.u32 %v2769, 4294901760
        %2771 = vmatmul.mubr.f32.gmra.mxu0 %v2770
        %v2772 = vpop.f32.mrf.mxu0
        %v2773 = vadd.f32 %v2230, %v2772
        %v2774 = vpop.f32.mrf.mxu0
        %2775 = vmatprep.mubr.f32.mxu0 0.0
        %v2776 = vand.u32 %v671, 4294901760
        %v2777 = vsub.f32 %v671, %v2776
        %v2778 = vand.u32 %v2777, 4294901760
        %2779 = vmatmul.mubr.f32.gmra.mxu0 %v2778
        %v2780 = vpop.f32.mrf.mxu0
        %v2781 = vadd.f32 %v2237, %v2780
        %v2782 = vpop.f32.mrf.mxu0
        %2783 = vmatprep.mubr.f32.mxu0 0.0
        %v2784 = vand.u32 %v674, 4294901760
        %v2785 = vsub.f32 %v674, %v2784
        %v2786 = vand.u32 %v2785, 4294901760
        %2787 = vmatmul.mubr.f32.gmra.mxu0 %v2786
        %v2788 = vpop.f32.mrf.mxu0
        %v2789 = vadd.f32 %v2244, %v2788
        %v2790 = vpop.f32.mrf.mxu0
        %2791 = vmatprep.mubr.f32.mxu0 0.0
        %v2792 = vand.u32 %v677, 4294901760
        %v2793 = vsub.f32 %v677, %v2792
        %v2794 = vand.u32 %v2793, 4294901760
        %2795 = vmatmul.mubr.f32.gmra.mxu0 %v2794
        %v2796 = vpop.f32.mrf.mxu0
        %v2797 = vadd.f32 %v2251, %v2796
        %v2798 = vpop.f32.mrf.mxu0
        %2799 = vmatprep.mubr.f32.mxu0 0.0
        %v2800 = vand.u32 %v680, 4294901760
        %v2801 = vsub.f32 %v680, %v2800
        %v2802 = vand.u32 %v2801, 4294901760
        %2803 = vmatmul.mubr.f32.gmra.mxu0 %v2802
        %v2804 = vpop.f32.mrf.mxu0
        %v2805 = vadd.f32 %v2258, %v2804
        %v2806 = vpop.f32.mrf.mxu0
        %2807 = vmatprep.mubr.f32.mxu0 0.0
        %v2808 = vand.u32 %v683, 4294901760
        %v2809 = vsub.f32 %v683, %v2808
        %v2810 = vand.u32 %v2809, 4294901760
        %2811 = vmatmul.mubr.f32.gmra.mxu0 %v2810
        %v2812 = vpop.f32.mrf.mxu0
        %v2813 = vadd.f32 %v2265, %v2812
        %v2814 = vpop.f32.mrf.mxu0
        %2815 = vmatprep.mubr.f32.mxu0 0.0
        %v2816 = vand.u32 %v686, 4294901760
        %v2817 = vsub.f32 %v686, %v2816
        %v2818 = vand.u32 %v2817, 4294901760
        %2819 = vmatmul.mubr.f32.gmra.mxu0 %v2818
        %v2820 = vpop.f32.mrf.mxu0
        %v2821 = vadd.f32 %v2272, %v2820
        %v2822 = vpop.f32.mrf.mxu0
        %2823 = vmatprep.mubr.f32.mxu0 0.0
        %v2824 = vand.u32 %v689, 4294901760
        %v2825 = vsub.f32 %v689, %v2824
        %v2826 = vand.u32 %v2825, 4294901760
        %2827 = vmatmul.mubr.f32.gmra.mxu0 %v2826
        %v2828 = vpop.f32.mrf.mxu0
        %v2829 = vadd.f32 %v2279, %v2828
        %v2830 = vpop.f32.mrf.mxu0
        %2831 = vmatprep.mubr.f32.mxu0 0.0
        %v2832 = vand.u32 %v692, 4294901760
        %v2833 = vsub.f32 %v692, %v2832
        %v2834 = vand.u32 %v2833, 4294901760
        %2835 = vmatmul.mubr.f32.gmra.mxu0 %v2834
        %v2836 = vpop.f32.mrf.mxu0
        %v2837 = vadd.f32 %v2286, %v2836
        %v2838 = vpop.f32.mrf.mxu0
        %2839 = vmatprep.mubr.f32.mxu0 0.0
        %v2840 = vand.u32 %v695, 4294901760
        %v2841 = vsub.f32 %v695, %v2840
        %v2842 = vand.u32 %v2841, 4294901760
        %2843 = vmatmul.mubr.f32.gmra.mxu0 %v2842
        %v2844 = vpop.f32.mrf.mxu0
        %v2845 = vadd.f32 %v2293, %v2844
        %v2846 = vpop.f32.mrf.mxu0
        %2847 = vmatprep.mubr.f32.mxu0 0.0
        %v2848 = vand.u32 %v698, 4294901760
        %v2849 = vsub.f32 %v698, %v2848
        %v2850 = vand.u32 %v2849, 4294901760
        %2851 = vmatmul.mubr.f32.gmra.mxu0 %v2850
        %v2852 = vpop.f32.mrf.mxu0
        %v2853 = vadd.f32 %v2300, %v2852
        %v2854 = vpop.f32.mrf.mxu0
        %2855 = vmatprep.mubr.f32.mxu0 0.0
        %v2856 = vand.u32 %v701, 4294901760
        %v2857 = vsub.f32 %v701, %v2856
        %v2858 = vand.u32 %v2857, 4294901760
        %2859 = vmatmul.mubr.f32.gmra.mxu0 %v2858
        %v2860 = vpop.f32.mrf.mxu0
        %v2861 = vadd.f32 %v2307, %v2860
        %v2862 = vpop.f32.mrf.mxu0
        %2863 = vmatprep.mubr.f32.mxu0 0.0
        %v2864 = vand.u32 %v704, 4294901760
        %v2865 = vsub.f32 %v704, %v2864
        %v2866 = vand.u32 %v2865, 4294901760
        %2867 = vmatmul.mubr.f32.gmra.mxu0 %v2866
        %v2868 = vpop.f32.mrf.mxu0
        %v2869 = vadd.f32 %v2314, %v2868
        %v2870 = vpop.f32.mrf.mxu0
        %2871 = vmatprep.mubr.f32.mxu0 0.0
        %v2872 = vand.u32 %v707, 4294901760
        %v2873 = vsub.f32 %v707, %v2872
        %v2874 = vand.u32 %v2873, 4294901760
        %2875 = vmatmul.mubr.f32.gmra.mxu0 %v2874
        %v2876 = vpop.f32.mrf.mxu0
        %v2877 = vadd.f32 %v2321, %v2876
        %v2878 = vpop.f32.mrf.mxu0
        %2879 = vmatprep.mubr.f32.mxu0 0.0
        %v2880 = vand.u32 %v710, 4294901760
        %v2881 = vsub.f32 %v710, %v2880
        %v2882 = vand.u32 %v2881, 4294901760
        %2883 = vmatmul.mubr.f32.gmra.mxu0 %v2882
        %v2884 = vpop.f32.mrf.mxu0
        %v2885 = vadd.f32 %v2328, %v2884
        %v2886 = vpop.f32.mrf.mxu0
        %2887 = vmatprep.mubr.f32.mxu0 0.0
        %v2888 = vand.u32 %v713, 4294901760
        %v2889 = vsub.f32 %v713, %v2888
        %v2890 = vand.u32 %v2889, 4294901760
        %2891 = vmatmul.mubr.f32.gmra.mxu0 %v2890
        %v2892 = vpop.f32.mrf.mxu0
        %v2893 = vadd.f32 %v2335, %v2892
        %v2894 = vpop.f32.mrf.mxu0
        %2895 = vmatprep.mubr.f32.mxu0 0.0
        %v2896 = vand.u32 %v716, 4294901760
        %v2897 = vsub.f32 %v716, %v2896
        %v2898 = vand.u32 %v2897, 4294901760
        %2899 = vmatmul.mubr.f32.gmra.mxu0 %v2898
        %v2900 = vpop.f32.mrf.mxu0
        %v2901 = vadd.f32 %v2342, %v2900
        %v2902 = vpop.f32.mrf.mxu0
        %2903 = vmatprep.mubr.f32.mxu0 0.0
        %v2904 = vand.u32 %v719, 4294901760
        %v2905 = vsub.f32 %v719, %v2904
        %v2906 = vand.u32 %v2905, 4294901760
        %2907 = vmatmul.mubr.f32.gmra.mxu0 %v2906
        %v2908 = vpop.f32.mrf.mxu0
        %v2909 = vadd.f32 %v2349, %v2908
        %v2910 = vpop.f32.mrf.mxu0
        %2911 = vmatprep.mubr.f32.mxu0 0.0
        %v2912 = vand.u32 %v722, 4294901760
        %v2913 = vsub.f32 %v722, %v2912
        %v2914 = vand.u32 %v2913, 4294901760
        %2915 = vmatmul.mubr.f32.gmra.mxu0 %v2914
        %v2916 = vpop.f32.mrf.mxu0
        %v2917 = vadd.f32 %v2356, %v2916
        %v2918 = vpop.f32.mrf.mxu0
        %2919 = vmatprep.mubr.f32.mxu0 0.0
        %v2920 = vand.u32 %v725, 4294901760
        %v2921 = vsub.f32 %v725, %v2920
        %v2922 = vand.u32 %v2921, 4294901760
        %2923 = vmatmul.mubr.f32.gmra.mxu0 %v2922
        %v2924 = vpop.f32.mrf.mxu0
        %v2925 = vadd.f32 %v2363, %v2924
        %v2926 = vpop.f32.mrf.mxu0
        %2927 = vmatprep.mubr.f32.mxu0 0.0
        %v2928 = vand.u32 %v728, 4294901760
        %v2929 = vsub.f32 %v728, %v2928
        %v2930 = vand.u32 %v2929, 4294901760
        %2931 = vmatmul.mubr.f32.gmra.mxu0 %v2930
        %v2932 = vpop.f32.mrf.mxu0
        %v2933 = vadd.f32 %v2370, %v2932
        %v2934 = vpop.f32.mrf.mxu0
        %2935 = vmatprep.mubr.f32.mxu0 0.0
        %v2936 = vand.u32 %v731, 4294901760
        %v2937 = vsub.f32 %v731, %v2936
        %v2938 = vand.u32 %v2937, 4294901760
        %2939 = vmatmul.mubr.f32.gmra.mxu0 %v2938
        %v2940 = vpop.f32.mrf.mxu0
        %v2941 = vadd.f32 %v2377, %v2940
        %v2942 = vpop.f32.mrf.mxu0
        %2943 = vmatprep.mubr.f32.mxu0 0.0
        %v2944 = vand.u32 %v734, 4294901760
        %v2945 = vsub.f32 %v734, %v2944
        %v2946 = vand.u32 %v2945, 4294901760
        %2947 = vmatmul.mubr.f32.gmra.mxu0 %v2946
        %v2948 = vpop.f32.mrf.mxu0
        %v2949 = vadd.f32 %v2384, %v2948
        %v2950 = vpop.f32.mrf.mxu0
        %2951 = vmatprep.mubr.f32.mxu0 0.0
        %v2952 = vand.u32 %v737, 4294901760
        %v2953 = vsub.f32 %v737, %v2952
        %v2954 = vand.u32 %v2953, 4294901760
        %2955 = vmatmul.mubr.f32.gmra.mxu0 %v2954
        %v2956 = vpop.f32.mrf.mxu0
        %v2957 = vadd.f32 %v2391, %v2956
        %v2958 = vpop.f32.mrf.mxu0
        %2959 = vmatprep.mubr.f32.mxu0 0.0
        %v2960 = vand.u32 %v740, 4294901760
        %v2961 = vsub.f32 %v740, %v2960
        %v2962 = vand.u32 %v2961, 4294901760
        %2963 = vmatmul.mubr.f32.gmra.mxu0 %v2962
        %v2964 = vpop.f32.mrf.mxu0
        %v2965 = vadd.f32 %v2398, %v2964
        %v2966 = vpop.f32.mrf.mxu0
        %2967 = vmatprep.mubr.f32.mxu0 0.0
        %v2968 = vand.u32 %v743, 4294901760
        %v2969 = vsub.f32 %v743, %v2968
        %v2970 = vand.u32 %v2969, 4294901760
        %2971 = vmatmul.mubr.f32.gmra.mxu0 %v2970
        %v2972 = vpop.f32.mrf.mxu0
        %v2973 = vadd.f32 %v2405, %v2972
        %v2974 = vpop.f32.mrf.mxu0
        %2975 = vmatprep.mubr.f32.mxu0 0.0
        %v2976 = vand.u32 %v746, 4294901760
        %v2977 = vsub.f32 %v746, %v2976
        %v2978 = vand.u32 %v2977, 4294901760
        %2979 = vmatmul.mubr.f32.gmra.mxu0 %v2978
        %v2980 = vpop.f32.mrf.mxu0
        %v2981 = vadd.f32 %v2412, %v2980
        %v2982 = vpop.f32.mrf.mxu0
        %2983 = vmatprep.mubr.f32.mxu0 0.0
        %v2984 = vand.u32 %v749, 4294901760
        %v2985 = vsub.f32 %v749, %v2984
        %v2986 = vand.u32 %v2985, 4294901760
        %2987 = vmatmul.mubr.f32.gmra.mxu0 %v2986
        %v2988 = vpop.f32.mrf.mxu0
        %v2989 = vadd.f32 %v2419, %v2988
        %v2990 = vpop.f32.mrf.mxu0
        %2991 = vmatprep.mubr.f32.mxu0 0.0
        %v2992 = vand.u32 %v752, 4294901760
        %v2993 = vsub.f32 %v752, %v2992
        %v2994 = vand.u32 %v2993, 4294901760
        %2995 = vmatmul.mubr.f32.gmra.mxu0 %v2994
        %v2996 = vpop.f32.mrf.mxu0
        %v2997 = vadd.f32 %v2426, %v2996
        %v2998 = vpop.f32.mrf.mxu0
        %2999 = vmatprep.mubr.f32.mxu0 0.0
        %v3000 = vand.u32 %v755, 4294901760
        %v3001 = vsub.f32 %v755, %v3000
        %v3002 = vand.u32 %v3001, 4294901760
        %3003 = vmatmul.mubr.f32.gmra.mxu0 %v3002
        %v3004 = vpop.f32.mrf.mxu0
        %v3005 = vadd.f32 %v2433, %v3004
        %v3006 = vpop.f32.mrf.mxu0
        %3007 = vmatprep.mubr.f32.mxu0 0.0
        %v3008 = vand.u32 %v758, 4294901760
        %v3009 = vsub.f32 %v758, %v3008
        %v3010 = vand.u32 %v3009, 4294901760
        %3011 = vmatmul.mubr.f32.gmra.mxu0 %v3010
        %v3012 = vpop.f32.mrf.mxu0
        %v3013 = vadd.f32 %v2440, %v3012
        %v3014 = vpop.f32.mrf.mxu0
        %3015 = vmatprep.mubr.f32.mxu0 0.0
        %v3016 = vand.u32 %v761, 4294901760
        %v3017 = vsub.f32 %v761, %v3016
        %v3018 = vand.u32 %v3017, 4294901760
        %3019 = vmatmul.mubr.f32.gmra.mxu0 %v3018
        %v3020 = vpop.f32.mrf.mxu0
        %v3021 = vadd.f32 %v2447, %v3020
        %v3022 = vpop.f32.mrf.mxu0
        %3023 = vmatprep.mubr.f32.mxu0 0.0
        %v3024 = vand.u32 %v764, 4294901760
        %v3025 = vsub.f32 %v764, %v3024
        %v3026 = vand.u32 %v3025, 4294901760
        %3027 = vmatmul.mubr.f32.gmra.mxu0 %v3026
        %v3028 = vpop.f32.mrf.mxu0
        %v3029 = vadd.f32 %v2454, %v3028
        %v3030 = vpop.f32.mrf.mxu0
        %3031 = vmatprep.mubr.f32.mxu0 0.0
        %v3032 = vand.u32 %v767, 4294901760
        %v3033 = vsub.f32 %v767, %v3032
        %v3034 = vand.u32 %v3033, 4294901760
        %3035 = vmatmul.mubr.f32.gmra.mxu0 %v3034
        %v3036 = vpop.f32.mrf.mxu0
        %v3037 = vadd.f32 %v2461, %v3036
        %v3038 = vpop.f32.mrf.mxu0
        %3039 = vmatprep.mubr.f32.mxu0 0.0
        %v3040 = vand.u32 %v770, 4294901760
        %v3041 = vsub.f32 %v770, %v3040
        %v3042 = vand.u32 %v3041, 4294901760
        %3043 = vmatmul.mubr.f32.gmra.mxu0 %v3042
        %v3044 = vpop.f32.mrf.mxu0
        %v3045 = vadd.f32 %v2468, %v3044
        %v3046 = vpop.f32.mrf.mxu0
        %3047 = vmatprep.mubr.f32.mxu0 0.0
        %v3048 = vand.u32 %v773, 4294901760
        %v3049 = vsub.f32 %v773, %v3048
        %v3050 = vand.u32 %v3049, 4294901760
        %3051 = vmatmul.mubr.f32.gmra.mxu0 %v3050
        %v3052 = vpop.f32.mrf.mxu0
        %v3053 = vadd.f32 %v2475, %v3052
        %v3054 = vpop.f32.mrf.mxu0
        %3055 = vmatprep.mubr.f32.mxu0 0.0
        %v3056 = vand.u32 %v776, 4294901760
        %v3057 = vsub.f32 %v776, %v3056
        %v3058 = vand.u32 %v3057, 4294901760
        %3059 = vmatmul.mubr.f32.gmra.mxu0 %v3058
        %v3060 = vpop.f32.mrf.mxu0
        %v3061 = vadd.f32 %v2482, %v3060
        %v3062 = vpop.f32.mrf.mxu0
        %3063 = vmatprep.mubr.f32.mxu0 0.0
        %v3064 = vand.u32 %v779, 4294901760
        %v3065 = vsub.f32 %v779, %v3064
        %v3066 = vand.u32 %v3065, 4294901760
        %3067 = vmatmul.mubr.f32.gmra.mxu0 %v3066
        %v3068 = vpop.f32.mrf.mxu0
        %v3069 = vadd.f32 %v2489, %v3068
        %v3070 = vpop.f32.mrf.mxu0
        %3071 = vmatprep.mubr.f32.mxu0 0.0
        %v3072 = vand.u32 %v782, 4294901760
        %v3073 = vsub.f32 %v782, %v3072
        %v3074 = vand.u32 %v3073, 4294901760
        %3075 = vmatmul.mubr.f32.gmra.mxu0 %v3074
        %v3076 = vpop.f32.mrf.mxu0
        %v3077 = vadd.f32 %v2496, %v3076
        %v3078 = vpop.f32.mrf.mxu0
        %3079 = vmatprep.mubr.f32.mxu0 0.0
        %v3080 = vand.u32 %v785, 4294901760
        %v3081 = vsub.f32 %v785, %v3080
        %v3082 = vand.u32 %v3081, 4294901760
        %3083 = vmatmul.mubr.f32.gmra.mxu0 %v3082
        %v3084 = vpop.f32.mrf.mxu0
        %v3085 = vadd.f32 %v2503, %v3084
        %v3086 = vpop.f32.mrf.mxu0
        %3087 = vmatprep.mubr.f32.mxu0 0.0
        %v3088 = vand.u32 %v788, 4294901760
        %v3089 = vsub.f32 %v788, %v3088
        %v3090 = vand.u32 %v3089, 4294901760
        %3091 = vmatmul.mubr.f32.gmra.mxu0 %v3090
        %v3092 = vpop.f32.mrf.mxu0
        %v3093 = vadd.f32 %v2510, %v3092
        %v3094 = vpop.f32.mrf.mxu0
        %3095 = vmatprep.mubr.f32.mxu0 0.0
        %v3096 = vand.u32 %v791, 4294901760
        %v3097 = vsub.f32 %v791, %v3096
        %v3098 = vand.u32 %v3097, 4294901760
        %3099 = vmatmul.mubr.f32.gmra.mxu0 %v3098
        %v3100 = vpop.f32.mrf.mxu0
        %v3101 = vadd.f32 %v2517, %v3100
        %v3102 = vpop.f32.mrf.mxu0
        %3103 = vmatprep.mubr.f32.mxu0 0.0
        %v3104 = vand.u32 %v794, 4294901760
        %v3105 = vsub.f32 %v794, %v3104
        %v3106 = vand.u32 %v3105, 4294901760
        %3107 = vmatmul.mubr.f32.gmra.mxu0 %v3106
        %v3108 = vpop.f32.mrf.mxu0
        %v3109 = vadd.f32 %v2524, %v3108
        %v3110 = vpop.f32.mrf.mxu0
        %3111 = vdwg.mxu0
        %3112 = vmatprep.subr.mxu0 0.0
        %3113 = vmatpush1.msra.mxu0 0.0
        %3114 = vmatprep.subr.mxu0 0.0
        %3115 = vmatpush1.msra.mxu0 0.0
        %3116 = vmatprep.subr.mxu0 0.0
        %3117 = vmatpush1.msra.mxu0 0.0
        %3118 = vmatprep.subr.mxu0 0.0
        %3119 = vmatpush1.msra.mxu0 0.0
        %3120 = vmatprep.subr.mxu0 0.0
        %3121 = vmatpush1.msra.mxu0 0.0
        %3122 = vmatprep.subr.mxu0 0.0
        %3123 = vmatpush1.msra.mxu0 0.0
        %3124 = vmatprep.subr.mxu0 0.0
        %3125 = vmatpush1.msra.mxu0 0.0
        %3126 = vmatprep.subr.mxu0 0.0
        %3127 = vmatpush1.msra.mxu0 0.0
        %3128 = vmatprep.subr.mxu0 0.0
        %v3129 = vand.u32 %v602, 4294901760
        %v3130 = vsub.f32 %v602, %v3129
        %v3131 = vand.u32 %v3130, 4294901760
        %3132 = vmatpush1.msra.mxu0 %v3131
        %3133 = vmatprep.subr.mxu0 0.0
        %v3134 = vand.u32 %v601, 4294901760
        %v3135 = vsub.f32 %v601, %v3134
        %v3136 = vand.u32 %v3135, 4294901760
        %3137 = vmatpush1.msra.mxu0 %v3136
        %3138 = vmatprep.subr.mxu0 0.0
        %v3139 = vand.u32 %v600, 4294901760
        %v3140 = vsub.f32 %v600, %v3139
        %v3141 = vand.u32 %v3140, 4294901760
        %3142 = vmatpush1.msra.mxu0 %v3141
        %3143 = vmatprep.subr.mxu0 0.0
        %v3144 = vand.u32 %v599, 4294901760
        %v3145 = vsub.f32 %v599, %v3144
        %v3146 = vand.u32 %v3145, 4294901760
        %3147 = vmatpush1.msra.mxu0 %v3146
        %3148 = vmatprep.subr.mxu0 0.0
        %v3149 = vand.u32 %v598, 4294901760
        %v3150 = vsub.f32 %v598, %v3149
        %v3151 = vand.u32 %v3150, 4294901760
        %3152 = vmatpush1.msra.mxu0 %v3151
        %3153 = vmatprep.subr.mxu0 0.0
        %v3154 = vand.u32 %v597, 4294901760
        %v3155 = vsub.f32 %v597, %v3154
        %v3156 = vand.u32 %v3155, 4294901760
        %3157 = vmatpush1.msra.mxu0 %v3156
        %3158 = vmatprep.subr.mxu0 0.0
        %v3159 = vand.u32 %v596, 4294901760
        %v3160 = vsub.f32 %v596, %v3159
        %v3161 = vand.u32 %v3160, 4294901760
        %3162 = vmatpush1.msra.mxu0 %v3161
        %3163 = vmatprep.subr.mxu0 0.0
        %v3164 = vand.u32 %v595, 4294901760
        %v3165 = vsub.f32 %v595, %v3164
        %v3166 = vand.u32 %v3165, 4294901760
        %3167 = vmatpush1.msra.mxu0 %v3166
        %3168 = vmatprep.subr.mxu0 0.0
        %3169 = vmatpush2.msra.mxu0 0.0
        %3170 = vmatprep.subr.mxu0 0.0
        %3171 = vmatpush2.msra.mxu0 0.0
        %3172 = vmatprep.subr.mxu0 0.0
        %3173 = vmatpush2.msra.mxu0 0.0
        %3174 = vmatprep.subr.mxu0 0.0
        %3175 = vmatpush2.msra.mxu0 0.0
        %3176 = vmatprep.subr.mxu0 0.0
        %3177 = vmatpush2.msra.mxu0 0.0
        %3178 = vmatprep.subr.mxu0 0.0
        %3179 = vmatpush2.msra.mxu0 0.0
        %3180 = vmatprep.subr.mxu0 0.0
        %3181 = vmatpush2.msra.mxu0 0.0
        %3182 = vmatprep.subr.mxu0 0.0
        %3183 = vmatpush2.msra.mxu0 0.0
        %3184 = vmatprep.subr.mxu0 0.0
        %3185 = vmatpush2.msra.mxu0 0.0
        %3186 = vmatprep.subr.mxu0 0.0
        %3187 = vmatpush2.msra.mxu0 0.0
        %3188 = vmatprep.subr.mxu0 0.0
        %3189 = vmatpush2.msra.mxu0 0.0
        %3190 = vmatprep.subr.mxu0 0.0
        %3191 = vmatpush2.msra.mxu0 0.0
        %3192 = vmatprep.subr.mxu0 0.0
        %3193 = vmatpush2.msra.mxu0 0.0
        %3194 = vmatprep.subr.mxu0 0.0
        %3195 = vmatpush2.msra.mxu0 0.0
        %3196 = vmatprep.subr.mxu0 0.0
        %3197 = vmatpush2.msra.mxu0 0.0
        %3198 = vmatprep.subr.mxu0 0.0
        %3199 = vmatpush2.msra.mxu0 0.0
        %3200 = vmatprep.mubr.f32.mxu0 0.0
        %v3201 = vand.u32 %v605, 4294901760
        %3202 = vmatmul.mubr.f32.gmra.mxu0 %v3201
        %v3203 = vpop.f32.mrf.mxu0
        %v3204 = vadd.f32 %v2605, %v3203
        %v3205 = vpop.f32.mrf.mxu0
        %3206 = vmatprep.mubr.f32.mxu0 0.0
        %v3207 = vand.u32 %v608, 4294901760
        %3208 = vmatmul.mubr.f32.gmra.mxu0 %v3207
        %v3209 = vpop.f32.mrf.mxu0
        %v3210 = vadd.f32 %v2613, %v3209
        %v3211 = vpop.f32.mrf.mxu0
        %3212 = vmatprep.mubr.f32.mxu0 0.0
        %v3213 = vand.u32 %v611, 4294901760
        %3214 = vmatmul.mubr.f32.gmra.mxu0 %v3213
        %v3215 = vpop.f32.mrf.mxu0
        %v3216 = vadd.f32 %v2621, %v3215
        %v3217 = vpop.f32.mrf.mxu0
        %3218 = vmatprep.mubr.f32.mxu0 0.0
        %v3219 = vand.u32 %v614, 4294901760
        %3220 = vmatmul.mubr.f32.gmra.mxu0 %v3219
        %v3221 = vpop.f32.mrf.mxu0
        %v3222 = vadd.f32 %v2629, %v3221
        %v3223 = vpop.f32.mrf.mxu0
        %3224 = vmatprep.mubr.f32.mxu0 0.0
        %v3225 = vand.u32 %v617, 4294901760
        %3226 = vmatmul.mubr.f32.gmra.mxu0 %v3225
        %v3227 = vpop.f32.mrf.mxu0
        %v3228 = vadd.f32 %v2637, %v3227
        %v3229 = vpop.f32.mrf.mxu0
        %3230 = vmatprep.mubr.f32.mxu0 0.0
        %v3231 = vand.u32 %v620, 4294901760
        %3232 = vmatmul.mubr.f32.gmra.mxu0 %v3231
        %v3233 = vpop.f32.mrf.mxu0
        %v3234 = vadd.f32 %v2645, %v3233
        %v3235 = vpop.f32.mrf.mxu0
        %3236 = vmatprep.mubr.f32.mxu0 0.0
        %v3237 = vand.u32 %v623, 4294901760
        %3238 = vmatmul.mubr.f32.gmra.mxu0 %v3237
        %v3239 = vpop.f32.mrf.mxu0
        %v3240 = vadd.f32 %v2653, %v3239
        %v3241 = vpop.f32.mrf.mxu0
        %3242 = vmatprep.mubr.f32.mxu0 0.0
        %v3243 = vand.u32 %v626, 4294901760
        %3244 = vmatmul.mubr.f32.gmra.mxu0 %v3243
        %v3245 = vpop.f32.mrf.mxu0
        %v3246 = vadd.f32 %v2661, %v3245
        %v3247 = vpop.f32.mrf.mxu0
        %3248 = vmatprep.mubr.f32.mxu0 0.0
        %v3249 = vand.u32 %v629, 4294901760
        %3250 = vmatmul.mubr.f32.gmra.mxu0 %v3249
        %v3251 = vpop.f32.mrf.mxu0
        %v3252 = vadd.f32 %v2669, %v3251
        %v3253 = vpop.f32.mrf.mxu0
        %3254 = vmatprep.mubr.f32.mxu0 0.0
        %v3255 = vand.u32 %v632, 4294901760
        %3256 = vmatmul.mubr.f32.gmra.mxu0 %v3255
        %v3257 = vpop.f32.mrf.mxu0
        %v3258 = vadd.f32 %v2677, %v3257
        %v3259 = vpop.f32.mrf.mxu0
        %3260 = vmatprep.mubr.f32.mxu0 0.0
        %v3261 = vand.u32 %v635, 4294901760
        %3262 = vmatmul.mubr.f32.gmra.mxu0 %v3261
        %v3263 = vpop.f32.mrf.mxu0
        %v3264 = vadd.f32 %v2685, %v3263
        %v3265 = vpop.f32.mrf.mxu0
        %3266 = vmatprep.mubr.f32.mxu0 0.0
        %v3267 = vand.u32 %v638, 4294901760
        %3268 = vmatmul.mubr.f32.gmra.mxu0 %v3267
        %v3269 = vpop.f32.mrf.mxu0
        %v3270 = vadd.f32 %v2693, %v3269
        %v3271 = vpop.f32.mrf.mxu0
        %3272 = vmatprep.mubr.f32.mxu0 0.0
        %v3273 = vand.u32 %v641, 4294901760
        %3274 = vmatmul.mubr.f32.gmra.mxu0 %v3273
        %v3275 = vpop.f32.mrf.mxu0
        %v3276 = vadd.f32 %v2701, %v3275
        %v3277 = vpop.f32.mrf.mxu0
        %3278 = vmatprep.mubr.f32.mxu0 0.0
        %v3279 = vand.u32 %v644, 4294901760
        %3280 = vmatmul.mubr.f32.gmra.mxu0 %v3279
        %v3281 = vpop.f32.mrf.mxu0
        %v3282 = vadd.f32 %v2709, %v3281
        %v3283 = vpop.f32.mrf.mxu0
        %3284 = vmatprep.mubr.f32.mxu0 0.0
        %v3285 = vand.u32 %v647, 4294901760
        %3286 = vmatmul.mubr.f32.gmra.mxu0 %v3285
        %v3287 = vpop.f32.mrf.mxu0
        %v3288 = vadd.f32 %v2717, %v3287
        %v3289 = vpop.f32.mrf.mxu0
        %3290 = vmatprep.mubr.f32.mxu0 0.0
        %v3291 = vand.u32 %v650, 4294901760
        %3292 = vmatmul.mubr.f32.gmra.mxu0 %v3291
        %v3293 = vpop.f32.mrf.mxu0
        %v3294 = vadd.f32 %v2725, %v3293
        %v3295 = vpop.f32.mrf.mxu0
        %3296 = vmatprep.mubr.f32.mxu0 0.0
        %v3297 = vand.u32 %v653, 4294901760
        %3298 = vmatmul.mubr.f32.gmra.mxu0 %v3297
        %v3299 = vpop.f32.mrf.mxu0
        %v3300 = vadd.f32 %v2733, %v3299
        %v3301 = vpop.f32.mrf.mxu0
        %3302 = vmatprep.mubr.f32.mxu0 0.0
        %v3303 = vand.u32 %v656, 4294901760
        %3304 = vmatmul.mubr.f32.gmra.mxu0 %v3303
        %v3305 = vpop.f32.mrf.mxu0
        %v3306 = vadd.f32 %v2741, %v3305
        %v3307 = vpop.f32.mrf.mxu0
        %3308 = vmatprep.mubr.f32.mxu0 0.0
        %v3309 = vand.u32 %v659, 4294901760
        %3310 = vmatmul.mubr.f32.gmra.mxu0 %v3309
        %v3311 = vpop.f32.mrf.mxu0
        %v3312 = vadd.f32 %v2749, %v3311
        %v3313 = vpop.f32.mrf.mxu0
        %3314 = vmatprep.mubr.f32.mxu0 0.0
        %v3315 = vand.u32 %v662, 4294901760
        %3316 = vmatmul.mubr.f32.gmra.mxu0 %v3315
        %v3317 = vpop.f32.mrf.mxu0
        %v3318 = vadd.f32 %v2757, %v3317
        %v3319 = vpop.f32.mrf.mxu0
        %3320 = vmatprep.mubr.f32.mxu0 0.0
        %v3321 = vand.u32 %v665, 4294901760
        %3322 = vmatmul.mubr.f32.gmra.mxu0 %v3321
        %v3323 = vpop.f32.mrf.mxu0
        %v3324 = vadd.f32 %v2765, %v3323
        %v3325 = vpop.f32.mrf.mxu0
        %3326 = vmatprep.mubr.f32.mxu0 0.0
        %v3327 = vand.u32 %v668, 4294901760
        %3328 = vmatmul.mubr.f32.gmra.mxu0 %v3327
        %v3329 = vpop.f32.mrf.mxu0
        %v3330 = vadd.f32 %v2773, %v3329
        %v3331 = vpop.f32.mrf.mxu0
        %3332 = vmatprep.mubr.f32.mxu0 0.0
        %v3333 = vand.u32 %v671, 4294901760
        %3334 = vmatmul.mubr.f32.gmra.mxu0 %v3333
        %v3335 = vpop.f32.mrf.mxu0
        %v3336 = vadd.f32 %v2781, %v3335
        %v3337 = vpop.f32.mrf.mxu0
        %3338 = vmatprep.mubr.f32.mxu0 0.0
        %v3339 = vand.u32 %v674, 4294901760
        %3340 = vmatmul.mubr.f32.gmra.mxu0 %v3339
        %v3341 = vpop.f32.mrf.mxu0
        %v3342 = vadd.f32 %v2789, %v3341
        %v3343 = vpop.f32.mrf.mxu0
        %3344 = vmatprep.mubr.f32.mxu0 0.0
        %v3345 = vand.u32 %v677, 4294901760
        %3346 = vmatmul.mubr.f32.gmra.mxu0 %v3345
        %v3347 = vpop.f32.mrf.mxu0
        %v3348 = vadd.f32 %v2797, %v3347
        %v3349 = vpop.f32.mrf.mxu0
        %3350 = vmatprep.mubr.f32.mxu0 0.0
        %v3351 = vand.u32 %v680, 4294901760
        %3352 = vmatmul.mubr.f32.gmra.mxu0 %v3351
        %v3353 = vpop.f32.mrf.mxu0
        %v3354 = vadd.f32 %v2805, %v3353
        %v3355 = vpop.f32.mrf.mxu0
        %3356 = vmatprep.mubr.f32.mxu0 0.0
        %v3357 = vand.u32 %v683, 4294901760
        %3358 = vmatmul.mubr.f32.gmra.mxu0 %v3357
        %v3359 = vpop.f32.mrf.mxu0
        %v3360 = vadd.f32 %v2813, %v3359
        %v3361 = vpop.f32.mrf.mxu0
        %3362 = vmatprep.mubr.f32.mxu0 0.0
        %v3363 = vand.u32 %v686, 4294901760
        %3364 = vmatmul.mubr.f32.gmra.mxu0 %v3363
        %v3365 = vpop.f32.mrf.mxu0
        %v3366 = vadd.f32 %v2821, %v3365
        %v3367 = vpop.f32.mrf.mxu0
        %3368 = vmatprep.mubr.f32.mxu0 0.0
        %v3369 = vand.u32 %v689, 4294901760
        %3370 = vmatmul.mubr.f32.gmra.mxu0 %v3369
        %v3371 = vpop.f32.mrf.mxu0
        %v3372 = vadd.f32 %v2829, %v3371
        %v3373 = vpop.f32.mrf.mxu0
        %3374 = vmatprep.mubr.f32.mxu0 0.0
        %v3375 = vand.u32 %v692, 4294901760
        %3376 = vmatmul.mubr.f32.gmra.mxu0 %v3375
        %v3377 = vpop.f32.mrf.mxu0
        %v3378 = vadd.f32 %v2837, %v3377
        %v3379 = vpop.f32.mrf.mxu0
        %3380 = vmatprep.mubr.f32.mxu0 0.0
        %v3381 = vand.u32 %v695, 4294901760
        %3382 = vmatmul.mubr.f32.gmra.mxu0 %v3381
        %v3383 = vpop.f32.mrf.mxu0
        %v3384 = vadd.f32 %v2845, %v3383
        %v3385 = vpop.f32.mrf.mxu0
        %3386 = vmatprep.mubr.f32.mxu0 0.0
        %v3387 = vand.u32 %v698, 4294901760
        %3388 = vmatmul.mubr.f32.gmra.mxu0 %v3387
        %v3389 = vpop.f32.mrf.mxu0
        %v3390 = vadd.f32 %v2853, %v3389
        %v3391 = vpop.f32.mrf.mxu0
        %3392 = vmatprep.mubr.f32.mxu0 0.0
        %v3393 = vand.u32 %v701, 4294901760
        %3394 = vmatmul.mubr.f32.gmra.mxu0 %v3393
        %v3395 = vpop.f32.mrf.mxu0
        %v3396 = vadd.f32 %v2861, %v3395
        %v3397 = vpop.f32.mrf.mxu0
        %3398 = vmatprep.mubr.f32.mxu0 0.0
        %v3399 = vand.u32 %v704, 4294901760
        %3400 = vmatmul.mubr.f32.gmra.mxu0 %v3399
        %v3401 = vpop.f32.mrf.mxu0
        %v3402 = vadd.f32 %v2869, %v3401
        %v3403 = vpop.f32.mrf.mxu0
        %3404 = vmatprep.mubr.f32.mxu0 0.0
        %v3405 = vand.u32 %v707, 4294901760
        %3406 = vmatmul.mubr.f32.gmra.mxu0 %v3405
        %v3407 = vpop.f32.mrf.mxu0
        %v3408 = vadd.f32 %v2877, %v3407
        %v3409 = vpop.f32.mrf.mxu0
        %3410 = vmatprep.mubr.f32.mxu0 0.0
        %v3411 = vand.u32 %v710, 4294901760
        %3412 = vmatmul.mubr.f32.gmra.mxu0 %v3411
        %v3413 = vpop.f32.mrf.mxu0
        %v3414 = vadd.f32 %v2885, %v3413
        %v3415 = vpop.f32.mrf.mxu0
        %3416 = vmatprep.mubr.f32.mxu0 0.0
        %v3417 = vand.u32 %v713, 4294901760
        %3418 = vmatmul.mubr.f32.gmra.mxu0 %v3417
        %v3419 = vpop.f32.mrf.mxu0
        %v3420 = vadd.f32 %v2893, %v3419
        %v3421 = vpop.f32.mrf.mxu0
        %3422 = vmatprep.mubr.f32.mxu0 0.0
        %v3423 = vand.u32 %v716, 4294901760
        %3424 = vmatmul.mubr.f32.gmra.mxu0 %v3423
        %v3425 = vpop.f32.mrf.mxu0
        %v3426 = vadd.f32 %v2901, %v3425
        %v3427 = vpop.f32.mrf.mxu0
        %3428 = vmatprep.mubr.f32.mxu0 0.0
        %v3429 = vand.u32 %v719, 4294901760
        %3430 = vmatmul.mubr.f32.gmra.mxu0 %v3429
        %v3431 = vpop.f32.mrf.mxu0
        %v3432 = vadd.f32 %v2909, %v3431
        %v3433 = vpop.f32.mrf.mxu0
        %3434 = vmatprep.mubr.f32.mxu0 0.0
        %v3435 = vand.u32 %v722, 4294901760
        %3436 = vmatmul.mubr.f32.gmra.mxu0 %v3435
        %v3437 = vpop.f32.mrf.mxu0
        %v3438 = vadd.f32 %v2917, %v3437
        %v3439 = vpop.f32.mrf.mxu0
        %3440 = vmatprep.mubr.f32.mxu0 0.0
        %v3441 = vand.u32 %v725, 4294901760
        %3442 = vmatmul.mubr.f32.gmra.mxu0 %v3441
        %v3443 = vpop.f32.mrf.mxu0
        %v3444 = vadd.f32 %v2925, %v3443
        %v3445 = vpop.f32.mrf.mxu0
        %3446 = vmatprep.mubr.f32.mxu0 0.0
        %v3447 = vand.u32 %v728, 4294901760
        %3448 = vmatmul.mubr.f32.gmra.mxu0 %v3447
        %v3449 = vpop.f32.mrf.mxu0
        %v3450 = vadd.f32 %v2933, %v3449
        %v3451 = vpop.f32.mrf.mxu0
        %3452 = vmatprep.mubr.f32.mxu0 0.0
        %v3453 = vand.u32 %v731, 4294901760
        %3454 = vmatmul.mubr.f32.gmra.mxu0 %v3453
        %v3455 = vpop.f32.mrf.mxu0
        %v3456 = vadd.f32 %v2941, %v3455
        %v3457 = vpop.f32.mrf.mxu0
        %3458 = vmatprep.mubr.f32.mxu0 0.0
        %v3459 = vand.u32 %v734, 4294901760
        %3460 = vmatmul.mubr.f32.gmra.mxu0 %v3459
        %v3461 = vpop.f32.mrf.mxu0
        %v3462 = vadd.f32 %v2949, %v3461
        %v3463 = vpop.f32.mrf.mxu0
        %3464 = vmatprep.mubr.f32.mxu0 0.0
        %v3465 = vand.u32 %v737, 4294901760
        %3466 = vmatmul.mubr.f32.gmra.mxu0 %v3465
        %v3467 = vpop.f32.mrf.mxu0
        %v3468 = vadd.f32 %v2957, %v3467
        %v3469 = vpop.f32.mrf.mxu0
        %3470 = vmatprep.mubr.f32.mxu0 0.0
        %v3471 = vand.u32 %v740, 4294901760
        %3472 = vmatmul.mubr.f32.gmra.mxu0 %v3471
        %v3473 = vpop.f32.mrf.mxu0
        %v3474 = vadd.f32 %v2965, %v3473
        %v3475 = vpop.f32.mrf.mxu0
        %3476 = vmatprep.mubr.f32.mxu0 0.0
        %v3477 = vand.u32 %v743, 4294901760
        %3478 = vmatmul.mubr.f32.gmra.mxu0 %v3477
        %v3479 = vpop.f32.mrf.mxu0
        %v3480 = vadd.f32 %v2973, %v3479
        %v3481 = vpop.f32.mrf.mxu0
        %3482 = vmatprep.mubr.f32.mxu0 0.0
        %v3483 = vand.u32 %v746, 4294901760
        %3484 = vmatmul.mubr.f32.gmra.mxu0 %v3483
        %v3485 = vpop.f32.mrf.mxu0
        %v3486 = vadd.f32 %v2981, %v3485
        %v3487 = vpop.f32.mrf.mxu0
        %3488 = vmatprep.mubr.f32.mxu0 0.0
        %v3489 = vand.u32 %v749, 4294901760
        %3490 = vmatmul.mubr.f32.gmra.mxu0 %v3489
        %v3491 = vpop.f32.mrf.mxu0
        %v3492 = vadd.f32 %v2989, %v3491
        %v3493 = vpop.f32.mrf.mxu0
        %3494 = vmatprep.mubr.f32.mxu0 0.0
        %v3495 = vand.u32 %v752, 4294901760
        %3496 = vmatmul.mubr.f32.gmra.mxu0 %v3495
        %v3497 = vpop.f32.mrf.mxu0
        %v3498 = vadd.f32 %v2997, %v3497
        %v3499 = vpop.f32.mrf.mxu0
        %3500 = vmatprep.mubr.f32.mxu0 0.0
        %v3501 = vand.u32 %v755, 4294901760
        %3502 = vmatmul.mubr.f32.gmra.mxu0 %v3501
        %v3503 = vpop.f32.mrf.mxu0
        %v3504 = vadd.f32 %v3005, %v3503
        %v3505 = vpop.f32.mrf.mxu0
        %3506 = vmatprep.mubr.f32.mxu0 0.0
        %v3507 = vand.u32 %v758, 4294901760
        %3508 = vmatmul.mubr.f32.gmra.mxu0 %v3507
        %v3509 = vpop.f32.mrf.mxu0
        %v3510 = vadd.f32 %v3013, %v3509
        %v3511 = vpop.f32.mrf.mxu0
        %3512 = vmatprep.mubr.f32.mxu0 0.0
        %v3513 = vand.u32 %v761, 4294901760
        %3514 = vmatmul.mubr.f32.gmra.mxu0 %v3513
        %v3515 = vpop.f32.mrf.mxu0
        %v3516 = vadd.f32 %v3021, %v3515
        %v3517 = vpop.f32.mrf.mxu0
        %3518 = vmatprep.mubr.f32.mxu0 0.0
        %v3519 = vand.u32 %v764, 4294901760
        %3520 = vmatmul.mubr.f32.gmra.mxu0 %v3519
        %v3521 = vpop.f32.mrf.mxu0
        %v3522 = vadd.f32 %v3029, %v3521
        %v3523 = vpop.f32.mrf.mxu0
        %3524 = vmatprep.mubr.f32.mxu0 0.0
        %v3525 = vand.u32 %v767, 4294901760
        %3526 = vmatmul.mubr.f32.gmra.mxu0 %v3525
        %v3527 = vpop.f32.mrf.mxu0
        %v3528 = vadd.f32 %v3037, %v3527
        %v3529 = vpop.f32.mrf.mxu0
        %3530 = vmatprep.mubr.f32.mxu0 0.0
        %v3531 = vand.u32 %v770, 4294901760
        %3532 = vmatmul.mubr.f32.gmra.mxu0 %v3531
        %v3533 = vpop.f32.mrf.mxu0
        %v3534 = vadd.f32 %v3045, %v3533
        %v3535 = vpop.f32.mrf.mxu0
        %3536 = vmatprep.mubr.f32.mxu0 0.0
        %v3537 = vand.u32 %v773, 4294901760
        %3538 = vmatmul.mubr.f32.gmra.mxu0 %v3537
        %v3539 = vpop.f32.mrf.mxu0
        %v3540 = vadd.f32 %v3053, %v3539
        %v3541 = vpop.f32.mrf.mxu0
        %3542 = vmatprep.mubr.f32.mxu0 0.0
        %v3543 = vand.u32 %v776, 4294901760
        %3544 = vmatmul.mubr.f32.gmra.mxu0 %v3543
        %v3545 = vpop.f32.mrf.mxu0
        %v3546 = vadd.f32 %v3061, %v3545
        %v3547 = vpop.f32.mrf.mxu0
        %3548 = vmatprep.mubr.f32.mxu0 0.0
        %v3549 = vand.u32 %v779, 4294901760
        %3550 = vmatmul.mubr.f32.gmra.mxu0 %v3549
        %v3551 = vpop.f32.mrf.mxu0
        %v3552 = vadd.f32 %v3069, %v3551
        %v3553 = vpop.f32.mrf.mxu0
        %3554 = vmatprep.mubr.f32.mxu0 0.0
        %v3555 = vand.u32 %v782, 4294901760
        %3556 = vmatmul.mubr.f32.gmra.mxu0 %v3555
        %v3557 = vpop.f32.mrf.mxu0
        %v3558 = vadd.f32 %v3077, %v3557
        %v3559 = vpop.f32.mrf.mxu0
        %3560 = vmatprep.mubr.f32.mxu0 0.0
        %v3561 = vand.u32 %v785, 4294901760
        %3562 = vmatmul.mubr.f32.gmra.mxu0 %v3561
        %v3563 = vpop.f32.mrf.mxu0
        %v3564 = vadd.f32 %v3085, %v3563
        %v3565 = vpop.f32.mrf.mxu0
        %3566 = vmatprep.mubr.f32.mxu0 0.0
        %v3567 = vand.u32 %v788, 4294901760
        %3568 = vmatmul.mubr.f32.gmra.mxu0 %v3567
        %v3569 = vpop.f32.mrf.mxu0
        %v3570 = vadd.f32 %v3093, %v3569
        %v3571 = vpop.f32.mrf.mxu0
        %3572 = vmatprep.mubr.f32.mxu0 0.0
        %v3573 = vand.u32 %v791, 4294901760
        %3574 = vmatmul.mubr.f32.gmra.mxu0 %v3573
        %v3575 = vpop.f32.mrf.mxu0
        %v3576 = vadd.f32 %v3101, %v3575
        %v3577 = vpop.f32.mrf.mxu0
        %3578 = vmatprep.mubr.f32.mxu0 0.0
        %v3579 = vand.u32 %v794, 4294901760
        %3580 = vmatmul.mubr.f32.gmra.mxu0 %v3579
        %v3581 = vpop.f32.mrf.mxu0
        %v3582 = vadd.f32 %v3109, %v3581
        %v3583 = vpop.f32.mrf.mxu0
        %3584 = vdwg.mxu0
        %3585 = vmatprep.subr.mxu0 0.0
        %3586 = vmatpush1.msra.mxu0 0.0
        %3587 = vmatprep.subr.mxu0 0.0
        %3588 = vmatpush1.msra.mxu0 0.0
        %3589 = vmatprep.subr.mxu0 0.0
        %3590 = vmatpush1.msra.mxu0 0.0
        %3591 = vmatprep.subr.mxu0 0.0
        %3592 = vmatpush1.msra.mxu0 0.0
        %3593 = vmatprep.subr.mxu0 0.0
        %3594 = vmatpush1.msra.mxu0 0.0
        %3595 = vmatprep.subr.mxu0 0.0
        %3596 = vmatpush1.msra.mxu0 0.0
        %3597 = vmatprep.subr.mxu0 0.0
        %3598 = vmatpush1.msra.mxu0 0.0
        %3599 = vmatprep.subr.mxu0 0.0
        %3600 = vmatpush1.msra.mxu0 0.0
        %3601 = vmatprep.subr.mxu0 0.0
        %v3602 = vand.u32 %v602, 4294901760
        %3603 = vmatpush1.msra.mxu0 %v3602
        %3604 = vmatprep.subr.mxu0 0.0
        %v3605 = vand.u32 %v601, 4294901760
        %3606 = vmatpush1.msra.mxu0 %v3605
        %3607 = vmatprep.subr.mxu0 0.0
        %v3608 = vand.u32 %v600, 4294901760
        %3609 = vmatpush1.msra.mxu0 %v3608
        %3610 = vmatprep.subr.mxu0 0.0
        %v3611 = vand.u32 %v599, 4294901760
        %3612 = vmatpush1.msra.mxu0 %v3611
        %3613 = vmatprep.subr.mxu0 0.0
        %v3614 = vand.u32 %v598, 4294901760
        %3615 = vmatpush1.msra.mxu0 %v3614
        %3616 = vmatprep.subr.mxu0 0.0
        %v3617 = vand.u32 %v597, 4294901760
        %3618 = vmatpush1.msra.mxu0 %v3617
        %3619 = vmatprep.subr.mxu0 0.0
        %v3620 = vand.u32 %v596, 4294901760
        %3621 = vmatpush1.msra.mxu0 %v3620
        %3622 = vmatprep.subr.mxu0 0.0
        %v3623 = vand.u32 %v595, 4294901760
        %3624 = vmatpush1.msra.mxu0 %v3623
        %3625 = vmatprep.subr.mxu0 0.0
        %3626 = vmatpush2.msra.mxu0 0.0
        %3627 = vmatprep.subr.mxu0 0.0
        %3628 = vmatpush2.msra.mxu0 0.0
        %3629 = vmatprep.subr.mxu0 0.0
        %3630 = vmatpush2.msra.mxu0 0.0
        %3631 = vmatprep.subr.mxu0 0.0
        %3632 = vmatpush2.msra.mxu0 0.0
        %3633 = vmatprep.subr.mxu0 0.0
        %3634 = vmatpush2.msra.mxu0 0.0
        %3635 = vmatprep.subr.mxu0 0.0
        %3636 = vmatpush2.msra.mxu0 0.0
        %3637 = vmatprep.subr.mxu0 0.0
        %3638 = vmatpush2.msra.mxu0 0.0
        %3639 = vmatprep.subr.mxu0 0.0
        %3640 = vmatpush2.msra.mxu0 0.0
        %3641 = vmatprep.subr.mxu0 0.0
        %3642 = vmatpush2.msra.mxu0 0.0
        %3643 = vmatprep.subr.mxu0 0.0
        %3644 = vmatpush2.msra.mxu0 0.0
        %3645 = vmatprep.subr.mxu0 0.0
        %3646 = vmatpush2.msra.mxu0 0.0
        %3647 = vmatprep.subr.mxu0 0.0
        %3648 = vmatpush2.msra.mxu0 0.0
        %3649 = vmatprep.subr.mxu0 0.0
        %3650 = vmatpush2.msra.mxu0 0.0
        %3651 = vmatprep.subr.mxu0 0.0
        %3652 = vmatpush2.msra.mxu0 0.0
        %3653 = vmatprep.subr.mxu0 0.0
        %3654 = vmatpush2.msra.mxu0 0.0
        %3655 = vmatprep.subr.mxu0 0.0
        %3656 = vmatpush2.msra.mxu0 0.0
        %3657 = vmatprep.mubr.f32.mxu0 0.0
        %v3658 = vand.u32 %v605, 4294901760
        %3659 = vmatmul.mubr.f32.gmra.mxu0 %v3658
        %v3660 = vpop.f32.mrf.mxu0
        %v3661 = vadd.f32 %v3204, %v3660
        %v3662 = vpop.f32.mrf.mxu0
        %3663 = vmatprep.mubr.f32.mxu0 0.0
        %v3664 = vand.u32 %v608, 4294901760
        %3665 = vmatmul.mubr.f32.gmra.mxu0 %v3664
        %v3666 = vpop.f32.mrf.mxu0
        %v3667 = vadd.f32 %v3210, %v3666
        %v3668 = vpop.f32.mrf.mxu0
        %3669 = vmatprep.mubr.f32.mxu0 0.0
        %v3670 = vand.u32 %v611, 4294901760
        %3671 = vmatmul.mubr.f32.gmra.mxu0 %v3670
        %v3672 = vpop.f32.mrf.mxu0
        %v3673 = vadd.f32 %v3216, %v3672
        %v3674 = vpop.f32.mrf.mxu0
        %3675 = vmatprep.mubr.f32.mxu0 0.0
        %v3676 = vand.u32 %v614, 4294901760
        %3677 = vmatmul.mubr.f32.gmra.mxu0 %v3676
        %v3678 = vpop.f32.mrf.mxu0
        %v3679 = vadd.f32 %v3222, %v3678
        %v3680 = vpop.f32.mrf.mxu0
        %3681 = vmatprep.mubr.f32.mxu0 0.0
        %v3682 = vand.u32 %v617, 4294901760
        %3683 = vmatmul.mubr.f32.gmra.mxu0 %v3682
        %v3684 = vpop.f32.mrf.mxu0
        %v3685 = vadd.f32 %v3228, %v3684
        %v3686 = vpop.f32.mrf.mxu0
        %3687 = vmatprep.mubr.f32.mxu0 0.0
        %v3688 = vand.u32 %v620, 4294901760
        %3689 = vmatmul.mubr.f32.gmra.mxu0 %v3688
        %v3690 = vpop.f32.mrf.mxu0
        %v3691 = vadd.f32 %v3234, %v3690
        %v3692 = vpop.f32.mrf.mxu0
        %3693 = vmatprep.mubr.f32.mxu0 0.0
        %v3694 = vand.u32 %v623, 4294901760
        %3695 = vmatmul.mubr.f32.gmra.mxu0 %v3694
        %v3696 = vpop.f32.mrf.mxu0
        %v3697 = vadd.f32 %v3240, %v3696
        %v3698 = vpop.f32.mrf.mxu0
        %3699 = vmatprep.mubr.f32.mxu0 0.0
        %v3700 = vand.u32 %v626, 4294901760
        %3701 = vmatmul.mubr.f32.gmra.mxu0 %v3700
        %v3702 = vpop.f32.mrf.mxu0
        %v3703 = vadd.f32 %v3246, %v3702
        %v3704 = vpop.f32.mrf.mxu0
        %3705 = vmatprep.mubr.f32.mxu0 0.0
        %v3706 = vand.u32 %v629, 4294901760
        %3707 = vmatmul.mubr.f32.gmra.mxu0 %v3706
        %v3708 = vpop.f32.mrf.mxu0
        %v3709 = vadd.f32 %v3252, %v3708
        %v3710 = vpop.f32.mrf.mxu0
        %3711 = vmatprep.mubr.f32.mxu0 0.0
        %v3712 = vand.u32 %v632, 4294901760
        %3713 = vmatmul.mubr.f32.gmra.mxu0 %v3712
        %v3714 = vpop.f32.mrf.mxu0
        %v3715 = vadd.f32 %v3258, %v3714
        %v3716 = vpop.f32.mrf.mxu0
        %3717 = vmatprep.mubr.f32.mxu0 0.0
        %v3718 = vand.u32 %v635, 4294901760
        %3719 = vmatmul.mubr.f32.gmra.mxu0 %v3718
        %v3720 = vpop.f32.mrf.mxu0
        %v3721 = vadd.f32 %v3264, %v3720
        %v3722 = vpop.f32.mrf.mxu0
        %3723 = vmatprep.mubr.f32.mxu0 0.0
        %v3724 = vand.u32 %v638, 4294901760
        %3725 = vmatmul.mubr.f32.gmra.mxu0 %v3724
        %v3726 = vpop.f32.mrf.mxu0
        %v3727 = vadd.f32 %v3270, %v3726
        %v3728 = vpop.f32.mrf.mxu0
        %3729 = vmatprep.mubr.f32.mxu0 0.0
        %v3730 = vand.u32 %v641, 4294901760
        %3731 = vmatmul.mubr.f32.gmra.mxu0 %v3730
        %v3732 = vpop.f32.mrf.mxu0
        %v3733 = vadd.f32 %v3276, %v3732
        %v3734 = vpop.f32.mrf.mxu0
        %3735 = vmatprep.mubr.f32.mxu0 0.0
        %v3736 = vand.u32 %v644, 4294901760
        %3737 = vmatmul.mubr.f32.gmra.mxu0 %v3736
        %v3738 = vpop.f32.mrf.mxu0
        %v3739 = vadd.f32 %v3282, %v3738
        %v3740 = vpop.f32.mrf.mxu0
        %3741 = vmatprep.mubr.f32.mxu0 0.0
        %v3742 = vand.u32 %v647, 4294901760
        %3743 = vmatmul.mubr.f32.gmra.mxu0 %v3742
        %v3744 = vpop.f32.mrf.mxu0
        %v3745 = vadd.f32 %v3288, %v3744
        %v3746 = vpop.f32.mrf.mxu0
        %3747 = vmatprep.mubr.f32.mxu0 0.0
        %v3748 = vand.u32 %v650, 4294901760
        %3749 = vmatmul.mubr.f32.gmra.mxu0 %v3748
        %v3750 = vpop.f32.mrf.mxu0
        %v3751 = vadd.f32 %v3294, %v3750
        %v3752 = vpop.f32.mrf.mxu0
        %3753 = vmatprep.mubr.f32.mxu0 0.0
        %v3754 = vand.u32 %v653, 4294901760
        %3755 = vmatmul.mubr.f32.gmra.mxu0 %v3754
        %v3756 = vpop.f32.mrf.mxu0
        %v3757 = vadd.f32 %v3300, %v3756
        %v3758 = vpop.f32.mrf.mxu0
        %3759 = vmatprep.mubr.f32.mxu0 0.0
        %v3760 = vand.u32 %v656, 4294901760
        %3761 = vmatmul.mubr.f32.gmra.mxu0 %v3760
        %v3762 = vpop.f32.mrf.mxu0
        %v3763 = vadd.f32 %v3306, %v3762
        %v3764 = vpop.f32.mrf.mxu0
        %3765 = vmatprep.mubr.f32.mxu0 0.0
        %v3766 = vand.u32 %v659, 4294901760
        %3767 = vmatmul.mubr.f32.gmra.mxu0 %v3766
        %v3768 = vpop.f32.mrf.mxu0
        %v3769 = vadd.f32 %v3312, %v3768
        %v3770 = vpop.f32.mrf.mxu0
        %3771 = vmatprep.mubr.f32.mxu0 0.0
        %v3772 = vand.u32 %v662, 4294901760
        %3773 = vmatmul.mubr.f32.gmra.mxu0 %v3772
        %v3774 = vpop.f32.mrf.mxu0
        %v3775 = vadd.f32 %v3318, %v3774
        %v3776 = vpop.f32.mrf.mxu0
        %3777 = vmatprep.mubr.f32.mxu0 0.0
        %v3778 = vand.u32 %v665, 4294901760
        %3779 = vmatmul.mubr.f32.gmra.mxu0 %v3778
        %v3780 = vpop.f32.mrf.mxu0
        %v3781 = vadd.f32 %v3324, %v3780
        %v3782 = vpop.f32.mrf.mxu0
        %3783 = vmatprep.mubr.f32.mxu0 0.0
        %v3784 = vand.u32 %v668, 4294901760
        %3785 = vmatmul.mubr.f32.gmra.mxu0 %v3784
        %v3786 = vpop.f32.mrf.mxu0
        %v3787 = vadd.f32 %v3330, %v3786
        %v3788 = vpop.f32.mrf.mxu0
        %3789 = vmatprep.mubr.f32.mxu0 0.0
        %v3790 = vand.u32 %v671, 4294901760
        %3791 = vmatmul.mubr.f32.gmra.mxu0 %v3790
        %v3792 = vpop.f32.mrf.mxu0
        %v3793 = vadd.f32 %v3336, %v3792
        %v3794 = vpop.f32.mrf.mxu0
        %3795 = vmatprep.mubr.f32.mxu0 0.0
        %v3796 = vand.u32 %v674, 4294901760
        %3797 = vmatmul.mubr.f32.gmra.mxu0 %v3796
        %v3798 = vpop.f32.mrf.mxu0
        %v3799 = vadd.f32 %v3342, %v3798
        %v3800 = vpop.f32.mrf.mxu0
        %3801 = vmatprep.mubr.f32.mxu0 0.0
        %v3802 = vand.u32 %v677, 4294901760
        %3803 = vmatmul.mubr.f32.gmra.mxu0 %v3802
        %v3804 = vpop.f32.mrf.mxu0
        %v3805 = vadd.f32 %v3348, %v3804
        %v3806 = vpop.f32.mrf.mxu0
        %3807 = vmatprep.mubr.f32.mxu0 0.0
        %v3808 = vand.u32 %v680, 4294901760
        %3809 = vmatmul.mubr.f32.gmra.mxu0 %v3808
        %v3810 = vpop.f32.mrf.mxu0
        %v3811 = vadd.f32 %v3354, %v3810
        %v3812 = vpop.f32.mrf.mxu0
        %3813 = vmatprep.mubr.f32.mxu0 0.0
        %v3814 = vand.u32 %v683, 4294901760
        %3815 = vmatmul.mubr.f32.gmra.mxu0 %v3814
        %v3816 = vpop.f32.mrf.mxu0
        %v3817 = vadd.f32 %v3360, %v3816
        %v3818 = vpop.f32.mrf.mxu0
        %3819 = vmatprep.mubr.f32.mxu0 0.0
        %v3820 = vand.u32 %v686, 4294901760
        %3821 = vmatmul.mubr.f32.gmra.mxu0 %v3820
        %v3822 = vpop.f32.mrf.mxu0
        %v3823 = vadd.f32 %v3366, %v3822
        %v3824 = vpop.f32.mrf.mxu0
        %3825 = vmatprep.mubr.f32.mxu0 0.0
        %v3826 = vand.u32 %v689, 4294901760
        %3827 = vmatmul.mubr.f32.gmra.mxu0 %v3826
        %v3828 = vpop.f32.mrf.mxu0
        %v3829 = vadd.f32 %v3372, %v3828
        %v3830 = vpop.f32.mrf.mxu0
        %3831 = vmatprep.mubr.f32.mxu0 0.0
        %v3832 = vand.u32 %v692, 4294901760
        %3833 = vmatmul.mubr.f32.gmra.mxu0 %v3832
        %v3834 = vpop.f32.mrf.mxu0
        %v3835 = vadd.f32 %v3378, %v3834
        %v3836 = vpop.f32.mrf.mxu0
        %3837 = vmatprep.mubr.f32.mxu0 0.0
        %v3838 = vand.u32 %v695, 4294901760
        %3839 = vmatmul.mubr.f32.gmra.mxu0 %v3838
        %v3840 = vpop.f32.mrf.mxu0
        %v3841 = vadd.f32 %v3384, %v3840
        %v3842 = vpop.f32.mrf.mxu0
        %3843 = vmatprep.mubr.f32.mxu0 0.0
        %v3844 = vand.u32 %v698, 4294901760
        %3845 = vmatmul.mubr.f32.gmra.mxu0 %v3844
        %v3846 = vpop.f32.mrf.mxu0
        %v3847 = vadd.f32 %v3390, %v3846
        %v3848 = vpop.f32.mrf.mxu0
        %3849 = vmatprep.mubr.f32.mxu0 0.0
        %v3850 = vand.u32 %v701, 4294901760
        %3851 = vmatmul.mubr.f32.gmra.mxu0 %v3850
        %v3852 = vpop.f32.mrf.mxu0
        %v3853 = vadd.f32 %v3396, %v3852
        %v3854 = vpop.f32.mrf.mxu0
        %3855 = vmatprep.mubr.f32.mxu0 0.0
        %v3856 = vand.u32 %v704, 4294901760
        %3857 = vmatmul.mubr.f32.gmra.mxu0 %v3856
        %v3858 = vpop.f32.mrf.mxu0
        %v3859 = vadd.f32 %v3402, %v3858
        %v3860 = vpop.f32.mrf.mxu0
        %3861 = vmatprep.mubr.f32.mxu0 0.0
        %v3862 = vand.u32 %v707, 4294901760
        %3863 = vmatmul.mubr.f32.gmra.mxu0 %v3862
        %v3864 = vpop.f32.mrf.mxu0
        %v3865 = vadd.f32 %v3408, %v3864
        %v3866 = vpop.f32.mrf.mxu0
        %3867 = vmatprep.mubr.f32.mxu0 0.0
        %v3868 = vand.u32 %v710, 4294901760
        %3869 = vmatmul.mubr.f32.gmra.mxu0 %v3868
        %v3870 = vpop.f32.mrf.mxu0
        %v3871 = vadd.f32 %v3414, %v3870
        %v3872 = vpop.f32.mrf.mxu0
        %3873 = vmatprep.mubr.f32.mxu0 0.0
        %v3874 = vand.u32 %v713, 4294901760
        %3875 = vmatmul.mubr.f32.gmra.mxu0 %v3874
        %v3876 = vpop.f32.mrf.mxu0
        %v3877 = vadd.f32 %v3420, %v3876
        %v3878 = vpop.f32.mrf.mxu0
        %3879 = vmatprep.mubr.f32.mxu0 0.0
        %v3880 = vand.u32 %v716, 4294901760
        %3881 = vmatmul.mubr.f32.gmra.mxu0 %v3880
        %v3882 = vpop.f32.mrf.mxu0
        %v3883 = vadd.f32 %v3426, %v3882
        %v3884 = vpop.f32.mrf.mxu0
        %3885 = vmatprep.mubr.f32.mxu0 0.0
        %v3886 = vand.u32 %v719, 4294901760
        %3887 = vmatmul.mubr.f32.gmra.mxu0 %v3886
        %v3888 = vpop.f32.mrf.mxu0
        %v3889 = vadd.f32 %v3432, %v3888
        %v3890 = vpop.f32.mrf.mxu0
        %3891 = vmatprep.mubr.f32.mxu0 0.0
        %v3892 = vand.u32 %v722, 4294901760
        %3893 = vmatmul.mubr.f32.gmra.mxu0 %v3892
        %v3894 = vpop.f32.mrf.mxu0
        %v3895 = vadd.f32 %v3438, %v3894
        %v3896 = vpop.f32.mrf.mxu0
        %3897 = vmatprep.mubr.f32.mxu0 0.0
        %v3898 = vand.u32 %v725, 4294901760
        %3899 = vmatmul.mubr.f32.gmra.mxu0 %v3898
        %v3900 = vpop.f32.mrf.mxu0
        %v3901 = vadd.f32 %v3444, %v3900
        %v3902 = vpop.f32.mrf.mxu0
        %3903 = vmatprep.mubr.f32.mxu0 0.0
        %v3904 = vand.u32 %v728, 4294901760
        %3905 = vmatmul.mubr.f32.gmra.mxu0 %v3904
        %v3906 = vpop.f32.mrf.mxu0
        %v3907 = vadd.f32 %v3450, %v3906
        %v3908 = vpop.f32.mrf.mxu0
        %3909 = vmatprep.mubr.f32.mxu0 0.0
        %v3910 = vand.u32 %v731, 4294901760
        %3911 = vmatmul.mubr.f32.gmra.mxu0 %v3910
        %v3912 = vpop.f32.mrf.mxu0
        %v3913 = vadd.f32 %v3456, %v3912
        %v3914 = vpop.f32.mrf.mxu0
        %3915 = vmatprep.mubr.f32.mxu0 0.0
        %v3916 = vand.u32 %v734, 4294901760
        %3917 = vmatmul.mubr.f32.gmra.mxu0 %v3916
        %v3918 = vpop.f32.mrf.mxu0
        %v3919 = vadd.f32 %v3462, %v3918
        %v3920 = vpop.f32.mrf.mxu0
        %3921 = vmatprep.mubr.f32.mxu0 0.0
        %v3922 = vand.u32 %v737, 4294901760
        %3923 = vmatmul.mubr.f32.gmra.mxu0 %v3922
        %v3924 = vpop.f32.mrf.mxu0
        %v3925 = vadd.f32 %v3468, %v3924
        %v3926 = vpop.f32.mrf.mxu0
        %3927 = vmatprep.mubr.f32.mxu0 0.0
        %v3928 = vand.u32 %v740, 4294901760
        %3929 = vmatmul.mubr.f32.gmra.mxu0 %v3928
        %v3930 = vpop.f32.mrf.mxu0
        %v3931 = vadd.f32 %v3474, %v3930
        %v3932 = vpop.f32.mrf.mxu0
        %3933 = vmatprep.mubr.f32.mxu0 0.0
        %v3934 = vand.u32 %v743, 4294901760
        %3935 = vmatmul.mubr.f32.gmra.mxu0 %v3934
        %v3936 = vpop.f32.mrf.mxu0
        %v3937 = vadd.f32 %v3480, %v3936
        %v3938 = vpop.f32.mrf.mxu0
        %3939 = vmatprep.mubr.f32.mxu0 0.0
        %v3940 = vand.u32 %v746, 4294901760
        %3941 = vmatmul.mubr.f32.gmra.mxu0 %v3940
        %v3942 = vpop.f32.mrf.mxu0
        %v3943 = vadd.f32 %v3486, %v3942
        %v3944 = vpop.f32.mrf.mxu0
        %3945 = vmatprep.mubr.f32.mxu0 0.0
        %v3946 = vand.u32 %v749, 4294901760
        %3947 = vmatmul.mubr.f32.gmra.mxu0 %v3946
        %v3948 = vpop.f32.mrf.mxu0
        %v3949 = vadd.f32 %v3492, %v3948
        %v3950 = vpop.f32.mrf.mxu0
        %3951 = vmatprep.mubr.f32.mxu0 0.0
        %v3952 = vand.u32 %v752, 4294901760
        %3953 = vmatmul.mubr.f32.gmra.mxu0 %v3952
        %v3954 = vpop.f32.mrf.mxu0
        %v3955 = vadd.f32 %v3498, %v3954
        %v3956 = vpop.f32.mrf.mxu0
        %3957 = vmatprep.mubr.f32.mxu0 0.0
        %v3958 = vand.u32 %v755, 4294901760
        %3959 = vmatmul.mubr.f32.gmra.mxu0 %v3958
        %v3960 = vpop.f32.mrf.mxu0
        %v3961 = vadd.f32 %v3504, %v3960
        %v3962 = vpop.f32.mrf.mxu0
        %3963 = vmatprep.mubr.f32.mxu0 0.0
        %v3964 = vand.u32 %v758, 4294901760
        %3965 = vmatmul.mubr.f32.gmra.mxu0 %v3964
        %v3966 = vpop.f32.mrf.mxu0
        %v3967 = vadd.f32 %v3510, %v3966
        %v3968 = vpop.f32.mrf.mxu0
        %3969 = vmatprep.mubr.f32.mxu0 0.0
        %v3970 = vand.u32 %v761, 4294901760
        %3971 = vmatmul.mubr.f32.gmra.mxu0 %v3970
        %v3972 = vpop.f32.mrf.mxu0
        %v3973 = vadd.f32 %v3516, %v3972
        %v3974 = vpop.f32.mrf.mxu0
        %3975 = vmatprep.mubr.f32.mxu0 0.0
        %v3976 = vand.u32 %v764, 4294901760
        %3977 = vmatmul.mubr.f32.gmra.mxu0 %v3976
        %v3978 = vpop.f32.mrf.mxu0
        %v3979 = vadd.f32 %v3522, %v3978
        %v3980 = vpop.f32.mrf.mxu0
        %3981 = vmatprep.mubr.f32.mxu0 0.0
        %v3982 = vand.u32 %v767, 4294901760
        %3983 = vmatmul.mubr.f32.gmra.mxu0 %v3982
        %v3984 = vpop.f32.mrf.mxu0
        %v3985 = vadd.f32 %v3528, %v3984
        %v3986 = vpop.f32.mrf.mxu0
        %3987 = vmatprep.mubr.f32.mxu0 0.0
        %v3988 = vand.u32 %v770, 4294901760
        %3989 = vmatmul.mubr.f32.gmra.mxu0 %v3988
        %v3990 = vpop.f32.mrf.mxu0
        %v3991 = vadd.f32 %v3534, %v3990
        %v3992 = vpop.f32.mrf.mxu0
        %3993 = vmatprep.mubr.f32.mxu0 0.0
        %v3994 = vand.u32 %v773, 4294901760
        %3995 = vmatmul.mubr.f32.gmra.mxu0 %v3994
        %v3996 = vpop.f32.mrf.mxu0
        %v3997 = vadd.f32 %v3540, %v3996
        %v3998 = vpop.f32.mrf.mxu0
        %3999 = vmatprep.mubr.f32.mxu0 0.0
        %v4000 = vand.u32 %v776, 4294901760
        %4001 = vmatmul.mubr.f32.gmra.mxu0 %v4000
        %v4002 = vpop.f32.mrf.mxu0
        %v4003 = vadd.f32 %v3546, %v4002
        %v4004 = vpop.f32.mrf.mxu0
        %4005 = vmatprep.mubr.f32.mxu0 0.0
        %v4006 = vand.u32 %v779, 4294901760
        %4007 = vmatmul.mubr.f32.gmra.mxu0 %v4006
        %v4008 = vpop.f32.mrf.mxu0
        %v4009 = vadd.f32 %v3552, %v4008
        %v4010 = vpop.f32.mrf.mxu0
        %4011 = vmatprep.mubr.f32.mxu0 0.0
        %v4012 = vand.u32 %v782, 4294901760
        %4013 = vmatmul.mubr.f32.gmra.mxu0 %v4012
        %v4014 = vpop.f32.mrf.mxu0
        %v4015 = vadd.f32 %v3558, %v4014
        %v4016 = vpop.f32.mrf.mxu0
        %4017 = vmatprep.mubr.f32.mxu0 0.0
        %v4018 = vand.u32 %v785, 4294901760
        %4019 = vmatmul.mubr.f32.gmra.mxu0 %v4018
        %v4020 = vpop.f32.mrf.mxu0
        %v4021 = vadd.f32 %v3564, %v4020
        %v4022 = vpop.f32.mrf.mxu0
        %4023 = vmatprep.mubr.f32.mxu0 0.0
        %v4024 = vand.u32 %v788, 4294901760
        %4025 = vmatmul.mubr.f32.gmra.mxu0 %v4024
        %v4026 = vpop.f32.mrf.mxu0
        %v4027 = vadd.f32 %v3570, %v4026
        %v4028 = vpop.f32.mrf.mxu0
        %4029 = vmatprep.mubr.f32.mxu0 0.0
        %v4030 = vand.u32 %v791, 4294901760
        %4031 = vmatmul.mubr.f32.gmra.mxu0 %v4030
        %v4032 = vpop.f32.mrf.mxu0
        %v4033 = vadd.f32 %v3576, %v4032
        %v4034 = vpop.f32.mrf.mxu0
        %4035 = vmatprep.mubr.f32.mxu0 0.0
        %v4036 = vand.u32 %v794, 4294901760
        %4037 = vmatmul.mubr.f32.gmra.mxu0 %v4036
        %v4038 = vpop.f32.mrf.mxu0
        %v4039 = vadd.f32 %v3582, %v4038
        %v4040 = vpop.f32.mrf.mxu0
        %4041 = vdwg.mxu0
        %4042 = vst [vmem:[%s137] sm:$0xff] %v3661
        %4043 = vst [vmem:[%s137 + $0x8] sm:$0xff] %v3667
        %4044 = vst [vmem:[%s137 + $0x10] sm:$0xff] %v3673
        %4045 = vst [vmem:[%s137 + $0x18] sm:$0xff] %v3679
        %4046 = vst [vmem:[%s137 + $0x20] sm:$0xff] %v3685
        %4047 = vst [vmem:[%s137 + $0x28] sm:$0xff] %v3691
        %4048 = vst [vmem:[%s137 + $0x30] sm:$0xff] %v3697
        %4049 = vst [vmem:[%s137 + $0x38] sm:$0xff] %v3703
        %4050 = vst [vmem:[%s137 + $0x40] sm:$0xff] %v3709
        %4051 = vst [vmem:[%s137 + $0x48] sm:$0xff] %v3715
        %4052 = vst [vmem:[%s137 + $0x50] sm:$0xff] %v3721
        %4053 = vst [vmem:[%s137 + $0x58] sm:$0xff] %v3727
        %4054 = vst [vmem:[%s137 + $0x60] sm:$0xff] %v3733
        %4055 = vst [vmem:[%s137 + $0x68] sm:$0xff] %v3739
        %4056 = vst [vmem:[%s137 + $0x70] sm:$0xff] %v3745
        %4057 = vst [vmem:[%s137 + $0x78] sm:$0xff] %v3751
        %4058 = vst [vmem:[%s137 + $0x80] sm:$0xff] %v3757
        %4059 = vst [vmem:[%s137 + $0x88] sm:$0xff] %v3763
        %4060 = vst [vmem:[%s137 + $0x90] sm:$0xff] %v3769
        %4061 = vst [vmem:[%s137 + $0x98] sm:$0xff] %v3775
        %4062 = vst [vmem:[%s137 + $0xa0] sm:$0xff] %v3781
        %4063 = vst [vmem:[%s137 + $0xa8] sm:$0xff] %v3787
        %4064 = vst [vmem:[%s137 + $0xb0] sm:$0xff] %v3793
        %4065 = vst [vmem:[%s137 + $0xb8] sm:$0xff] %v3799
        %4066 = vst [vmem:[%s137 + $0xc0] sm:$0xff] %v3805
        %4067 = vst [vmem:[%s137 + $0xc8] sm:$0xff] %v3811
        %4068 = vst [vmem:[%s137 + $0xd0] sm:$0xff] %v3817
        %4069 = vst [vmem:[%s137 + $0xd8] sm:$0xff] %v3823
        %4070 = vst [vmem:[%s137 + $0xe0] sm:$0xff] %v3829
        %4071 = vst [vmem:[%s137 + $0xe8] sm:$0xff] %v3835
        %4072 = vst [vmem:[%s137 + $0xf0] sm:$0xff] %v3841
        %4073 = vst [vmem:[%s137 + $0xf8] sm:$0xff] %v3847
        %4074 = vst [vmem:[%s137 + $0x100] sm:$0xff] %v3853
        %4075 = vst [vmem:[%s137 + $0x108] sm:$0xff] %v3859
        %4076 = vst [vmem:[%s137 + $0x110] sm:$0xff] %v3865
        %4077 = vst [vmem:[%s137 + $0x118] sm:$0xff] %v3871
        %4078 = vst [vmem:[%s137 + $0x120] sm:$0xff] %v3877
        %4079 = vst [vmem:[%s137 + $0x128] sm:$0xff] %v3883
        %4080 = vst [vmem:[%s137 + $0x130] sm:$0xff] %v3889
        %4081 = vst [vmem:[%s137 + $0x138] sm:$0xff] %v3895
        %4082 = vst [vmem:[%s137 + $0x140] sm:$0xff] %v3901
        %4083 = vst [vmem:[%s137 + $0x148] sm:$0xff] %v3907
        %4084 = vst [vmem:[%s137 + $0x150] sm:$0xff] %v3913
        %4085 = vst [vmem:[%s137 + $0x158] sm:$0xff] %v3919
        %4086 = vst [vmem:[%s137 + $0x160] sm:$0xff] %v3925
        %4087 = vst [vmem:[%s137 + $0x168] sm:$0xff] %v3931
        %4088 = vst [vmem:[%s137 + $0x170] sm:$0xff] %v3937
        %4089 = vst [vmem:[%s137 + $0x178] sm:$0xff] %v3943
        %4090 = vst [vmem:[%s137 + $0x180] sm:$0xff] %v3949
        %4091 = vst [vmem:[%s137 + $0x188] sm:$0xff] %v3955
        %4092 = vst [vmem:[%s137 + $0x190] sm:$0xff] %v3961
        %4093 = vst [vmem:[%s137 + $0x198] sm:$0xff] %v3967
        %4094 = vst [vmem:[%s137 + $0x1a0] sm:$0xff] %v3973
        %4095 = vst [vmem:[%s137 + $0x1a8] sm:$0xff] %v3979
        %4096 = vst [vmem:[%s137 + $0x1b0] sm:$0xff] %v3985
        %4097 = vst [vmem:[%s137 + $0x1b8] sm:$0xff] %v3991
        %4098 = vst [vmem:[%s137 + $0x1c0] sm:$0xff] %v3997
        %4099 = vst [vmem:[%s137 + $0x1c8] sm:$0xff] %v4003
        %4100 = vst [vmem:[%s137 + $0x1d0] sm:$0xff] %v4009
        %4101 = vst [vmem:[%s137 + $0x1d8] sm:$0xff] %v4015
        %4102 = vst [vmem:[%s137 + $0x1e0] sm:$0xff] %v4021
        %4103 = vst [vmem:[%s137 + $0x1e8] sm:$0xff] %v4027
        %4104 = vst [vmem:[%s137 + $0x1f0] sm:$0xff] %v4033
        %4105 = vst [vmem:[%s137 + $0x1f8] sm:$0xff] %v4039
        %s4106 = sand.u32 %s71, 1
        %s4107 = scalar_lea.sflag [#allocation3], %s4106
        %s4108 = sand.u32 %s71, 1
        %s4109 = smul.addr %s4108, 512
        %s4110 = scalar_lea.vmem [#allocation2], %s4109
        // Predicated region
        $region29: #{tpu_custom_call.1} parent=27 // pred_check
          %p4111 = pneg %p81
        $region30: #{tpu_custom_call.1} parent=27 // pred_check_branch
          %4113 = sbr.rel (%p4111) target = $region32
        $region31: #{tpu_custom_call.1} parent=27 // pred_region
          %s4114 = smul.u32 64, %s16
          %s4116 = ssub.s32 8192, 8192
          %4117 = vsyncadd %s4107, %s4116
          %s4118 = smul.addr %s4114, 128
          %s4119 = scalar_lea.hbm %s2, %s4118
          %s4120 = sshll.u32 %s4110, 4
          %s4121 = int_to_ptr.vmem [resolvable:$true] %s4120
          %4126 = dma.vmem_to_hbm [thread:$0]  %s4121, 8192, %s4119, %s4107, 128, 128, 8
        $region32: #{tpu_custom_call.1} parent=27 // pred_fallthru
          _
      $region28: #{tpu_custom_call.1} parent=5 // pred_fallthru
        _
      %p4127 = scmp.le.s32.totalorder 2, %s11
      // Predicated region
      $region33: #{tpu_custom_call.1} parent=5 // pred_check
        %p4128 = pneg %p4127
      $region34: #{tpu_custom_call.1} parent=5 // pred_check_branch
        %4130 = sbr.rel (%p4128) target = $region36
      $region35: #{tpu_custom_call.1} parent=5 // pred_region
        %s4131 = ssub.s32 %s11, 2
        // Predicated region
        $region37: #{tpu_custom_call.1} parent=35 // pred_check
          %p4132 = pneg %p87
        $region38: #{tpu_custom_call.1} parent=35 // pred_check_branch
          %4134 = sbr.rel (%p4132) target = $region40
        $region39: #{tpu_custom_call.1} parent=35 // pred_region
          %s4135 = sand.u32 %s72, 1
          %s4136 = scalar_lea.sflag [#allocation3], %s4135
          %s4137 = sand.u32 %s72, 1
          %s4138 = smul.addr %s4137, 512
          %s4139 = scalar_lea.vmem [#allocation2], %s4138
          %4140 = dma.done %s4136, 8192
        $region40: #{tpu_custom_call.1} parent=35 // pred_fallthru
          _
      $region36: #{tpu_custom_call.1} parent=5 // pred_fallthru
        _
    $region6: #{tpu_custom_call.1} parent=1 // loop_footer
      %s15 = sadd.s32 1, %s11
    $region7: #{tpu_custom_call.1} parent=1 // loop_footer_branch
      %10 = sbr.rel target = $region3
    $region8: #{tpu_custom_call.1} parent=1 // loop_exit
      _
    %4141 = vsyncpa [#allocation3], 1
    %s4142 = scalar_lea.sflag [#allocation3], 1
    %4143 = vsyncpa %s4142, 1

</llo_original>
